<compile_context>
chip_gen: v7x
topology: tpu7x:2x2x1
jax: 0.10.0
libtpu: 0.0.40
codegen_flags: <defaults>
</compile_context>

<pallas_src>
import functools

import jax
import jax.numpy as jnp
import numpy as np
from jax.experimental import pallas as pl
from jax.experimental.pallas import tpu as pltpu


# ------------------------------ fused kernel ---------------------------------


def _decoder_kernel(*refs, H, W, n_conv):
    """Fused Decoder forward for one image (one grid step).

    refs layout:
      inputs : x(1, cpad, P) bf16        spatially+channel pre-padded image
               mask(1, M) f32            1 for real pixels, 0 for halo columns
               [w(9, cout_p, cpad) bf16, scale(cout_p, 1) f32, bias(cout_p, 1) f32] * n_conv
               w_lin(L, L) f32 (out, in), b_lin(L, 1) f32
      outputs: o(1, L, 1) f32
      scratch: xpad(cpad, P) bf16        flattened zero-haloed activation buffer
    """
    xin_ref = refs[0]
    mask_ref = refs[1]
    conv_refs = refs[2:2 + 3 * n_conv]
    wl_ref = refs[2 + 3 * n_conv]
    bl_ref = refs[3 + 3 * n_conv]
    o_ref = refs[4 + 3 * n_conv]
    xpad_ref = refs[5 + 3 * n_conv]

    Wp = W + 2
    M = (H - 1) * Wp + W            # flattened span covering all output pixels
    inv_hw = 1.0 / float(H * W)

    # Zero-haloed, channel-padded input -> scratch.  The halo stays zero for
    # every subsequent layer: writebacks mask the halo columns to zero and the
    # halo rows are outside the written span.
    xpad_ref[...] = xin_ref[0]

    mask = mask_ref[...]            # (1, M) f32, hoisted once

    for li in range(n_conv):
        w_ref = conv_refs[3 * li]         # (9, cout_p, cpad) bf16, tap-major
        s_ref = conv_refs[3 * li + 1]     # (cout_p, 1) f32   folded BN scale
        b_ref = conv_refs[3 * li + 2]     # (cout_p, 1) f32   folded BN bias

        # 3x3 SAME conv = 9 accumulating MXU matmuls over lane-offset tap views
        # of the flattened padded activation (no patches tensor materialized).
        acc = None
        for t in range(9):
            dy, dx = t // 3, t % 3
            off = dy * Wp + dx
            tap = xpad_ref[:, off:off + M]                       # (cpad, M) bf16
            part = jnp.dot(w_ref[t], tap, preferred_element_type=jnp.float32)
            acc = part if acc is None else acc + part

        # BN(eval) + conv-bias fold + ReLU in f32; mask zeroes the interleaved
        # halo columns so the scratch halo stays zero.
        y = jnp.maximum(acc * s_ref[...] + b_ref[...], 0.0) * mask

        if li < n_conv - 1:
            # Write the interior span back (halo rows untouched, halo columns
            # zeroed by the mask) in bf16 for the next layer.
            xpad_ref[:, Wp + 1:Wp + 1 + M] = y.astype(xpad_ref.dtype)
        else:
            # AdaptiveAvgPool2d((1,1)) + squeeze + Linear, all on-chip.
            pooled = jnp.sum(y, axis=1, keepdims=True) * inv_hw         # (L, 1)
            out = jnp.dot(wl_ref[...], pooled,
                          preferred_element_type=jnp.float32) + bl_ref[...]
            o_ref[...] = out.reshape(o_ref.shape)


# ------------------------------ wrapper ---------------------------------------


def _resident_spec(arr):
    """Full-array block with a constant index_map -> fetched once, VMEM-resident."""
    nd = arr.ndim
    shape = tuple(int(d) for d in arr.shape)
    return pl.BlockSpec(shape, lambda b, _nd=nd: (0,) * _nd)


@jax.jit
def decoder_forward(params, image_nchw):
    convs = params["convs"]
    n_conv = len(convs)
    B, cin0, H, W = (int(d) for d in image_nchw.shape)
    Wp, Hp = W + 2, H + 2
    P = Hp * Wp
    M = (H - 1) * Wp + W
    cpad = max(int(w.shape[2]) for (w, _, _) in convs)   # common Cin width

    # One-time pad of the network input: channels cin0 -> cpad, +1 spatial halo,
    # flatten (H+2, W+2) into a single lane-dense axis, cast to bf16.
    x_p = jnp.pad(image_nchw.astype(jnp.float32),
                  ((0, 0), (0, cpad - cin0), (1, 1), (1, 1)))
    x_p = x_p.reshape(B, cpad, P).astype(jnp.bfloat16)

    # Valid-column mask over the flattened output span (zeros where the span
    # crosses the left/right halo columns of the padded buffer).
    cols = np.arange(M)
    mask = jnp.asarray(((cols % Wp) < W).astype(np.float32).reshape(1, M))

    flat_inputs = [x_p, mask]
    for li, (w, s, b) in enumerate(convs):
        cin, cout = int(w.shape[2]), int(w.shape[3])
        last = li == n_conv - 1
        cout_p = cout if last else cpad
        # (3,3,cin,cout) HWIO -> tap-major (9, cout, cin), zero-padded to
        # (9, cout_p, cpad), bf16 for the MXU.  Tap order matches the kernel
        # (dy-major, then dx).
        w_t = jnp.transpose(w, (0, 1, 3, 2)).reshape(9, cout, cin)
        w_pk = jnp.zeros((9, cout_p, cpad), jnp.float32).at[:, :cout, :cin].set(w_t)
        s_p = jnp.zeros((cout_p, 1), jnp.float32).at[:cout, 0].set(s)
        b_p = jnp.zeros((cout_p, 1), jnp.float32).at[:cout, 0].set(b)
        flat_inputs += [w_pk.astype(jnp.bfloat16), s_p, b_p]

    w_lin, b_lin = params["linear"]                    # (L_out, L_in), (L,)
    L = int(w_lin.shape[0])
    flat_inputs += [w_lin.astype(jnp.float32),
                    b_lin.reshape(L, 1).astype(jnp.float32)]

    in_specs = [pl.BlockSpec((1, cpad, P), lambda b: (b, 0, 0))]
    in_specs += [_resident_spec(a) for a in flat_inputs[1:]]

    # VMEM budget: scratch + double-buffered input block + resident weights +
    # f32 accumulator/temporaries, with slack; capped for v7x's 64 MiB VMEM.
    def nbytes(a):
        return int(np.prod(a.shape)) * int(np.dtype(a.dtype).itemsize)

    cout_max = max(cpad, L)
    x_block_bytes = cpad * P * 2
    vmem_need = (cpad * P * 2                     # activation scratch (bf16)
                 + 2 * x_block_bytes              # double-buffered input block
                 + sum(nbytes(a) for a in flat_inputs[1:])
                 + 4 * cout_max * M * 4)          # f32 acc + temporaries
    vmem_limit = int(min(48 * 2 ** 20, max(32 * 2 ** 20, 2 * vmem_need)))

    conv_flops = 0
    for li, (w, _, _) in enumerate(convs):
        cout_p = int(w.shape[3]) if li == n_conv - 1 else cpad
        conv_flops += 2 * 9 * cpad * cout_p * H * W
    flops = B * (conv_flops + 2 * L * L)
    bytes_accessed = (nbytes(x_p) + sum(nbytes(a) for a in flat_inputs[1:])
                      + B * L * 4)

    kern = functools.partial(_decoder_kernel, H=H, W=W, n_conv=n_conv)
    out = pl.pallas_call(
        kern,
        grid=(B,),
        out_shape=jax.ShapeDtypeStruct((B, L, 1), jnp.float32),
        in_specs=in_specs,
        out_specs=pl.BlockSpec((1, L, 1), lambda b: (b, 0, 0)),
        scratch_shapes=[pltpu.VMEM((cpad, P), jnp.bfloat16)],
        compiler_params=pltpu.CompilerParams(
            dimension_semantics=("parallel",),
            vmem_limit_bytes=vmem_limit),
        cost_estimate=pl.CostEstimate(flops=flops, transcendentals=0,
                                      bytes_accessed=bytes_accessed),
    )(*flat_inputs)
    return out.reshape(B, L)


# --------------------------- params & reference -------------------------------


def init_params(key, decoder_channels, decoder_blocks, message_length):
    """Deterministic synthetic parameters matching the PyTorch module shapes."""
    C, L = decoder_channels, message_length
    io = [(3, C)] + [(C, C)] * (decoder_blocks - 1) + [(C, L)]
    eps = 1e-5
    convs = []
    for (cin, cout) in io:
        key, k1, k2, k3, k4, k5, k6 = jax.random.split(key, 7)
        w = jax.random.normal(k1, (3, 3, cin, cout), jnp.float32) / jnp.sqrt(9.0 * cin)
        # Round weights to bf16-representable values so the bf16 kernel and the
        # f32 reference share the exact same effective weights.
        w = w.astype(jnp.bfloat16).astype(jnp.float32)
        conv_b = 0.05 * jax.random.normal(k2, (cout,), jnp.float32)
        gamma = 1.0 + 0.1 * jax.random.normal(k3, (cout,), jnp.float32)
        beta = 0.1 * jax.random.normal(k4, (cout,), jnp.float32)
        rmean = 0.1 * jax.random.normal(k5, (cout,), jnp.float32)
        rvar = 0.5 + jax.random.uniform(k6, (cout,), jnp.float32)
        scale = gamma / jnp.sqrt(rvar + eps)            # fold BN(eval) into scale/bias
        bias = (conv_b - rmean) * scale + beta
        convs.append((w, scale, bias))
    key, k1, k2 = jax.random.split(key, 3)
    w_lin = jax.random.normal(k1, (L, L), jnp.float32) / jnp.sqrt(float(L))  # (out, in)
    b_lin = 0.05 * jax.random.normal(k2, (L,), jnp.float32)
    return {"convs": convs, "linear": (w_lin, b_lin)}


def decoder_reference(params, image_nchw):
    """Pure-JAX (f32) reference for correctness checking."""
    x = jnp.transpose(image_nchw, (0, 2, 3, 1))
    for (w, s, b) in params["convs"]:
        y = jax.lax.conv_general_dilated(
            x, w, window_strides=(1, 1), padding="SAME",
            dimension_numbers=("NHWC", "HWIO", "NHWC"))
        x = jnp.maximum(y * s + b, 0.0)
    pooled = jnp.mean(x, axis=(1, 2))
    w_lin, b_lin = params["linear"]                     # (out, in)
    return pooled @ w_lin.T + b_lin


# --------------------------------- main ----------------------------------------

if __name__ == "__main__":
    key = jax.random.PRNGKey(0)
    kx, kp = jax.random.split(key)

    # small HiDDenConfiguration-style settings
    B, H, W = 2, 16, 16
    decoder_channels, decoder_blocks, message_length = 16, 3, 8

    image_with_wm = jax.random.normal(kx, (B, 3, H, W), jnp.float32)  # NCHW input
    # Round the input to bf16-representable values (the kernel stores it in bf16).
    image_with_wm = image_with_wm.astype(jnp.bfloat16).astype(jnp.float32)
    params = init_params(kp, decoder_channels, decoder_blocks, message_length)

    out = decoder_forward(params, image_with_wm)
    out = jax.block_until_ready(out)

    assert out.shape == (B, message_length), out.shape
    ref = decoder_reference(params, image_with_wm)
    # bf16 activation storage between layers => slightly looser tolerance.
    np.testing.assert_allclose(np.asarray(out), np.asarray(ref), rtol=3e-2, atol=3e-2)

    print("KERNEL_OK")
</pallas_src>

<mosaic_0001>
module attributes {stable_mosaic.version = 11 : i64} {
  func.func @_decoder_kernel(%arg0: i32, %arg1: memref<1x16x324xbf16, #tpu.memory_space<vmem>>, %arg2: memref<1x286xf32, #tpu.memory_space<vmem>>, %arg3: memref<9x16x16xbf16, #tpu.memory_space<vmem>>, %arg4: memref<16x1xf32, #tpu.memory_space<vmem>>, %arg5: memref<16x1xf32, #tpu.memory_space<vmem>>, %arg6: memref<9x16x16xbf16, #tpu.memory_space<vmem>>, %arg7: memref<16x1xf32, #tpu.memory_space<vmem>>, %arg8: memref<16x1xf32, #tpu.memory_space<vmem>>, %arg9: memref<9x16x16xbf16, #tpu.memory_space<vmem>>, %arg10: memref<16x1xf32, #tpu.memory_space<vmem>>, %arg11: memref<16x1xf32, #tpu.memory_space<vmem>>, %arg12: memref<9x8x16xbf16, #tpu.memory_space<vmem>>, %arg13: memref<8x1xf32, #tpu.memory_space<vmem>>, %arg14: memref<8x1xf32, #tpu.memory_space<vmem>>, %arg15: memref<8x8xf32, #tpu.memory_space<vmem>>, %arg16: memref<8x1xf32, #tpu.memory_space<vmem>>, %arg17: memref<1x8x1xf32, #tpu.memory_space<vmem>>, %arg18: memref<16x324xbf16, #tpu.memory_space<vmem>>) attributes {dimension_semantics = [#tpu.dimension_semantics<parallel>], iteration_bounds = array<i64: 2>, scalar_prefetch = 0 : i64, scratch_operands = 1 : i64, tpu.core_type = #tpu.core_type<tc>, window_params = [{transform_indices = @transform_0, window_bounds = array<i64: 1, 16, 324>}, {pipeline_mode = #tpu.pipeline_mode<synchronous>, transform_indices = @transform_1, window_bounds = array<i64: 1, 286>}, {pipeline_mode = #tpu.pipeline_mode<synchronous>, transform_indices = @transform_2, window_bounds = array<i64: 9, 16, 16>}, {pipeline_mode = #tpu.pipeline_mode<synchronous>, transform_indices = @transform_3, window_bounds = array<i64: 16, 1>}, {pipeline_mode = #tpu.pipeline_mode<synchronous>, transform_indices = @transform_4, window_bounds = array<i64: 16, 1>}, {pipeline_mode = #tpu.pipeline_mode<synchronous>, transform_indices = @transform_5, window_bounds = array<i64: 9, 16, 16>}, {pipeline_mode = #tpu.pipeline_mode<synchronous>, transform_indices = @transform_6, window_bounds = array<i64: 16, 1>}, {pipeline_mode = #tpu.pipeline_mode<synchronous>, transform_indices = @transform_7, window_bounds = array<i64: 16, 1>}, {pipeline_mode = #tpu.pipeline_mode<synchronous>, transform_indices = @transform_8, window_bounds = array<i64: 9, 16, 16>}, {pipeline_mode = #tpu.pipeline_mode<synchronous>, transform_indices = @transform_9, window_bounds = array<i64: 16, 1>}, {pipeline_mode = #tpu.pipeline_mode<synchronous>, transform_indices = @transform_10, window_bounds = array<i64: 16, 1>}, {pipeline_mode = #tpu.pipeline_mode<synchronous>, transform_indices = @transform_11, window_bounds = array<i64: 9, 8, 16>}, {pipeline_mode = #tpu.pipeline_mode<synchronous>, transform_indices = @transform_12, window_bounds = array<i64: 8, 1>}, {pipeline_mode = #tpu.pipeline_mode<synchronous>, transform_indices = @transform_13, window_bounds = array<i64: 8, 1>}, {pipeline_mode = #tpu.pipeline_mode<synchronous>, transform_indices = @transform_14, window_bounds = array<i64: 8, 8>}, {pipeline_mode = #tpu.pipeline_mode<synchronous>, transform_indices = @transform_15, window_bounds = array<i64: 8, 1>}, {transform_indices = @transform_16, window_bounds = array<i64: 1, 8, 1>}]} {
    %c0 = arith.constant 0 : index
    %c0_0 = arith.constant 0 : index
    %c0_1 = arith.constant 0 : index
    %0 = vector.load %arg1[%c0, %c0_0, %c0_1] : memref<1x16x324xbf16, #tpu.memory_space<vmem>>, vector<1x16x324xbf16>
    %1 = vector.shape_cast %0 : vector<1x16x324xbf16> to vector<16x324xbf16>
    %c0_2 = arith.constant 0 : index
    %c0_3 = arith.constant 0 : index
    %2 = vector.load %arg18[%c0_2, %c0_3] : memref<16x324xbf16, #tpu.memory_space<vmem>>, vector<16x324xbf16>
    tpu.vector_store %arg18[%c0_2, %c0_3], %1 {strides = array<i32>} : memref<16x324xbf16, #tpu.memory_space<vmem>>, vector<16x324xbf16>,
    %c0_4 = arith.constant 0 : index
    %c0_5 = arith.constant 0 : index
    %3 = vector.load %arg2[%c0_4, %c0_5] : memref<1x286xf32, #tpu.memory_space<vmem>>, vector<1x286xf32>
    %c0_6 = arith.constant 0 : index
    %c0_7 = arith.constant 0 : index
    %4 = vector.load %arg18[%c0_6, %c0_7] : memref<16x324xbf16, #tpu.memory_space<vmem>>, vector<16x286xbf16>
    %c0_8 = arith.constant 0 : index
    %c0_9 = arith.constant 0 : index
    %c0_10 = arith.constant 0 : index
    %5 = vector.load %arg3[%c0_8, %c0_9, %c0_10] : memref<9x16x16xbf16, #tpu.memory_space<vmem>>, vector<1x16x16xbf16>
    %6 = vector.shape_cast %5 : vector<1x16x16xbf16> to vector<16x16xbf16>
    %cst = arith.constant dense<0.000000e+00> : vector<16x286xf32>
    %7 = tpu.matmul %6, %4, %cst {dimension_numbers = #tpu.dot_dimension_numbers<[1], [0], [0], [1], [0, 0, 1, 1], [], []>} : vector<16x16xbf16>, vector<16x286xbf16>, vector<16x286xf32> -> vector<16x286xf32>
    %c0_11 = arith.constant 0 : index
    %c1 = arith.constant 1 : index
    %8 = vector.load %arg18[%c0_11, %c1] : memref<16x324xbf16, #tpu.memory_space<vmem>>, vector<16x286xbf16>
    %c1_12 = arith.constant 1 : index
    %c0_13 = arith.constant 0 : index
    %c0_14 = arith.constant 0 : index
    %9 = vector.load %arg3[%c1_12, %c0_13, %c0_14] : memref<9x16x16xbf16, #tpu.memory_space<vmem>>, vector<1x16x16xbf16>
    %10 = vector.shape_cast %9 : vector<1x16x16xbf16> to vector<16x16xbf16>
    %cst_15 = arith.constant dense<0.000000e+00> : vector<16x286xf32>
    %11 = tpu.matmul %10, %8, %cst_15 {dimension_numbers = #tpu.dot_dimension_numbers<[1], [0], [0], [1], [0, 0, 1, 1], [], []>} : vector<16x16xbf16>, vector<16x286xbf16>, vector<16x286xf32> -> vector<16x286xf32>
    %12 = arith.addf %7, %11 : vector<16x286xf32>
    %c0_16 = arith.constant 0 : index
    %c2 = arith.constant 2 : index
    %13 = vector.load %arg18[%c0_16, %c2] : memref<16x324xbf16, #tpu.memory_space<vmem>>, vector<16x286xbf16>
    %c2_17 = arith.constant 2 : index
    %c0_18 = arith.constant 0 : index
    %c0_19 = arith.constant 0 : index
    %14 = vector.load %arg3[%c2_17, %c0_18, %c0_19] : memref<9x16x16xbf16, #tpu.memory_space<vmem>>, vector<1x16x16xbf16>
    %15 = vector.shape_cast %14 : vector<1x16x16xbf16> to vector<16x16xbf16>
    %cst_20 = arith.constant dense<0.000000e+00> : vector<16x286xf32>
    %16 = tpu.matmul %15, %13, %cst_20 {dimension_numbers = #tpu.dot_dimension_numbers<[1], [0], [0], [1], [0, 0, 1, 1], [], []>} : vector<16x16xbf16>, vector<16x286xbf16>, vector<16x286xf32> -> vector<16x286xf32>
    %17 = arith.addf %12, %16 : vector<16x286xf32>
    %c0_21 = arith.constant 0 : index
    %c18 = arith.constant 18 : index
    %18 = vector.load %arg18[%c0_21, %c18] : memref<16x324xbf16, #tpu.memory_space<vmem>>, vector<16x286xbf16>
    %c3 = arith.constant 3 : index
    %c0_22 = arith.constant 0 : index
    %c0_23 = arith.constant 0 : index
    %19 = vector.load %arg3[%c3, %c0_22, %c0_23] : memref<9x16x16xbf16, #tpu.memory_space<vmem>>, vector<1x16x16xbf16>
    %20 = vector.shape_cast %19 : vector<1x16x16xbf16> to vector<16x16xbf16>
    %cst_24 = arith.constant dense<0.000000e+00> : vector<16x286xf32>
    %21 = tpu.matmul %20, %18, %cst_24 {dimension_numbers = #tpu.dot_dimension_numbers<[1], [0], [0], [1], [0, 0, 1, 1], [], []>} : vector<16x16xbf16>, vector<16x286xbf16>, vector<16x286xf32> -> vector<16x286xf32>
    %22 = arith.addf %17, %21 : vector<16x286xf32>
    %c0_25 = arith.constant 0 : index
    %c19 = arith.constant 19 : index
    %23 = vector.load %arg18[%c0_25, %c19] : memref<16x324xbf16, #tpu.memory_space<vmem>>, vector<16x286xbf16>
    %c4 = arith.constant 4 : index
    %c0_26 = arith.constant 0 : index
    %c0_27 = arith.constant 0 : index
    %24 = vector.load %arg3[%c4, %c0_26, %c0_27] : memref<9x16x16xbf16, #tpu.memory_space<vmem>>, vector<1x16x16xbf16>
    %25 = vector.shape_cast %24 : vector<1x16x16xbf16> to vector<16x16xbf16>
    %cst_28 = arith.constant dense<0.000000e+00> : vector<16x286xf32>
    %26 = tpu.matmul %25, %23, %cst_28 {dimension_numbers = #tpu.dot_dimension_numbers<[1], [0], [0], [1], [0, 0, 1, 1], [], []>} : vector<16x16xbf16>, vector<16x286xbf16>, vector<16x286xf32> -> vector<16x286xf32>
    %27 = arith.addf %22, %26 : vector<16x286xf32>
    %c0_29 = arith.constant 0 : index
    %c20 = arith.constant 20 : index
    %28 = vector.load %arg18[%c0_29, %c20] : memref<16x324xbf16, #tpu.memory_space<vmem>>, vector<16x286xbf16>
    %c5 = arith.constant 5 : index
    %c0_30 = arith.constant 0 : index
    %c0_31 = arith.constant 0 : index
    %29 = vector.load %arg3[%c5, %c0_30, %c0_31] : memref<9x16x16xbf16, #tpu.memory_space<vmem>>, vector<1x16x16xbf16>
    %30 = vector.shape_cast %29 : vector<1x16x16xbf16> to vector<16x16xbf16>
    %cst_32 = arith.constant dense<0.000000e+00> : vector<16x286xf32>
    %31 = tpu.matmul %30, %28, %cst_32 {dimension_numbers = #tpu.dot_dimension_numbers<[1], [0], [0], [1], [0, 0, 1, 1], [], []>} : vector<16x16xbf16>, vector<16x286xbf16>, vector<16x286xf32> -> vector<16x286xf32>
    %32 = arith.addf %27, %31 : vector<16x286xf32>
    %c0_33 = arith.constant 0 : index
    %c36 = arith.constant 36 : index
    %33 = vector.load %arg18[%c0_33, %c36] : memref<16x324xbf16, #tpu.memory_space<vmem>>, vector<16x286xbf16>
    %c6 = arith.constant 6 : index
    %c0_34 = arith.constant 0 : index
    %c0_35 = arith.constant 0 : index
    %34 = vector.load %arg3[%c6, %c0_34, %c0_35] : memref<9x16x16xbf16, #tpu.memory_space<vmem>>, vector<1x16x16xbf16>
    %35 = vector.shape_cast %34 : vector<1x16x16xbf16> to vector<16x16xbf16>
    %cst_36 = arith.constant dense<0.000000e+00> : vector<16x286xf32>
    %36 = tpu.matmul %35, %33, %cst_36 {dimension_numbers = #tpu.dot_dimension_numbers<[1], [0], [0], [1], [0, 0, 1, 1], [], []>} : vector<16x16xbf16>, vector<16x286xbf16>, vector<16x286xf32> -> vector<16x286xf32>
    %37 = arith.addf %32, %36 : vector<16x286xf32>
    %c0_37 = arith.constant 0 : index
    %c37 = arith.constant 37 : index
    %38 = vector.load %arg18[%c0_37, %c37] : memref<16x324xbf16, #tpu.memory_space<vmem>>, vector<16x286xbf16>
    %c7 = arith.constant 7 : index
    %c0_38 = arith.constant 0 : index
    %c0_39 = arith.constant 0 : index
    %39 = vector.load %arg3[%c7, %c0_38, %c0_39] : memref<9x16x16xbf16, #tpu.memory_space<vmem>>, vector<1x16x16xbf16>
    %40 = vector.shape_cast %39 : vector<1x16x16xbf16> to vector<16x16xbf16>
    %cst_40 = arith.constant dense<0.000000e+00> : vector<16x286xf32>
    %41 = tpu.matmul %40, %38, %cst_40 {dimension_numbers = #tpu.dot_dimension_numbers<[1], [0], [0], [1], [0, 0, 1, 1], [], []>} : vector<16x16xbf16>, vector<16x286xbf16>, vector<16x286xf32> -> vector<16x286xf32>
    %42 = arith.addf %37, %41 : vector<16x286xf32>
    %c0_41 = arith.constant 0 : index
    %c38 = arith.constant 38 : index
    %43 = vector.load %arg18[%c0_41, %c38] : memref<16x324xbf16, #tpu.memory_space<vmem>>, vector<16x286xbf16>
    %c8 = arith.constant 8 : index
    %c0_42 = arith.constant 0 : index
    %c0_43 = arith.constant 0 : index
    %44 = vector.load %arg3[%c8, %c0_42, %c0_43] : memref<9x16x16xbf16, #tpu.memory_space<vmem>>, vector<1x16x16xbf16>
    %45 = vector.shape_cast %44 : vector<1x16x16xbf16> to vector<16x16xbf16>
    %cst_44 = arith.constant dense<0.000000e+00> : vector<16x286xf32>
    %46 = tpu.matmul %45, %43, %cst_44 {dimension_numbers = #tpu.dot_dimension_numbers<[1], [0], [0], [1], [0, 0, 1, 1], [], []>} : vector<16x16xbf16>, vector<16x286xbf16>, vector<16x286xf32> -> vector<16x286xf32>
    %47 = arith.addf %42, %46 : vector<16x286xf32>
    %c0_45 = arith.constant 0 : index
    %c0_46 = arith.constant 0 : index
    %48 = vector.load %arg4[%c0_45, %c0_46] : memref<16x1xf32, #tpu.memory_space<vmem>>, vector<16x1xf32>
    %49 = vector.broadcast %48 : vector<16x1xf32> to vector<16x286xf32>
    %50 = arith.mulf %47, %49 : vector<16x286xf32>
    %c0_47 = arith.constant 0 : index
    %c0_48 = arith.constant 0 : index
    %51 = vector.load %arg5[%c0_47, %c0_48] : memref<16x1xf32, #tpu.memory_space<vmem>>, vector<16x1xf32>
    %52 = vector.broadcast %51 : vector<16x1xf32> to vector<16x286xf32>
    %53 = arith.addf %50, %52 : vector<16x286xf32>
    %cst_49 = arith.constant 0.000000e+00 : f32
    %54 = vector.broadcast %cst_49 : f32 to vector<16x286xf32>
    %55 = arith.maximumf %53, %54 : vector<16x286xf32>
    %56 = vector.broadcast %3 : vector<1x286xf32> to vector<16x286xf32>
    %57 = arith.mulf %55, %56 : vector<16x286xf32>
    %58 = arith.truncf %57 : vector<16x286xf32> to vector<16x286xbf16>
    %c0_50 = arith.constant 0 : index
    %c19_51 = arith.constant 19 : index
    %59 = vector.load %arg18[%c0_50, %c19_51] : memref<16x324xbf16, #tpu.memory_space<vmem>>, vector<16x286xbf16>
    tpu.vector_store %arg18[%c0_50, %c19_51], %58 {strides = array<i32>} : memref<16x324xbf16, #tpu.memory_space<vmem>>, vector<16x286xbf16>,
    %c0_52 = arith.constant 0 : index
    %c0_53 = arith.constant 0 : index
    %60 = vector.load %arg18[%c0_52, %c0_53] : memref<16x324xbf16, #tpu.memory_space<vmem>>, vector<16x286xbf16>
    %c0_54 = arith.constant 0 : index
    %c0_55 = arith.constant 0 : index
    %c0_56 = arith.constant 0 : index
    %61 = vector.load %arg6[%c0_54, %c0_55, %c0_56] : memref<9x16x16xbf16, #tpu.memory_space<vmem>>, vector<1x16x16xbf16>
    %62 = vector.shape_cast %61 : vector<1x16x16xbf16> to vector<16x16xbf16>
    %cst_57 = arith.constant dense<0.000000e+00> : vector<16x286xf32>
    %63 = tpu.matmul %62, %60, %cst_57 {dimension_numbers = #tpu.dot_dimension_numbers<[1], [0], [0], [1], [0, 0, 1, 1], [], []>} : vector<16x16xbf16>, vector<16x286xbf16>, vector<16x286xf32> -> vector<16x286xf32>
    %c0_58 = arith.constant 0 : index
    %c1_59 = arith.constant 1 : index
    %64 = vector.load %arg18[%c0_58, %c1_59] : memref<16x324xbf16, #tpu.memory_space<vmem>>, vector<16x286xbf16>
    %c1_60 = arith.constant 1 : index
    %c0_61 = arith.constant 0 : index
    %c0_62 = arith.constant 0 : index
    %65 = vector.load %arg6[%c1_60, %c0_61, %c0_62] : memref<9x16x16xbf16, #tpu.memory_space<vmem>>, vector<1x16x16xbf16>
    %66 = vector.shape_cast %65 : vector<1x16x16xbf16> to vector<16x16xbf16>
    %cst_63 = arith.constant dense<0.000000e+00> : vector<16x286xf32>
    %67 = tpu.matmul %66, %64, %cst_63 {dimension_numbers = #tpu.dot_dimension_numbers<[1], [0], [0], [1], [0, 0, 1, 1], [], []>} : vector<16x16xbf16>, vector<16x286xbf16>, vector<16x286xf32> -> vector<16x286xf32>
    %68 = arith.addf %63, %67 : vector<16x286xf32>
    %c0_64 = arith.constant 0 : index
    %c2_65 = arith.constant 2 : index
    %69 = vector.load %arg18[%c0_64, %c2_65] : memref<16x324xbf16, #tpu.memory_space<vmem>>, vector<16x286xbf16>
    %c2_66 = arith.constant 2 : index
    %c0_67 = arith.constant 0 : index
    %c0_68 = arith.constant 0 : index
    %70 = vector.load %arg6[%c2_66, %c0_67, %c0_68] : memref<9x16x16xbf16, #tpu.memory_space<vmem>>, vector<1x16x16xbf16>
    %71 = vector.shape_cast %70 : vector<1x16x16xbf16> to vector<16x16xbf16>
    %cst_69 = arith.constant dense<0.000000e+00> : vector<16x286xf32>
    %72 = tpu.matmul %71, %69, %cst_69 {dimension_numbers = #tpu.dot_dimension_numbers<[1], [0], [0], [1], [0, 0, 1, 1], [], []>} : vector<16x16xbf16>, vector<16x286xbf16>, vector<16x286xf32> -> vector<16x286xf32>
    %73 = arith.addf %68, %72 : vector<16x286xf32>
    %c0_70 = arith.constant 0 : index
    %c18_71 = arith.constant 18 : index
    %74 = vector.load %arg18[%c0_70, %c18_71] : memref<16x324xbf16, #tpu.memory_space<vmem>>, vector<16x286xbf16>
    %c3_72 = arith.constant 3 : index
    %c0_73 = arith.constant 0 : index
    %c0_74 = arith.constant 0 : index
    %75 = vector.load %arg6[%c3_72, %c0_73, %c0_74] : memref<9x16x16xbf16, #tpu.memory_space<vmem>>, vector<1x16x16xbf16>
    %76 = vector.shape_cast %75 : vector<1x16x16xbf16> to vector<16x16xbf16>
    %cst_75 = arith.constant dense<0.000000e+00> : vector<16x286xf32>
    %77 = tpu.matmul %76, %74, %cst_75 {dimension_numbers = #tpu.dot_dimension_numbers<[1], [0], [0], [1], [0, 0, 1, 1], [], []>} : vector<16x16xbf16>, vector<16x286xbf16>, vector<16x286xf32> -> vector<16x286xf32>
    %78 = arith.addf %73, %77 : vector<16x286xf32>
    %c0_76 = arith.constant 0 : index
    %c19_77 = arith.constant 19 : index
    %79 = vector.load %arg18[%c0_76, %c19_77] : memref<16x324xbf16, #tpu.memory_space<vmem>>, vector<16x286xbf16>
    %c4_78 = arith.constant 4 : index
    %c0_79 = arith.constant 0 : index
    %c0_80 = arith.constant 0 : index
    %80 = vector.load %arg6[%c4_78, %c0_79, %c0_80] : memref<9x16x16xbf16, #tpu.memory_space<vmem>>, vector<1x16x16xbf16>
    %81 = vector.shape_cast %80 : vector<1x16x16xbf16> to vector<16x16xbf16>
    %cst_81 = arith.constant dense<0.000000e+00> : vector<16x286xf32>
    %82 = tpu.matmul %81, %79, %cst_81 {dimension_numbers = #tpu.dot_dimension_numbers<[1], [0], [0], [1], [0, 0, 1, 1], [], []>} : vector<16x16xbf16>, vector<16x286xbf16>, vector<16x286xf32> -> vector<16x286xf32>
    %83 = arith.addf %78, %82 : vector<16x286xf32>
    %c0_82 = arith.constant 0 : index
    %c20_83 = arith.constant 20 : index
    %84 = vector.load %arg18[%c0_82, %c20_83] : memref<16x324xbf16, #tpu.memory_space<vmem>>, vector<16x286xbf16>
    %c5_84 = arith.constant 5 : index
    %c0_85 = arith.constant 0 : index
    %c0_86 = arith.constant 0 : index
    %85 = vector.load %arg6[%c5_84, %c0_85, %c0_86] : memref<9x16x16xbf16, #tpu.memory_space<vmem>>, vector<1x16x16xbf16>
    %86 = vector.shape_cast %85 : vector<1x16x16xbf16> to vector<16x16xbf16>
    %cst_87 = arith.constant dense<0.000000e+00> : vector<16x286xf32>
    %87 = tpu.matmul %86, %84, %cst_87 {dimension_numbers = #tpu.dot_dimension_numbers<[1], [0], [0], [1], [0, 0, 1, 1], [], []>} : vector<16x16xbf16>, vector<16x286xbf16>, vector<16x286xf32> -> vector<16x286xf32>
    %88 = arith.addf %83, %87 : vector<16x286xf32>
    %c0_88 = arith.constant 0 : index
    %c36_89 = arith.constant 36 : index
    %89 = vector.load %arg18[%c0_88, %c36_89] : memref<16x324xbf16, #tpu.memory_space<vmem>>, vector<16x286xbf16>
    %c6_90 = arith.constant 6 : index
    %c0_91 = arith.constant 0 : index
    %c0_92 = arith.constant 0 : index
    %90 = vector.load %arg6[%c6_90, %c0_91, %c0_92] : memref<9x16x16xbf16, #tpu.memory_space<vmem>>, vector<1x16x16xbf16>
    %91 = vector.shape_cast %90 : vector<1x16x16xbf16> to vector<16x16xbf16>
    %cst_93 = arith.constant dense<0.000000e+00> : vector<16x286xf32>
    %92 = tpu.matmul %91, %89, %cst_93 {dimension_numbers = #tpu.dot_dimension_numbers<[1], [0], [0], [1], [0, 0, 1, 1], [], []>} : vector<16x16xbf16>, vector<16x286xbf16>, vector<16x286xf32> -> vector<16x286xf32>
    %93 = arith.addf %88, %92 : vector<16x286xf32>
    %c0_94 = arith.constant 0 : index
    %c37_95 = arith.constant 37 : index
    %94 = vector.load %arg18[%c0_94, %c37_95] : memref<16x324xbf16, #tpu.memory_space<vmem>>, vector<16x286xbf16>
    %c7_96 = arith.constant 7 : index
    %c0_97 = arith.constant 0 : index
    %c0_98 = arith.constant 0 : index
    %95 = vector.load %arg6[%c7_96, %c0_97, %c0_98] : memref<9x16x16xbf16, #tpu.memory_space<vmem>>, vector<1x16x16xbf16>
    %96 = vector.shape_cast %95 : vector<1x16x16xbf16> to vector<16x16xbf16>
    %cst_99 = arith.constant dense<0.000000e+00> : vector<16x286xf32>
    %97 = tpu.matmul %96, %94, %cst_99 {dimension_numbers = #tpu.dot_dimension_numbers<[1], [0], [0], [1], [0, 0, 1, 1], [], []>} : vector<16x16xbf16>, vector<16x286xbf16>, vector<16x286xf32> -> vector<16x286xf32>
    %98 = arith.addf %93, %97 : vector<16x286xf32>
    %c0_100 = arith.constant 0 : index
    %c38_101 = arith.constant 38 : index
    %99 = vector.load %arg18[%c0_100, %c38_101] : memref<16x324xbf16, #tpu.memory_space<vmem>>, vector<16x286xbf16>
    %c8_102 = arith.constant 8 : index
    %c0_103 = arith.constant 0 : index
    %c0_104 = arith.constant 0 : index
    %100 = vector.load %arg6[%c8_102, %c0_103, %c0_104] : memref<9x16x16xbf16, #tpu.memory_space<vmem>>, vector<1x16x16xbf16>
    %101 = vector.shape_cast %100 : vector<1x16x16xbf16> to vector<16x16xbf16>
    %cst_105 = arith.constant dense<0.000000e+00> : vector<16x286xf32>
    %102 = tpu.matmul %101, %99, %cst_105 {dimension_numbers = #tpu.dot_dimension_numbers<[1], [0], [0], [1], [0, 0, 1, 1], [], []>} : vector<16x16xbf16>, vector<16x286xbf16>, vector<16x286xf32> -> vector<16x286xf32>
    %103 = arith.addf %98, %102 : vector<16x286xf32>
    %c0_106 = arith.constant 0 : index
    %c0_107 = arith.constant 0 : index
    %104 = vector.load %arg7[%c0_106, %c0_107] : memref<16x1xf32, #tpu.memory_space<vmem>>, vector<16x1xf32>
    %105 = vector.broadcast %104 : vector<16x1xf32> to vector<16x286xf32>
    %106 = arith.mulf %103, %105 : vector<16x286xf32>
    %c0_108 = arith.constant 0 : index
    %c0_109 = arith.constant 0 : index
    %107 = vector.load %arg8[%c0_108, %c0_109] : memref<16x1xf32, #tpu.memory_space<vmem>>, vector<16x1xf32>
    %108 = vector.broadcast %107 : vector<16x1xf32> to vector<16x286xf32>
    %109 = arith.addf %106, %108 : vector<16x286xf32>
    %cst_110 = arith.constant 0.000000e+00 : f32
    %110 = vector.broadcast %cst_110 : f32 to vector<16x286xf32>
    %111 = arith.maximumf %109, %110 : vector<16x286xf32>
    %112 = vector.broadcast %3 : vector<1x286xf32> to vector<16x286xf32>
    %113 = arith.mulf %111, %112 : vector<16x286xf32>
    %114 = arith.truncf %113 : vector<16x286xf32> to vector<16x286xbf16>
    %c0_111 = arith.constant 0 : index
    %c19_112 = arith.constant 19 : index
    %115 = vector.load %arg18[%c0_111, %c19_112] : memref<16x324xbf16, #tpu.memory_space<vmem>>, vector<16x286xbf16>
    tpu.vector_store %arg18[%c0_111, %c19_112], %114 {strides = array<i32>} : memref<16x324xbf16, #tpu.memory_space<vmem>>, vector<16x286xbf16>,
    %c0_113 = arith.constant 0 : index
    %c0_114 = arith.constant 0 : index
    %116 = vector.load %arg18[%c0_113, %c0_114] : memref<16x324xbf16, #tpu.memory_space<vmem>>, vector<16x286xbf16>
    %c0_115 = arith.constant 0 : index
    %c0_116 = arith.constant 0 : index
    %c0_117 = arith.constant 0 : index
    %117 = vector.load %arg9[%c0_115, %c0_116, %c0_117] : memref<9x16x16xbf16, #tpu.memory_space<vmem>>, vector<1x16x16xbf16>
    %118 = vector.shape_cast %117 : vector<1x16x16xbf16> to vector<16x16xbf16>
    %cst_118 = arith.constant dense<0.000000e+00> : vector<16x286xf32>
    %119 = tpu.matmul %118, %116, %cst_118 {dimension_numbers = #tpu.dot_dimension_numbers<[1], [0], [0], [1], [0, 0, 1, 1], [], []>} : vector<16x16xbf16>, vector<16x286xbf16>, vector<16x286xf32> -> vector<16x286xf32>
    %c0_119 = arith.constant 0 : index
    %c1_120 = arith.constant 1 : index
    %120 = vector.load %arg18[%c0_119, %c1_120] : memref<16x324xbf16, #tpu.memory_space<vmem>>, vector<16x286xbf16>
    %c1_121 = arith.constant 1 : index
    %c0_122 = arith.constant 0 : index
    %c0_123 = arith.constant 0 : index
    %121 = vector.load %arg9[%c1_121, %c0_122, %c0_123] : memref<9x16x16xbf16, #tpu.memory_space<vmem>>, vector<1x16x16xbf16>
    %122 = vector.shape_cast %121 : vector<1x16x16xbf16> to vector<16x16xbf16>
    %cst_124 = arith.constant dense<0.000000e+00> : vector<16x286xf32>
    %123 = tpu.matmul %122, %120, %cst_124 {dimension_numbers = #tpu.dot_dimension_numbers<[1], [0], [0], [1], [0, 0, 1, 1], [], []>} : vector<16x16xbf16>, vector<16x286xbf16>, vector<16x286xf32> -> vector<16x286xf32>
    %124 = arith.addf %119, %123 : vector<16x286xf32>
    %c0_125 = arith.constant 0 : index
    %c2_126 = arith.constant 2 : index
    %125 = vector.load %arg18[%c0_125, %c2_126] : memref<16x324xbf16, #tpu.memory_space<vmem>>, vector<16x286xbf16>
    %c2_127 = arith.constant 2 : index
    %c0_128 = arith.constant 0 : index
    %c0_129 = arith.constant 0 : index
    %126 = vector.load %arg9[%c2_127, %c0_128, %c0_129] : memref<9x16x16xbf16, #tpu.memory_space<vmem>>, vector<1x16x16xbf16>
    %127 = vector.shape_cast %126 : vector<1x16x16xbf16> to vector<16x16xbf16>
    %cst_130 = arith.constant dense<0.000000e+00> : vector<16x286xf32>
    %128 = tpu.matmul %127, %125, %cst_130 {dimension_numbers = #tpu.dot_dimension_numbers<[1], [0], [0], [1], [0, 0, 1, 1], [], []>} : vector<16x16xbf16>, vector<16x286xbf16>, vector<16x286xf32> -> vector<16x286xf32>
    %129 = arith.addf %124, %128 : vector<16x286xf32>
    %c0_131 = arith.constant 0 : index
    %c18_132 = arith.constant 18 : index
    %130 = vector.load %arg18[%c0_131, %c18_132] : memref<16x324xbf16, #tpu.memory_space<vmem>>, vector<16x286xbf16>
    %c3_133 = arith.constant 3 : index
    %c0_134 = arith.constant 0 : index
    %c0_135 = arith.constant 0 : index
    %131 = vector.load %arg9[%c3_133, %c0_134, %c0_135] : memref<9x16x16xbf16, #tpu.memory_space<vmem>>, vector<1x16x16xbf16>
    %132 = vector.shape_cast %131 : vector<1x16x16xbf16> to vector<16x16xbf16>
    %cst_136 = arith.constant dense<0.000000e+00> : vector<16x286xf32>
    %133 = tpu.matmul %132, %130, %cst_136 {dimension_numbers = #tpu.dot_dimension_numbers<[1], [0], [0], [1], [0, 0, 1, 1], [], []>} : vector<16x16xbf16>, vector<16x286xbf16>, vector<16x286xf32> -> vector<16x286xf32>
    %134 = arith.addf %129, %133 : vector<16x286xf32>
    %c0_137 = arith.constant 0 : index
    %c19_138 = arith.constant 19 : index
    %135 = vector.load %arg18[%c0_137, %c19_138] : memref<16x324xbf16, #tpu.memory_space<vmem>>, vector<16x286xbf16>
    %c4_139 = arith.constant 4 : index
    %c0_140 = arith.constant 0 : index
    %c0_141 = arith.constant 0 : index
    %136 = vector.load %arg9[%c4_139, %c0_140, %c0_141] : memref<9x16x16xbf16, #tpu.memory_space<vmem>>, vector<1x16x16xbf16>
    %137 = vector.shape_cast %136 : vector<1x16x16xbf16> to vector<16x16xbf16>
    %cst_142 = arith.constant dense<0.000000e+00> : vector<16x286xf32>
    %138 = tpu.matmul %137, %135, %cst_142 {dimension_numbers = #tpu.dot_dimension_numbers<[1], [0], [0], [1], [0, 0, 1, 1], [], []>} : vector<16x16xbf16>, vector<16x286xbf16>, vector<16x286xf32> -> vector<16x286xf32>
    %139 = arith.addf %134, %138 : vector<16x286xf32>
    %c0_143 = arith.constant 0 : index
    %c20_144 = arith.constant 20 : index
    %140 = vector.load %arg18[%c0_143, %c20_144] : memref<16x324xbf16, #tpu.memory_space<vmem>>, vector<16x286xbf16>
    %c5_145 = arith.constant 5 : index
    %c0_146 = arith.constant 0 : index
    %c0_147 = arith.constant 0 : index
    %141 = vector.load %arg9[%c5_145, %c0_146, %c0_147] : memref<9x16x16xbf16, #tpu.memory_space<vmem>>, vector<1x16x16xbf16>
    %142 = vector.shape_cast %141 : vector<1x16x16xbf16> to vector<16x16xbf16>
    %cst_148 = arith.constant dense<0.000000e+00> : vector<16x286xf32>
    %143 = tpu.matmul %142, %140, %cst_148 {dimension_numbers = #tpu.dot_dimension_numbers<[1], [0], [0], [1], [0, 0, 1, 1], [], []>} : vector<16x16xbf16>, vector<16x286xbf16>, vector<16x286xf32> -> vector<16x286xf32>
    %144 = arith.addf %139, %143 : vector<16x286xf32>
    %c0_149 = arith.constant 0 : index
    %c36_150 = arith.constant 36 : index
    %145 = vector.load %arg18[%c0_149, %c36_150] : memref<16x324xbf16, #tpu.memory_space<vmem>>, vector<16x286xbf16>
    %c6_151 = arith.constant 6 : index
    %c0_152 = arith.constant 0 : index
    %c0_153 = arith.constant 0 : index
    %146 = vector.load %arg9[%c6_151, %c0_152, %c0_153] : memref<9x16x16xbf16, #tpu.memory_space<vmem>>, vector<1x16x16xbf16>
    %147 = vector.shape_cast %146 : vector<1x16x16xbf16> to vector<16x16xbf16>
    %cst_154 = arith.constant dense<0.000000e+00> : vector<16x286xf32>
    %148 = tpu.matmul %147, %145, %cst_154 {dimension_numbers = #tpu.dot_dimension_numbers<[1], [0], [0], [1], [0, 0, 1, 1], [], []>} : vector<16x16xbf16>, vector<16x286xbf16>, vector<16x286xf32> -> vector<16x286xf32>
    %149 = arith.addf %144, %148 : vector<16x286xf32>
    %c0_155 = arith.constant 0 : index
    %c37_156 = arith.constant 37 : index
    %150 = vector.load %arg18[%c0_155, %c37_156] : memref<16x324xbf16, #tpu.memory_space<vmem>>, vector<16x286xbf16>
    %c7_157 = arith.constant 7 : index
    %c0_158 = arith.constant 0 : index
    %c0_159 = arith.constant 0 : index
    %151 = vector.load %arg9[%c7_157, %c0_158, %c0_159] : memref<9x16x16xbf16, #tpu.memory_space<vmem>>, vector<1x16x16xbf16>
    %152 = vector.shape_cast %151 : vector<1x16x16xbf16> to vector<16x16xbf16>
    %cst_160 = arith.constant dense<0.000000e+00> : vector<16x286xf32>
    %153 = tpu.matmul %152, %150, %cst_160 {dimension_numbers = #tpu.dot_dimension_numbers<[1], [0], [0], [1], [0, 0, 1, 1], [], []>} : vector<16x16xbf16>, vector<16x286xbf16>, vector<16x286xf32> -> vector<16x286xf32>
    %154 = arith.addf %149, %153 : vector<16x286xf32>
    %c0_161 = arith.constant 0 : index
    %c38_162 = arith.constant 38 : index
    %155 = vector.load %arg18[%c0_161, %c38_162] : memref<16x324xbf16, #tpu.memory_space<vmem>>, vector<16x286xbf16>
    %c8_163 = arith.constant 8 : index
    %c0_164 = arith.constant 0 : index
    %c0_165 = arith.constant 0 : index
    %156 = vector.load %arg9[%c8_163, %c0_164, %c0_165] : memref<9x16x16xbf16, #tpu.memory_space<vmem>>, vector<1x16x16xbf16>
    %157 = vector.shape_cast %156 : vector<1x16x16xbf16> to vector<16x16xbf16>
    %cst_166 = arith.constant dense<0.000000e+00> : vector<16x286xf32>
    %158 = tpu.matmul %157, %155, %cst_166 {dimension_numbers = #tpu.dot_dimension_numbers<[1], [0], [0], [1], [0, 0, 1, 1], [], []>} : vector<16x16xbf16>, vector<16x286xbf16>, vector<16x286xf32> -> vector<16x286xf32>
    %159 = arith.addf %154, %158 : vector<16x286xf32>
    %c0_167 = arith.constant 0 : index
    %c0_168 = arith.constant 0 : index
    %160 = vector.load %arg10[%c0_167, %c0_168] : memref<16x1xf32, #tpu.memory_space<vmem>>, vector<16x1xf32>
    %161 = vector.broadcast %160 : vector<16x1xf32> to vector<16x286xf32>
    %162 = arith.mulf %159, %161 : vector<16x286xf32>
    %c0_169 = arith.constant 0 : index
    %c0_170 = arith.constant 0 : index
    %163 = vector.load %arg11[%c0_169, %c0_170] : memref<16x1xf32, #tpu.memory_space<vmem>>, vector<16x1xf32>
    %164 = vector.broadcast %163 : vector<16x1xf32> to vector<16x286xf32>
    %165 = arith.addf %162, %164 : vector<16x286xf32>
    %cst_171 = arith.constant 0.000000e+00 : f32
    %166 = vector.broadcast %cst_171 : f32 to vector<16x286xf32>
    %167 = arith.maximumf %165, %166 : vector<16x286xf32>
    %168 = vector.broadcast %3 : vector<1x286xf32> to vector<16x286xf32>
    %169 = arith.mulf %167, %168 : vector<16x286xf32>
    %170 = arith.truncf %169 : vector<16x286xf32> to vector<16x286xbf16>
    %c0_172 = arith.constant 0 : index
    %c19_173 = arith.constant 19 : index
    %171 = vector.load %arg18[%c0_172, %c19_173] : memref<16x324xbf16, #tpu.memory_space<vmem>>, vector<16x286xbf16>
    tpu.vector_store %arg18[%c0_172, %c19_173], %170 {strides = array<i32>} : memref<16x324xbf16, #tpu.memory_space<vmem>>, vector<16x286xbf16>,
    %c0_174 = arith.constant 0 : index
    %c0_175 = arith.constant 0 : index
    %172 = vector.load %arg18[%c0_174, %c0_175] : memref<16x324xbf16, #tpu.memory_space<vmem>>, vector<16x286xbf16>
    %c0_176 = arith.constant 0 : index
    %c0_177 = arith.constant 0 : index
    %c0_178 = arith.constant 0 : index
    %173 = vector.load %arg12[%c0_176, %c0_177, %c0_178] : memref<9x8x16xbf16, #tpu.memory_space<vmem>>, vector<1x8x16xbf16>
    %174 = vector.shape_cast %173 : vector<1x8x16xbf16> to vector<8x16xbf16>
    %cst_179 = arith.constant dense<0.000000e+00> : vector<8x286xf32>
    %175 = tpu.matmul %174, %172, %cst_179 {dimension_numbers = #tpu.dot_dimension_numbers<[1], [0], [0], [1], [0, 0, 1, 1], [], []>} : vector<8x16xbf16>, vector<16x286xbf16>, vector<8x286xf32> -> vector<8x286xf32>
    %c0_180 = arith.constant 0 : index
    %c1_181 = arith.constant 1 : index
    %176 = vector.load %arg18[%c0_180, %c1_181] : memref<16x324xbf16, #tpu.memory_space<vmem>>, vector<16x286xbf16>
    %c1_182 = arith.constant 1 : index
    %c0_183 = arith.constant 0 : index
    %c0_184 = arith.constant 0 : index
    %177 = vector.load %arg12[%c1_182, %c0_183, %c0_184] : memref<9x8x16xbf16, #tpu.memory_space<vmem>>, vector<1x8x16xbf16>
    %178 = vector.shape_cast %177 : vector<1x8x16xbf16> to vector<8x16xbf16>
    %cst_185 = arith.constant dense<0.000000e+00> : vector<8x286xf32>
    %179 = tpu.matmul %178, %176, %cst_185 {dimension_numbers = #tpu.dot_dimension_numbers<[1], [0], [0], [1], [0, 0, 1, 1], [], []>} : vector<8x16xbf16>, vector<16x286xbf16>, vector<8x286xf32> -> vector<8x286xf32>
    %180 = arith.addf %175, %179 : vector<8x286xf32>
    %c0_186 = arith.constant 0 : index
    %c2_187 = arith.constant 2 : index
    %181 = vector.load %arg18[%c0_186, %c2_187] : memref<16x324xbf16, #tpu.memory_space<vmem>>, vector<16x286xbf16>
    %c2_188 = arith.constant 2 : index
    %c0_189 = arith.constant 0 : index
    %c0_190 = arith.constant 0 : index
    %182 = vector.load %arg12[%c2_188, %c0_189, %c0_190] : memref<9x8x16xbf16, #tpu.memory_space<vmem>>, vector<1x8x16xbf16>
    %183 = vector.shape_cast %182 : vector<1x8x16xbf16> to vector<8x16xbf16>
    %cst_191 = arith.constant dense<0.000000e+00> : vector<8x286xf32>
    %184 = tpu.matmul %183, %181, %cst_191 {dimension_numbers = #tpu.dot_dimension_numbers<[1], [0], [0], [1], [0, 0, 1, 1], [], []>} : vector<8x16xbf16>, vector<16x286xbf16>, vector<8x286xf32> -> vector<8x286xf32>
    %185 = arith.addf %180, %184 : vector<8x286xf32>
    %c0_192 = arith.constant 0 : index
    %c18_193 = arith.constant 18 : index
    %186 = vector.load %arg18[%c0_192, %c18_193] : memref<16x324xbf16, #tpu.memory_space<vmem>>, vector<16x286xbf16>
    %c3_194 = arith.constant 3 : index
    %c0_195 = arith.constant 0 : index
    %c0_196 = arith.constant 0 : index
    %187 = vector.load %arg12[%c3_194, %c0_195, %c0_196] : memref<9x8x16xbf16, #tpu.memory_space<vmem>>, vector<1x8x16xbf16>
    %188 = vector.shape_cast %187 : vector<1x8x16xbf16> to vector<8x16xbf16>
    %cst_197 = arith.constant dense<0.000000e+00> : vector<8x286xf32>
    %189 = tpu.matmul %188, %186, %cst_197 {dimension_numbers = #tpu.dot_dimension_numbers<[1], [0], [0], [1], [0, 0, 1, 1], [], []>} : vector<8x16xbf16>, vector<16x286xbf16>, vector<8x286xf32> -> vector<8x286xf32>
    %190 = arith.addf %185, %189 : vector<8x286xf32>
    %c0_198 = arith.constant 0 : index
    %c19_199 = arith.constant 19 : index
    %191 = vector.load %arg18[%c0_198, %c19_199] : memref<16x324xbf16, #tpu.memory_space<vmem>>, vector<16x286xbf16>
    %c4_200 = arith.constant 4 : index
    %c0_201 = arith.constant 0 : index
    %c0_202 = arith.constant 0 : index
    %192 = vector.load %arg12[%c4_200, %c0_201, %c0_202] : memref<9x8x16xbf16, #tpu.memory_space<vmem>>, vector<1x8x16xbf16>
    %193 = vector.shape_cast %192 : vector<1x8x16xbf16> to vector<8x16xbf16>
    %cst_203 = arith.constant dense<0.000000e+00> : vector<8x286xf32>
    %194 = tpu.matmul %193, %191, %cst_203 {dimension_numbers = #tpu.dot_dimension_numbers<[1], [0], [0], [1], [0, 0, 1, 1], [], []>} : vector<8x16xbf16>, vector<16x286xbf16>, vector<8x286xf32> -> vector<8x286xf32>
    %195 = arith.addf %190, %194 : vector<8x286xf32>
    %c0_204 = arith.constant 0 : index
    %c20_205 = arith.constant 20 : index
    %196 = vector.load %arg18[%c0_204, %c20_205] : memref<16x324xbf16, #tpu.memory_space<vmem>>, vector<16x286xbf16>
    %c5_206 = arith.constant 5 : index
    %c0_207 = arith.constant 0 : index
    %c0_208 = arith.constant 0 : index
    %197 = vector.load %arg12[%c5_206, %c0_207, %c0_208] : memref<9x8x16xbf16, #tpu.memory_space<vmem>>, vector<1x8x16xbf16>
    %198 = vector.shape_cast %197 : vector<1x8x16xbf16> to vector<8x16xbf16>
    %cst_209 = arith.constant dense<0.000000e+00> : vector<8x286xf32>
    %199 = tpu.matmul %198, %196, %cst_209 {dimension_numbers = #tpu.dot_dimension_numbers<[1], [0], [0], [1], [0, 0, 1, 1], [], []>} : vector<8x16xbf16>, vector<16x286xbf16>, vector<8x286xf32> -> vector<8x286xf32>
    %200 = arith.addf %195, %199 : vector<8x286xf32>
    %c0_210 = arith.constant 0 : index
    %c36_211 = arith.constant 36 : index
    %201 = vector.load %arg18[%c0_210, %c36_211] : memref<16x324xbf16, #tpu.memory_space<vmem>>, vector<16x286xbf16>
    %c6_212 = arith.constant 6 : index
    %c0_213 = arith.constant 0 : index
    %c0_214 = arith.constant 0 : index
    %202 = vector.load %arg12[%c6_212, %c0_213, %c0_214] : memref<9x8x16xbf16, #tpu.memory_space<vmem>>, vector<1x8x16xbf16>
    %203 = vector.shape_cast %202 : vector<1x8x16xbf16> to vector<8x16xbf16>
    %cst_215 = arith.constant dense<0.000000e+00> : vector<8x286xf32>
    %204 = tpu.matmul %203, %201, %cst_215 {dimension_numbers = #tpu.dot_dimension_numbers<[1], [0], [0], [1], [0, 0, 1, 1], [], []>} : vector<8x16xbf16>, vector<16x286xbf16>, vector<8x286xf32> -> vector<8x286xf32>
    %205 = arith.addf %200, %204 : vector<8x286xf32>
    %c0_216 = arith.constant 0 : index
    %c37_217 = arith.constant 37 : index
    %206 = vector.load %arg18[%c0_216, %c37_217] : memref<16x324xbf16, #tpu.memory_space<vmem>>, vector<16x286xbf16>
    %c7_218 = arith.constant 7 : index
    %c0_219 = arith.constant 0 : index
    %c0_220 = arith.constant 0 : index
    %207 = vector.load %arg12[%c7_218, %c0_219, %c0_220] : memref<9x8x16xbf16, #tpu.memory_space<vmem>>, vector<1x8x16xbf16>
    %208 = vector.shape_cast %207 : vector<1x8x16xbf16> to vector<8x16xbf16>
    %cst_221 = arith.constant dense<0.000000e+00> : vector<8x286xf32>
    %209 = tpu.matmul %208, %206, %cst_221 {dimension_numbers = #tpu.dot_dimension_numbers<[1], [0], [0], [1], [0, 0, 1, 1], [], []>} : vector<8x16xbf16>, vector<16x286xbf16>, vector<8x286xf32> -> vector<8x286xf32>
    %210 = arith.addf %205, %209 : vector<8x286xf32>
    %c0_222 = arith.constant 0 : index
    %c38_223 = arith.constant 38 : index
    %211 = vector.load %arg18[%c0_222, %c38_223] : memref<16x324xbf16, #tpu.memory_space<vmem>>, vector<16x286xbf16>
    %c8_224 = arith.constant 8 : index
    %c0_225 = arith.constant 0 : index
    %c0_226 = arith.constant 0 : index
    %212 = vector.load %arg12[%c8_224, %c0_225, %c0_226] : memref<9x8x16xbf16, #tpu.memory_space<vmem>>, vector<1x8x16xbf16>
    %213 = vector.shape_cast %212 : vector<1x8x16xbf16> to vector<8x16xbf16>
    %cst_227 = arith.constant dense<0.000000e+00> : vector<8x286xf32>
    %214 = tpu.matmul %213, %211, %cst_227 {dimension_numbers = #tpu.dot_dimension_numbers<[1], [0], [0], [1], [0, 0, 1, 1], [], []>} : vector<8x16xbf16>, vector<16x286xbf16>, vector<8x286xf32> -> vector<8x286xf32>
    %215 = arith.addf %210, %214 : vector<8x286xf32>
    %c0_228 = arith.constant 0 : index
    %c0_229 = arith.constant 0 : index
    %216 = vector.load %arg13[%c0_228, %c0_229] : memref<8x1xf32, #tpu.memory_space<vmem>>, vector<8x1xf32>
    %217 = vector.broadcast %216 : vector<8x1xf32> to vector<8x286xf32>
    %218 = arith.mulf %215, %217 : vector<8x286xf32>
    %c0_230 = arith.constant 0 : index
    %c0_231 = arith.constant 0 : index
    %219 = vector.load %arg14[%c0_230, %c0_231] : memref<8x1xf32, #tpu.memory_space<vmem>>, vector<8x1xf32>
    %220 = vector.broadcast %219 : vector<8x1xf32> to vector<8x286xf32>
    %221 = arith.addf %218, %220 : vector<8x286xf32>
    %cst_232 = arith.constant 0.000000e+00 : f32
    %222 = vector.broadcast %cst_232 : f32 to vector<8x286xf32>
    %223 = arith.maximumf %221, %222 : vector<8x286xf32>
    %224 = vector.broadcast %3 : vector<1x286xf32> to vector<8x286xf32>
    %225 = arith.mulf %223, %224 : vector<8x286xf32>
    %cst_233 = arith.constant dense<0.000000e+00> : vector<8xf32>
    %226 = vector.multi_reduction <add>, %225, %cst_233 [1] : vector<8x286xf32> to vector<8xf32>
    %227 = vector.shape_cast %226 : vector<8xf32> to vector<8x1xf32>
    %cst_234 = arith.constant 3.906250e-03 : f32
    %228 = vector.broadcast %cst_234 : f32 to vector<8x1xf32>
    %229 = arith.mulf %227, %228 : vector<8x1xf32>
    %c0_235 = arith.constant 0 : index
    %c0_236 = arith.constant 0 : index
    %230 = vector.load %arg15[%c0_235, %c0_236] : memref<8x8xf32, #tpu.memory_space<vmem>>, vector<8x8xf32>
    %cst_237 = arith.constant dense<0.000000e+00> : vector<8x1xf32>
    %231 = tpu.matmul %230, %229, %cst_237 {dimension_numbers = #tpu.dot_dimension_numbers<[1], [0], [0], [1], [0, 0, 1, 1], [], []>} : vector<8x8xf32>, vector<8x1xf32>, vector<8x1xf32> -> vector<8x1xf32>
    %c0_238 = arith.constant 0 : index
    %c0_239 = arith.constant 0 : index
    %232 = vector.load %arg16[%c0_238, %c0_239] : memref<8x1xf32, #tpu.memory_space<vmem>>, vector<8x1xf32>
    %233 = arith.addf %231, %232 : vector<8x1xf32>
    %234 = vector.shape_cast %233 : vector<8x1xf32> to vector<1x8x1xf32>
    %c0_240 = arith.constant 0 : index
    %c0_241 = arith.constant 0 : index
    %c0_242 = arith.constant 0 : index
    %235 = vector.load %arg17[%c0_240, %c0_241, %c0_242] : memref<1x8x1xf32, #tpu.memory_space<vmem>>, vector<1x8x1xf32>
    tpu.vector_store %arg17[%c0_240, %c0_241, %c0_242], %234 {strides = array<i32>} : memref<1x8x1xf32, #tpu.memory_space<vmem>>, vector<1x8x1xf32>,
    return
  }
  func.func @transform_0(%arg0: i32) -> (i32, i32, i32) {
    %c0_i32 = arith.constant 0 : i32
    %c0_i32_0 = arith.constant 0 : i32
    %c0_i32_1 = arith.constant 0 : i32
    return %arg0, %c0_i32, %c0_i32_0 : i32, i32, i32
  }
  func.func @transform_1(%arg0: i32) -> (i32, i32) {
    %c0_i32 = arith.constant 0 : i32
    %c0_i32_0 = arith.constant 0 : i32
    %c0_i32_1 = arith.constant 0 : i32
    return %c0_i32, %c0_i32_0 : i32, i32
  }
  func.func @transform_2(%arg0: i32) -> (i32, i32, i32) {
    %c0_i32 = arith.constant 0 : i32
    %c0_i32_0 = arith.constant 0 : i32
    %c0_i32_1 = arith.constant 0 : i32
    %c0_i32_2 = arith.constant 0 : i32
    return %c0_i32, %c0_i32_0, %c0_i32_1 : i32, i32, i32
  }
  func.func @transform_3(%arg0: i32) -> (i32, i32) {
    %c0_i32 = arith.constant 0 : i32
    %c0_i32_0 = arith.constant 0 : i32
    %c0_i32_1 = arith.constant 0 : i32
    return %c0_i32, %c0_i32_0 : i32, i32
  }
  func.func @transform_4(%arg0: i32) -> (i32, i32) {
    %c0_i32 = arith.constant 0 : i32
    %c0_i32_0 = arith.constant 0 : i32
    %c0_i32_1 = arith.constant 0 : i32
    return %c0_i32, %c0_i32_0 : i32, i32
  }
  func.func @transform_5(%arg0: i32) -> (i32, i32, i32) {
    %c0_i32 = arith.constant 0 : i32
    %c0_i32_0 = arith.constant 0 : i32
    %c0_i32_1 = arith.constant 0 : i32
    %c0_i32_2 = arith.constant 0 : i32
    return %c0_i32, %c0_i32_0, %c0_i32_1 : i32, i32, i32
  }
  func.func @transform_6(%arg0: i32) -> (i32, i32) {
    %c0_i32 = arith.constant 0 : i32
    %c0_i32_0 = arith.constant 0 : i32
    %c0_i32_1 = arith.constant 0 : i32
    return %c0_i32, %c0_i32_0 : i32, i32
  }
  func.func @transform_7(%arg0: i32) -> (i32, i32) {
    %c0_i32 = arith.constant 0 : i32
    %c0_i32_0 = arith.constant 0 : i32
    %c0_i32_1 = arith.constant 0 : i32
    return %c0_i32, %c0_i32_0 : i32, i32
  }
  func.func @transform_8(%arg0: i32) -> (i32, i32, i32) {
    %c0_i32 = arith.constant 0 : i32
    %c0_i32_0 = arith.constant 0 : i32
    %c0_i32_1 = arith.constant 0 : i32
    %c0_i32_2 = arith.constant 0 : i32
    return %c0_i32, %c0_i32_0, %c0_i32_1 : i32, i32, i32
  }
  func.func @transform_9(%arg0: i32) -> (i32, i32) {
    %c0_i32 = arith.constant 0 : i32
    %c0_i32_0 = arith.constant 0 : i32
    %c0_i32_1 = arith.constant 0 : i32
    return %c0_i32, %c0_i32_0 : i32, i32
  }
  func.func @transform_10(%arg0: i32) -> (i32, i32) {
    %c0_i32 = arith.constant 0 : i32
    %c0_i32_0 = arith.constant 0 : i32
    %c0_i32_1 = arith.constant 0 : i32
    return %c0_i32, %c0_i32_0 : i32, i32
  }
  func.func @transform_11(%arg0: i32) -> (i32, i32, i32) {
    %c0_i32 = arith.constant 0 : i32
    %c0_i32_0 = arith.constant 0 : i32
    %c0_i32_1 = arith.constant 0 : i32
    %c0_i32_2 = arith.constant 0 : i32
    return %c0_i32, %c0_i32_0, %c0_i32_1 : i32, i32, i32
  }
  func.func @transform_12(%arg0: i32) -> (i32, i32) {
    %c0_i32 = arith.constant 0 : i32
    %c0_i32_0 = arith.constant 0 : i32
    %c0_i32_1 = arith.constant 0 : i32
    return %c0_i32, %c0_i32_0 : i32, i32
  }
  func.func @transform_13(%arg0: i32) -> (i32, i32) {
    %c0_i32 = arith.constant 0 : i32
    %c0_i32_0 = arith.constant 0 : i32
    %c0_i32_1 = arith.constant 0 : i32
    return %c0_i32, %c0_i32_0 : i32, i32
  }
  func.func @transform_14(%arg0: i32) -> (i32, i32) {
    %c0_i32 = arith.constant 0 : i32
    %c0_i32_0 = arith.constant 0 : i32
    %c0_i32_1 = arith.constant 0 : i32
    return %c0_i32, %c0_i32_0 : i32, i32
  }
  func.func @transform_15(%arg0: i32) -> (i32, i32) {
    %c0_i32 = arith.constant 0 : i32
    %c0_i32_0 = arith.constant 0 : i32
    %c0_i32_1 = arith.constant 0 : i32
    return %c0_i32, %c0_i32_0 : i32, i32
  }
  func.func @transform_16(%arg0: i32) -> (i32, i32, i32) {
    %c0_i32 = arith.constant 0 : i32
    %c0_i32_0 = arith.constant 0 : i32
    %c0_i32_1 = arith.constant 0 : i32
    return %arg0, %c0_i32, %c0_i32_0 : i32, i32, i32
  }
}

</mosaic_0001>

<llo_original>
// kernel: decoder_forward.1
$region0: #{decoder_forward.1}
  #allocation0 [shape = 'u32[]', space=smem, size = 0x4, offset = 0x4, fixed_abs, tag = 'smem constant byte address 0x4 - core index']
  #allocation1 [shape = 'u32[144,128]{1,0:T(1,128)}', space=vmem, size = 0x12000, scoped, tag = 'internal scratch']
  #allocation2 [shape = 'bf16[16,324]{1,0:T(16,128)(2,1)}', space=vmem, size = 0x3000, scoped, tag = 'scratch operand']
  %s0 = inlined_call_operand.vmem [shape: bf16[2,16,324], index: 0, kind: input, shape index: {}]
  %s1 = inlined_call_operand.vmem [shape: f32[1,286], index: 1, kind: input, shape index: {}]
  %s2 = inlined_call_operand.vmem [shape: bf16[9,16,16], index: 2, kind: input, shape index: {}]
  %s3 = inlined_call_operand.vmem [shape: f32[16,1], index: 3, kind: input, shape index: {}]
  %s4 = inlined_call_operand.vmem [shape: f32[16,1], index: 4, kind: input, shape index: {}]
  %s5 = inlined_call_operand.vmem [shape: bf16[9,16,16], index: 5, kind: input, shape index: {}]
  %s6 = inlined_call_operand.vmem [shape: f32[16,1], index: 6, kind: input, shape index: {}]
  %s7 = inlined_call_operand.vmem [shape: f32[16,1], index: 7, kind: input, shape index: {}]
  %s8 = inlined_call_operand.vmem [shape: bf16[9,16,16], index: 8, kind: input, shape index: {}]
  %s9 = inlined_call_operand.vmem [shape: f32[16,1], index: 9, kind: input, shape index: {}]
  %s10 = inlined_call_operand.vmem [shape: f32[16,1], index: 10, kind: input, shape index: {}]
  %s11 = inlined_call_operand.vmem [shape: bf16[9,8,16], index: 11, kind: input, shape index: {}]
  %s12 = inlined_call_operand.vmem [shape: f32[8,1], index: 12, kind: input, shape index: {}]
  %s13 = inlined_call_operand.vmem [shape: f32[8,1], index: 13, kind: input, shape index: {}]
  %s14 = inlined_call_operand.vmem [shape: f32[8,8], index: 14, kind: input, shape index: {}]
  %s15 = inlined_call_operand.vmem [shape: f32[8,1], index: 15, kind: input, shape index: {}]
  %s16 = inlined_call_operand.vmem [shape: f32[2,8,1], index: 16, kind: output, shape index: {}]
  %s17 = sld [smem:[#allocation0]]
  $region97: #{decoder_forward.1} parent=0
    _
  %s19 = ssub.s32 1, %s17
  %s20 = scalar_select 0, %s19, %s17
  loop: start=0, step=1, limit=4
  $region2: #{decoder_forward.1} parent=0 // loop_pre_header
    _
  $region3: #{decoder_forward.1} parent=0 // loop_header
    %s22 = sphi 0, %s26
    %p23 = scmp.ge.s32.totalorder %s22, 4
    %s32 = sphi 0, %s34
    %s35 = sphi 0, %s32
    %s36 = sphi 0, %s35
    %s52 = sphi 0, %s36
    %s56 = sphi 0, %s56
    %s58 = sphi 0, %s56
    %s59 = sphi 0, %s58
    %s73 = sphi 0, %s59
    %s77 = sphi 0, %s77
    %s79 = sphi 0, %s77
    %s80 = sphi 0, %s79
    %s94 = sphi 0, %s80
    %s98 = sphi 0, %s98
    %s100 = sphi 0, %s98
    %s101 = sphi 0, %s100
    %s115 = sphi 0, %s101
    %s119 = sphi 0, %s119
    %s121 = sphi 0, %s119
    %s122 = sphi 0, %s121
    %s136 = sphi 0, %s122
    %s140 = sphi 0, %s140
    %s142 = sphi 0, %s140
    %s143 = sphi 0, %s142
    %s157 = sphi 0, %s143
    %s161 = sphi 0, %s161
    %s163 = sphi 0, %s161
    %s164 = sphi 0, %s163
    %s178 = sphi 0, %s164
    %s182 = sphi 0, %s182
    %s184 = sphi 0, %s182
    %s185 = sphi 0, %s184
    %s199 = sphi 0, %s185
    %s203 = sphi 0, %s203
    %s205 = sphi 0, %s203
    %s206 = sphi 0, %s205
    %s220 = sphi 0, %s206
    %s224 = sphi 0, %s224
    %s226 = sphi 0, %s224
    %s227 = sphi 0, %s226
    %s241 = sphi 0, %s227
    %s245 = sphi 0, %s245
    %s247 = sphi 0, %s245
    %s248 = sphi 0, %s247
    %s262 = sphi 0, %s248
    %s266 = sphi 0, %s266
    %s268 = sphi 0, %s266
    %s269 = sphi 0, %s268
    %s283 = sphi 0, %s269
    %s287 = sphi 0, %s287
    %s289 = sphi 0, %s287
    %s290 = sphi 0, %s289
    %s304 = sphi 0, %s290
    %s308 = sphi 0, %s308
    %s310 = sphi 0, %s308
    %s311 = sphi 0, %s310
    %s325 = sphi 0, %s311
    %s329 = sphi 0, %s329
    %s331 = sphi 0, %s329
    %s332 = sphi 0, %s331
    %s346 = sphi 0, %s332
    %s350 = sphi 0, %s350
    %s352 = sphi 0, %s350
    %s353 = sphi 0, %s352
    %s367 = sphi 0, %s353
    %s373 = sphi 0, %s375
    %s376 = sphi 0, %s373
    %s377 = sphi 0, %s376
    %s393 = sphi 0, %s377
  $region4: #{decoder_forward.1} parent=0 // loop_header_branch
    %25 = sbr.rel (%p23) target = $region8
  $region5: #{decoder_forward.1} parent=0 // loop_body
    %s27 = ssub.s32 %s22, 1
    %s28 = ssub.s32 %s22, 2
    %s29 = sadd.s32 %s22, 1
    %s30 = ssub.s32 %s22, %s29
    %p31 = scmp.eq.s32.totalorder %s30, 0
    %s33 = sadd.s32 %s32, 1
    %s34 = scalar_select %p31, %s32, %s33
    %p37 = pneg %p31
    %p38 = scmp.eq.s32.totalorder %s22, 1
    %p39 = por %p37, %p38
    %p40 = scmp.ne.s32.totalorder %s32, %s35
    %p41 = scmp.eq.s32.totalorder %s22, 0
    %p42 = por %p40, %p41
    %p43 = scmp.ne.s32.totalorder %s32, %s35
    %p44 = scmp.eq.s32.totalorder %s27, 1
    %p45 = por %p43, %p44
    %p46 = scmp.ne.s32.totalorder %s35, %s36
    %p47 = scmp.eq.s32.totalorder %s27, 0
    %p48 = por %p46, %p47
    %p49 = scmp.ne.s32.totalorder %s35, %s36
    %p50 = scmp.eq.s32.totalorder %s28, 1
    %p51 = por %p49, %p50
    %p53 = scmp.ne.s32.totalorder %s36, %s52
    %p54 = scmp.eq.s32.totalorder %s28, 0
    %p55 = por %p53, %p54
    %s57 = sadd.s32 %s56, 1
    %p60 = scmp.eq.s32.totalorder %s22, 1
    %p61 = scmp.ne.s32.totalorder %s56, %s58
    %p62 = scmp.eq.s32.totalorder %s22, 0
    %p63 = por %p61, %p62
    %p64 = scmp.ne.s32.totalorder %s56, %s58
    %p65 = scmp.eq.s32.totalorder %s27, 1
    %p66 = por %p64, %p65
    %p67 = scmp.ne.s32.totalorder %s58, %s59
    %p68 = scmp.eq.s32.totalorder %s27, 0
    %p69 = por %p67, %p68
    %p70 = scmp.ne.s32.totalorder %s58, %s59
    %p71 = scmp.eq.s32.totalorder %s28, 1
    %p72 = por %p70, %p71
    %p74 = scmp.ne.s32.totalorder %s59, %s73
    %p75 = scmp.eq.s32.totalorder %s28, 0
    %p76 = por %p74, %p75
    %s78 = sadd.s32 %s77, 1
    %p81 = scmp.eq.s32.totalorder %s22, 1
    %p82 = scmp.ne.s32.totalorder %s77, %s79
    %p83 = scmp.eq.s32.totalorder %s22, 0
    %p84 = por %p82, %p83
    %p85 = scmp.ne.s32.totalorder %s77, %s79
    %p86 = scmp.eq.s32.totalorder %s27, 1
    %p87 = por %p85, %p86
    %p88 = scmp.ne.s32.totalorder %s79, %s80
    %p89 = scmp.eq.s32.totalorder %s27, 0
    %p90 = por %p88, %p89
    %p91 = scmp.ne.s32.totalorder %s79, %s80
    %p92 = scmp.eq.s32.totalorder %s28, 1
    %p93 = por %p91, %p92
    %p95 = scmp.ne.s32.totalorder %s80, %s94
    %p96 = scmp.eq.s32.totalorder %s28, 0
    %p97 = por %p95, %p96
    %s99 = sadd.s32 %s98, 1
    %p102 = scmp.eq.s32.totalorder %s22, 1
    %p103 = scmp.ne.s32.totalorder %s98, %s100
    %p104 = scmp.eq.s32.totalorder %s22, 0
    %p105 = por %p103, %p104
    %p106 = scmp.ne.s32.totalorder %s98, %s100
    %p107 = scmp.eq.s32.totalorder %s27, 1
    %p108 = por %p106, %p107
    %p109 = scmp.ne.s32.totalorder %s100, %s101
    %p110 = scmp.eq.s32.totalorder %s27, 0
    %p111 = por %p109, %p110
    %p112 = scmp.ne.s32.totalorder %s100, %s101
    %p113 = scmp.eq.s32.totalorder %s28, 1
    %p114 = por %p112, %p113
    %p116 = scmp.ne.s32.totalorder %s101, %s115
    %p117 = scmp.eq.s32.totalorder %s28, 0
    %p118 = por %p116, %p117
    %s120 = sadd.s32 %s119, 1
    %p123 = scmp.eq.s32.totalorder %s22, 1
    %p124 = scmp.ne.s32.totalorder %s119, %s121
    %p125 = scmp.eq.s32.totalorder %s22, 0
    %p126 = por %p124, %p125
    %p127 = scmp.ne.s32.totalorder %s119, %s121
    %p128 = scmp.eq.s32.totalorder %s27, 1
    %p129 = por %p127, %p128
    %p130 = scmp.ne.s32.totalorder %s121, %s122
    %p131 = scmp.eq.s32.totalorder %s27, 0
    %p132 = por %p130, %p131
    %p133 = scmp.ne.s32.totalorder %s121, %s122
    %p134 = scmp.eq.s32.totalorder %s28, 1
    %p135 = por %p133, %p134
    %p137 = scmp.ne.s32.totalorder %s122, %s136
    %p138 = scmp.eq.s32.totalorder %s28, 0
    %p139 = por %p137, %p138
    %s141 = sadd.s32 %s140, 1
    %p144 = scmp.eq.s32.totalorder %s22, 1
    %p145 = scmp.ne.s32.totalorder %s140, %s142
    %p146 = scmp.eq.s32.totalorder %s22, 0
    %p147 = por %p145, %p146
    %p148 = scmp.ne.s32.totalorder %s140, %s142
    %p149 = scmp.eq.s32.totalorder %s27, 1
    %p150 = por %p148, %p149
    %p151 = scmp.ne.s32.totalorder %s142, %s143
    %p152 = scmp.eq.s32.totalorder %s27, 0
    %p153 = por %p151, %p152
    %p154 = scmp.ne.s32.totalorder %s142, %s143
    %p155 = scmp.eq.s32.totalorder %s28, 1
    %p156 = por %p154, %p155
    %p158 = scmp.ne.s32.totalorder %s143, %s157
    %p159 = scmp.eq.s32.totalorder %s28, 0
    %p160 = por %p158, %p159
    %s162 = sadd.s32 %s161, 1
    %p165 = scmp.eq.s32.totalorder %s22, 1
    %p166 = scmp.ne.s32.totalorder %s161, %s163
    %p167 = scmp.eq.s32.totalorder %s22, 0
    %p168 = por %p166, %p167
    %p169 = scmp.ne.s32.totalorder %s161, %s163
    %p170 = scmp.eq.s32.totalorder %s27, 1
    %p171 = por %p169, %p170
    %p172 = scmp.ne.s32.totalorder %s163, %s164
    %p173 = scmp.eq.s32.totalorder %s27, 0
    %p174 = por %p172, %p173
    %p175 = scmp.ne.s32.totalorder %s163, %s164
    %p176 = scmp.eq.s32.totalorder %s28, 1
    %p177 = por %p175, %p176
    %p179 = scmp.ne.s32.totalorder %s164, %s178
    %p180 = scmp.eq.s32.totalorder %s28, 0
    %p181 = por %p179, %p180
    %s183 = sadd.s32 %s182, 1
    %p186 = scmp.eq.s32.totalorder %s22, 1
    %p187 = scmp.ne.s32.totalorder %s182, %s184
    %p188 = scmp.eq.s32.totalorder %s22, 0
    %p189 = por %p187, %p188
    %p190 = scmp.ne.s32.totalorder %s182, %s184
    %p191 = scmp.eq.s32.totalorder %s27, 1
    %p192 = por %p190, %p191
    %p193 = scmp.ne.s32.totalorder %s184, %s185
    %p194 = scmp.eq.s32.totalorder %s27, 0
    %p195 = por %p193, %p194
    %p196 = scmp.ne.s32.totalorder %s184, %s185
    %p197 = scmp.eq.s32.totalorder %s28, 1
    %p198 = por %p196, %p197
    %p200 = scmp.ne.s32.totalorder %s185, %s199
    %p201 = scmp.eq.s32.totalorder %s28, 0
    %p202 = por %p200, %p201
    %s204 = sadd.s32 %s203, 1
    %p207 = scmp.eq.s32.totalorder %s22, 1
    %p208 = scmp.ne.s32.totalorder %s203, %s205
    %p209 = scmp.eq.s32.totalorder %s22, 0
    %p210 = por %p208, %p209
    %p211 = scmp.ne.s32.totalorder %s203, %s205
    %p212 = scmp.eq.s32.totalorder %s27, 1
    %p213 = por %p211, %p212
    %p214 = scmp.ne.s32.totalorder %s205, %s206
    %p215 = scmp.eq.s32.totalorder %s27, 0
    %p216 = por %p214, %p215
    %p217 = scmp.ne.s32.totalorder %s205, %s206
    %p218 = scmp.eq.s32.totalorder %s28, 1
    %p219 = por %p217, %p218
    %p221 = scmp.ne.s32.totalorder %s206, %s220
    %p222 = scmp.eq.s32.totalorder %s28, 0
    %p223 = por %p221, %p222
    %s225 = sadd.s32 %s224, 1
    %p228 = scmp.eq.s32.totalorder %s22, 1
    %p229 = scmp.ne.s32.totalorder %s224, %s226
    %p230 = scmp.eq.s32.totalorder %s22, 0
    %p231 = por %p229, %p230
    %p232 = scmp.ne.s32.totalorder %s224, %s226
    %p233 = scmp.eq.s32.totalorder %s27, 1
    %p234 = por %p232, %p233
    %p235 = scmp.ne.s32.totalorder %s226, %s227
    %p236 = scmp.eq.s32.totalorder %s27, 0
    %p237 = por %p235, %p236
    %p238 = scmp.ne.s32.totalorder %s226, %s227
    %p239 = scmp.eq.s32.totalorder %s28, 1
    %p240 = por %p238, %p239
    %p242 = scmp.ne.s32.totalorder %s227, %s241
    %p243 = scmp.eq.s32.totalorder %s28, 0
    %p244 = por %p242, %p243
    %s246 = sadd.s32 %s245, 1
    %p249 = scmp.eq.s32.totalorder %s22, 1
    %p250 = scmp.ne.s32.totalorder %s245, %s247
    %p251 = scmp.eq.s32.totalorder %s22, 0
    %p252 = por %p250, %p251
    %p253 = scmp.ne.s32.totalorder %s245, %s247
    %p254 = scmp.eq.s32.totalorder %s27, 1
    %p255 = por %p253, %p254
    %p256 = scmp.ne.s32.totalorder %s247, %s248
    %p257 = scmp.eq.s32.totalorder %s27, 0
    %p258 = por %p256, %p257
    %p259 = scmp.ne.s32.totalorder %s247, %s248
    %p260 = scmp.eq.s32.totalorder %s28, 1
    %p261 = por %p259, %p260
    %p263 = scmp.ne.s32.totalorder %s248, %s262
    %p264 = scmp.eq.s32.totalorder %s28, 0
    %p265 = por %p263, %p264
    %s267 = sadd.s32 %s266, 1
    %p270 = scmp.eq.s32.totalorder %s22, 1
    %p271 = scmp.ne.s32.totalorder %s266, %s268
    %p272 = scmp.eq.s32.totalorder %s22, 0
    %p273 = por %p271, %p272
    %p274 = scmp.ne.s32.totalorder %s266, %s268
    %p275 = scmp.eq.s32.totalorder %s27, 1
    %p276 = por %p274, %p275
    %p277 = scmp.ne.s32.totalorder %s268, %s269
    %p278 = scmp.eq.s32.totalorder %s27, 0
    %p279 = por %p277, %p278
    %p280 = scmp.ne.s32.totalorder %s268, %s269
    %p281 = scmp.eq.s32.totalorder %s28, 1
    %p282 = por %p280, %p281
    %p284 = scmp.ne.s32.totalorder %s269, %s283
    %p285 = scmp.eq.s32.totalorder %s28, 0
    %p286 = por %p284, %p285
    %s288 = sadd.s32 %s287, 1
    %p291 = scmp.eq.s32.totalorder %s22, 1
    %p292 = scmp.ne.s32.totalorder %s287, %s289
    %p293 = scmp.eq.s32.totalorder %s22, 0
    %p294 = por %p292, %p293
    %p295 = scmp.ne.s32.totalorder %s287, %s289
    %p296 = scmp.eq.s32.totalorder %s27, 1
    %p297 = por %p295, %p296
    %p298 = scmp.ne.s32.totalorder %s289, %s290
    %p299 = scmp.eq.s32.totalorder %s27, 0
    %p300 = por %p298, %p299
    %p301 = scmp.ne.s32.totalorder %s289, %s290
    %p302 = scmp.eq.s32.totalorder %s28, 1
    %p303 = por %p301, %p302
    %p305 = scmp.ne.s32.totalorder %s290, %s304
    %p306 = scmp.eq.s32.totalorder %s28, 0
    %p307 = por %p305, %p306
    %s309 = sadd.s32 %s308, 1
    %p312 = scmp.eq.s32.totalorder %s22, 1
    %p313 = scmp.ne.s32.totalorder %s308, %s310
    %p314 = scmp.eq.s32.totalorder %s22, 0
    %p315 = por %p313, %p314
    %p316 = scmp.ne.s32.totalorder %s308, %s310
    %p317 = scmp.eq.s32.totalorder %s27, 1
    %p318 = por %p316, %p317
    %p319 = scmp.ne.s32.totalorder %s310, %s311
    %p320 = scmp.eq.s32.totalorder %s27, 0
    %p321 = por %p319, %p320
    %p322 = scmp.ne.s32.totalorder %s310, %s311
    %p323 = scmp.eq.s32.totalorder %s28, 1
    %p324 = por %p322, %p323
    %p326 = scmp.ne.s32.totalorder %s311, %s325
    %p327 = scmp.eq.s32.totalorder %s28, 0
    %p328 = por %p326, %p327
    %s330 = sadd.s32 %s329, 1
    %p333 = scmp.eq.s32.totalorder %s22, 1
    %p334 = scmp.ne.s32.totalorder %s329, %s331
    %p335 = scmp.eq.s32.totalorder %s22, 0
    %p336 = por %p334, %p335
    %p337 = scmp.ne.s32.totalorder %s329, %s331
    %p338 = scmp.eq.s32.totalorder %s27, 1
    %p339 = por %p337, %p338
    %p340 = scmp.ne.s32.totalorder %s331, %s332
    %p341 = scmp.eq.s32.totalorder %s27, 0
    %p342 = por %p340, %p341
    %p343 = scmp.ne.s32.totalorder %s331, %s332
    %p344 = scmp.eq.s32.totalorder %s28, 1
    %p345 = por %p343, %p344
    %p347 = scmp.ne.s32.totalorder %s332, %s346
    %p348 = scmp.eq.s32.totalorder %s28, 0
    %p349 = por %p347, %p348
    %s351 = sadd.s32 %s350, 1
    %p354 = scmp.eq.s32.totalorder %s22, 1
    %p355 = scmp.ne.s32.totalorder %s350, %s352
    %p356 = scmp.eq.s32.totalorder %s22, 0
    %p357 = por %p355, %p356
    %p358 = scmp.ne.s32.totalorder %s350, %s352
    %p359 = scmp.eq.s32.totalorder %s27, 1
    %p360 = por %p358, %p359
    %p361 = scmp.ne.s32.totalorder %s352, %s353
    %p362 = scmp.eq.s32.totalorder %s27, 0
    %p363 = por %p361, %p362
    %p364 = scmp.ne.s32.totalorder %s352, %s353
    %p365 = scmp.eq.s32.totalorder %s28, 1
    %p366 = por %p364, %p365
    %p368 = scmp.ne.s32.totalorder %s353, %s367
    %p369 = scmp.eq.s32.totalorder %s28, 0
    %p370 = por %p368, %p369
    %s371 = ssub.s32 %s22, %s29
    %p372 = scmp.eq.s32.totalorder %s371, 0
    %s374 = sadd.s32 %s373, 1
    %s375 = scalar_select %p372, %s373, %s374
    %p378 = pneg %p372
    %p379 = scmp.eq.s32.totalorder %s22, 1
    %p380 = por %p378, %p379
    %p381 = scmp.ne.s32.totalorder %s373, %s376
    %p382 = scmp.eq.s32.totalorder %s22, 0
    %p383 = por %p381, %p382
    %p384 = scmp.ne.s32.totalorder %s373, %s376
    %p385 = scmp.eq.s32.totalorder %s27, 1
    %p386 = por %p384, %p385
    %p387 = scmp.ne.s32.totalorder %s376, %s377
    %p388 = scmp.eq.s32.totalorder %s27, 0
    %p389 = por %p387, %p388
    %p390 = scmp.ne.s32.totalorder %s376, %s377
    %p391 = scmp.eq.s32.totalorder %s28, 1
    %p392 = por %p390, %p391
    %p394 = scmp.ne.s32.totalorder %s377, %s393
    %p395 = scmp.eq.s32.totalorder %s28, 0
    %p396 = por %p394, %p395
    %p397 = scmp.le.s32.totalorder 1, %s22
    %p398 = scmp.lt.s32.totalorder %s22, 3
    %p399 = pnand %p397, %p398
    %p400 = pneg %p399
    // Predicated region
    $region9: #{decoder_forward.1} parent=5 // pred_check
      _
    $region10: #{decoder_forward.1} parent=5 // pred_check_branch
      %402 = sbr.rel (%p399) target = $region12
    $region11: #{decoder_forward.1} parent=5 // pred_region
      %s403 = ssub.s32 %s22, 1
      // Predicated region
      $region13: #{decoder_forward.1} parent=11 // pred_check
        %p404 = pneg %p69
      $region14: #{decoder_forward.1} parent=11 // pred_check_branch
        %406 = sbr.rel (%p404) target = $region16
      $region15: #{decoder_forward.1} parent=11 // pred_region
        _
      $region16: #{decoder_forward.1} parent=11 // pred_fallthru
        _
      // Predicated region
      $region17: #{decoder_forward.1} parent=11 // pred_check
        %p407 = pneg %p90
      $region18: #{decoder_forward.1} parent=11 // pred_check_branch
        %409 = sbr.rel (%p407) target = $region20
      $region19: #{decoder_forward.1} parent=11 // pred_region
        _
      $region20: #{decoder_forward.1} parent=11 // pred_fallthru
        _
      // Predicated region
      $region21: #{decoder_forward.1} parent=11 // pred_check
        %p410 = pneg %p111
      $region22: #{decoder_forward.1} parent=11 // pred_check_branch
        %412 = sbr.rel (%p410) target = $region24
      $region23: #{decoder_forward.1} parent=11 // pred_region
        _
      $region24: #{decoder_forward.1} parent=11 // pred_fallthru
        _
      // Predicated region
      $region25: #{decoder_forward.1} parent=11 // pred_check
        %p413 = pneg %p132
      $region26: #{decoder_forward.1} parent=11 // pred_check_branch
        %415 = sbr.rel (%p413) target = $region28
      $region27: #{decoder_forward.1} parent=11 // pred_region
        _
      $region28: #{decoder_forward.1} parent=11 // pred_fallthru
        _
      // Predicated region
      $region29: #{decoder_forward.1} parent=11 // pred_check
        %p416 = pneg %p153
      $region30: #{decoder_forward.1} parent=11 // pred_check_branch
        %418 = sbr.rel (%p416) target = $region32
      $region31: #{decoder_forward.1} parent=11 // pred_region
        _
      $region32: #{decoder_forward.1} parent=11 // pred_fallthru
        _
      // Predicated region
      $region33: #{decoder_forward.1} parent=11 // pred_check
        %p419 = pneg %p174
      $region34: #{decoder_forward.1} parent=11 // pred_check_branch
        %421 = sbr.rel (%p419) target = $region36
      $region35: #{decoder_forward.1} parent=11 // pred_region
        _
      $region36: #{decoder_forward.1} parent=11 // pred_fallthru
        _
      // Predicated region
      $region37: #{decoder_forward.1} parent=11 // pred_check
        %p422 = pneg %p195
      $region38: #{decoder_forward.1} parent=11 // pred_check_branch
        %424 = sbr.rel (%p422) target = $region40
      $region39: #{decoder_forward.1} parent=11 // pred_region
        _
      $region40: #{decoder_forward.1} parent=11 // pred_fallthru
        _
      // Predicated region
      $region41: #{decoder_forward.1} parent=11 // pred_check
        %p425 = pneg %p216
      $region42: #{decoder_forward.1} parent=11 // pred_check_branch
        %427 = sbr.rel (%p425) target = $region44
      $region43: #{decoder_forward.1} parent=11 // pred_region
        _
      $region44: #{decoder_forward.1} parent=11 // pred_fallthru
        _
      // Predicated region
      $region45: #{decoder_forward.1} parent=11 // pred_check
        %p428 = pneg %p237
      $region46: #{decoder_forward.1} parent=11 // pred_check_branch
        %430 = sbr.rel (%p428) target = $region48
      $region47: #{decoder_forward.1} parent=11 // pred_region
        _
      $region48: #{decoder_forward.1} parent=11 // pred_fallthru
        _
      // Predicated region
      $region49: #{decoder_forward.1} parent=11 // pred_check
        %p431 = pneg %p258
      $region50: #{decoder_forward.1} parent=11 // pred_check_branch
        %433 = sbr.rel (%p431) target = $region52
      $region51: #{decoder_forward.1} parent=11 // pred_region
        _
      $region52: #{decoder_forward.1} parent=11 // pred_fallthru
        _
      // Predicated region
      $region53: #{decoder_forward.1} parent=11 // pred_check
        %p434 = pneg %p279
      $region54: #{decoder_forward.1} parent=11 // pred_check_branch
        %436 = sbr.rel (%p434) target = $region56
      $region55: #{decoder_forward.1} parent=11 // pred_region
        _
      $region56: #{decoder_forward.1} parent=11 // pred_fallthru
        _
      // Predicated region
      $region57: #{decoder_forward.1} parent=11 // pred_check
        %p437 = pneg %p300
      $region58: #{decoder_forward.1} parent=11 // pred_check_branch
        %439 = sbr.rel (%p437) target = $region60
      $region59: #{decoder_forward.1} parent=11 // pred_region
        _
      $region60: #{decoder_forward.1} parent=11 // pred_fallthru
        _
      // Predicated region
      $region61: #{decoder_forward.1} parent=11 // pred_check
        %p440 = pneg %p321
      $region62: #{decoder_forward.1} parent=11 // pred_check_branch
        %442 = sbr.rel (%p440) target = $region64
      $region63: #{decoder_forward.1} parent=11 // pred_region
        _
      $region64: #{decoder_forward.1} parent=11 // pred_fallthru
        _
      // Predicated region
      $region65: #{decoder_forward.1} parent=11 // pred_check
        %p443 = pneg %p342
      $region66: #{decoder_forward.1} parent=11 // pred_check_branch
        %445 = sbr.rel (%p443) target = $region68
      $region67: #{decoder_forward.1} parent=11 // pred_region
        _
      $region68: #{decoder_forward.1} parent=11 // pred_fallthru
        _
      // Predicated region
      $region69: #{decoder_forward.1} parent=11 // pred_check
        %p446 = pneg %p363
      $region70: #{decoder_forward.1} parent=11 // pred_check_branch
        %448 = sbr.rel (%p446) target = $region72
      $region71: #{decoder_forward.1} parent=11 // pred_region
        _
      $region72: #{decoder_forward.1} parent=11 // pred_fallthru
        _
    $region12: #{decoder_forward.1} parent=5 // pred_fallthru
      _
    %p449 = scmp.lt.s32.totalorder %s22, 2
    // Predicated region
    $region73: #{decoder_forward.1} parent=5 // pred_check
      %p450 = pneg %p449
    $region74: #{decoder_forward.1} parent=5 // pred_check_branch
      %452 = sbr.rel (%p450) target = $region76
    $region75: #{decoder_forward.1} parent=5 // pred_region
      // Predicated region
      $region77: #{decoder_forward.1} parent=75 // pred_check
        %p453 = pneg %p42
      $region78: #{decoder_forward.1} parent=75 // pred_check_branch
        %455 = sbr.rel (%p453) target = $region80
      $region79: #{decoder_forward.1} parent=75 // pred_region
        %p456 = scmp.lt.s32.totalorder %s22, 1
        %s457 = scalar_select %p456, %s22, 1
        %s458 = smul.addr %s457, 6
        %s459 = smul.addr %s458, 4
        %s460 = scalar_lea.vmem %s0, %s459
      $region80: #{decoder_forward.1} parent=75 // pred_fallthru
        _
    $region76: #{decoder_forward.1} parent=5 // pred_fallthru
      _
    %p461 = scmp.le.s32.totalorder 1, %s22
    %p462 = scmp.lt.s32.totalorder %s22, 3
    %p463 = pnand %p461, %p462
    %p464 = pneg %p463
    // Predicated region
    $region81: #{decoder_forward.1} parent=5 // pred_check
      _
    $region82: #{decoder_forward.1} parent=5 // pred_check_branch
      %466 = sbr.rel (%p463) target = $region84
    $region83: #{decoder_forward.1} parent=5 // pred_region
      %s467 = ssub.s32 %s22, 1
      %p468 = scmp.lt.s32.totalorder %s27, 1
      %s469 = scalar_select %p468, %s27, 1
      %s470 = smul.addr %s469, 6
      %s471 = smul.addr %s470, 4
      %s472 = scalar_lea.vmem %s0, %s471
      %p473 = pneg %p48
      %p474 = pneg %p45
      %p475 = pneg %p69
      %p476 = pneg %p66
      %p477 = pneg %p90
      %p478 = pneg %p87
      %p479 = pneg %p111
      %p480 = pneg %p108
      %p481 = pneg %p132
      %p482 = pneg %p129
      %p483 = pneg %p153
      %p484 = pneg %p150
      %p485 = pneg %p174
      %p486 = pneg %p171
      %p487 = pneg %p195
      %p488 = pneg %p192
      %p489 = pneg %p216
      %p490 = pneg %p213
      %p491 = pneg %p237
      %p492 = pneg %p234
      %p493 = pneg %p258
      %p494 = pneg %p255
      %p495 = pneg %p279
      %p496 = pneg %p276
      %p497 = pneg %p300
      %p498 = pneg %p297
      %p499 = pneg %p321
      %p500 = pneg %p318
      %p501 = pneg %p342
      %p502 = pneg %p339
      %p503 = pneg %p363
      %p504 = pneg %p360
      %p505 = pneg %p389
      %p506 = pneg %p386
      %p507 = scmp.lt.s32.totalorder %s27, 1
      %s508 = scalar_select %p507, %s27, 1
      %s509 = smul.addr %s508, 8
      %s510 = scalar_lea.vmem %s16, %s509
      %p511 = scmp.lt.s32.totalorder %s27, 1
      %s512 = scalar_select %p511, %s27, 1
      %s513 = smul.addr %s512, 6
      %s514 = smul.addr %s513, 4
      %s515 = scalar_lea.vmem %s0, %s514
      %p516 = scmp.lt.s32.totalorder %s27, 1
      %s517 = scalar_select %p516, %s27, 1
      %s518 = smul.addr %s517, 8
      %s519 = scalar_lea.vmem %s16, %s518
      %v521 = vld [vmem:[%s515] sm:$0xff]
      %v522 = vld [vmem:[%s515 + $0x8] sm:$0xf]
      %v523 = vld [vmem:[%s515 + $0xc] sm:$0xff]
      %v524 = vld [vmem:[%s515 + $0x14] sm:$0xf]
      %v529 = vunpack.c.l.b16 %v521
      %v530 = vunpack.c.h.b16 %v521
      %v531 = vunpack.c.l.b16 %v522
      %v532 = vunpack.c.l.b16 %v523
      %v533 = vunpack.c.h.b16 %v523
      %v534 = vunpack.c.l.b16 %v524
      %v535 = vpack.c.b16 %v532, %v529
      %v536 = vpack.c.b16 %v533, %v530
      %v537 = vpack.c.b16 %v534, %v531
      %541 = vst [vmem:[#allocation2] sm:$0xff] %v535
      %542 = vst [vmem:[#allocation2 + $0x8] sm:$0xff] %v536
      %vm543 = vcmask 556032
      %544 = vst.msk [vmem:[#allocation2 + $0x10] sm:$0xff] %vm543, %v537
      %v545 = vld [vmem:[%s1] sm:$0x7]
      %v546 = vld [vmem:[#allocation2] sm:$0xff]
      %v547 = vld [vmem:[#allocation2 + $0x8] sm:$0xff]
      %v548 = vld [vmem:[#allocation2 + $0x10] sm:$0xff]
      %v549 = vld [vmem:[%s2] sm:$0xf]
      %v550 = vld [vmem:[%s2 + $0x4] sm:$0xf]
      %s551 = scalar_lea.vmem %s2, 8
      %v552 = vld [vmem:[%s551] sm:$0xf]
      %v553 = vld [vmem:[%s551 + $0x4] sm:$0xf]
      %v556 = vunpack.c.l.b16 %v552
      %v557 = vunpack.c.l.b16 %v553
      %v558 = vpack.c.b16 %v557, %v556
      %562 = vrot.lane.b32.xlu0 %v546, 127
      %v563 = vpop.permute.xlu0 %562
      %564 = vrot.lane.b32.xlu0 %v547, 127
      %v565 = vpop.permute.xlu0 %564
      %566 = vrot.lane.b32.xlu0 %v548, 127
      %v567 = vpop.permute.xlu0 %566
      %vm568 = vcmask 1039360
      %v569 = vsel %vm568, %v563, %v565
      %v570 = vsel %vm568, %v565, %v567
      %vm574 = vcmask 130048
      %v576 = vsel %vm574, %v558, 0
      %578 = vmatprep.subr.bf16.mxu0 %v570
      %579 = vmatpush1.bf16.msra.mxu0 %v569
      %580 = vmatprep.subr.bf16.mxu0 0
      %581 = vmatpush1.bf16.msra.mxu0 0
      %582 = vmatprep.subr.bf16.mxu0 0
      %583 = vmatpush1.bf16.msra.mxu0 0
      %584 = vmatprep.subr.bf16.mxu0 0
      %585 = vmatpush1.bf16.msra.mxu0 0
      %586 = vmatprep.subr.bf16.mxu0 0
      %587 = vmatpush1.bf16.msra.mxu0 0
      %588 = vmatprep.subr.bf16.mxu0 0
      %589 = vmatpush1.bf16.msra.mxu0 0
      %590 = vmatprep.subr.bf16.mxu0 0
      %591 = vmatpush1.bf16.msra.mxu0 0
      %592 = vmatprep.subr.bf16.mxu0 0
      %593 = vmatpush1.bf16.msra.mxu0 0
      %594 = vmatprep.subr.bf16.mxu0 0
      %595 = vmatpush1.bf16.msra.mxu0 0
      %596 = vmatprep.subr.bf16.mxu0 0
      %597 = vmatpush1.bf16.msra.mxu0 0
      %598 = vmatprep.subr.bf16.mxu0 0
      %599 = vmatpush1.bf16.msra.mxu0 0
      %600 = vmatprep.subr.bf16.mxu0 0
      %601 = vmatpush1.bf16.msra.mxu0 0
      %602 = vmatprep.subr.bf16.mxu0 0
      %603 = vmatpush1.bf16.msra.mxu0 0
      %604 = vmatprep.subr.bf16.mxu0 0
      %605 = vmatpush1.bf16.msra.mxu0 0
      %606 = vmatprep.subr.bf16.mxu0 0
      %607 = vmatpush1.bf16.msra.mxu0 0
      %608 = vmatprep.subr.bf16.mxu0 0
      %609 = vmatpush1.bf16.msra.mxu0 0
      %610 = vmatprep.mubr.bf16.mxu0 0
      %611 = vmatmul.mubr.bf16.gmra.mrb[0].mxu0 %v576
      %v612 = vpop.f32.mrb[0].mxu0
      %v613 = vadd.f32 0.0, %v612
      %v614 = vpop.f32.mrb[0].mxu0
      %v615 = vadd.f32 0.0, %v614
      %v616 = vpop.f32.mrb[0].mxu0
      %v617 = vadd.f32 0.0, %v616
      %v618 = vpop.f32.mrb[0].mxu0
      %v619 = vadd.f32 0.0, %v618
      %620 = vdwg.mxu0
      %621 = vmatprep.subr.bf16.mxu0 0
      %622 = vmatpush1.bf16.msra.mxu0 %v567
      %623 = vmatprep.subr.bf16.mxu0 0
      %624 = vmatpush1.bf16.msra.mxu0 0
      %625 = vmatprep.subr.bf16.mxu0 0
      %626 = vmatpush1.bf16.msra.mxu0 0
      %627 = vmatprep.subr.bf16.mxu0 0
      %628 = vmatpush1.bf16.msra.mxu0 0
      %629 = vmatprep.subr.bf16.mxu0 0
      %630 = vmatpush1.bf16.msra.mxu0 0
      %631 = vmatprep.subr.bf16.mxu0 0
      %632 = vmatpush1.bf16.msra.mxu0 0
      %633 = vmatprep.subr.bf16.mxu0 0
      %634 = vmatpush1.bf16.msra.mxu0 0
      %635 = vmatprep.subr.bf16.mxu0 0
      %636 = vmatpush1.bf16.msra.mxu0 0
      %637 = vmatprep.subr.bf16.mxu0 0
      %638 = vmatpush1.bf16.msra.mxu0 0
      %639 = vmatprep.subr.bf16.mxu0 0
      %640 = vmatpush1.bf16.msra.mxu0 0
      %641 = vmatprep.subr.bf16.mxu0 0
      %642 = vmatpush1.bf16.msra.mxu0 0
      %643 = vmatprep.subr.bf16.mxu0 0
      %644 = vmatpush1.bf16.msra.mxu0 0
      %645 = vmatprep.subr.bf16.mxu0 0
      %646 = vmatpush1.bf16.msra.mxu0 0
      %647 = vmatprep.subr.bf16.mxu0 0
      %648 = vmatpush1.bf16.msra.mxu0 0
      %649 = vmatprep.subr.bf16.mxu0 0
      %650 = vmatpush1.bf16.msra.mxu0 0
      %651 = vmatprep.subr.bf16.mxu0 0
      %652 = vmatpush1.bf16.msra.mxu0 0
      %653 = vmatprep.mubr.bf16.mxu0 0
      %654 = vmatmul.mubr.bf16.gmra.mrb[0].mxu0 %v576
      %v655 = vpop.f32.mrb[0].mxu0
      %v656 = vadd.f32 0.0, %v655
      %v657 = vpop.f32.mrb[0].mxu0
      %v658 = vpop.f32.mrb[0].mxu0
      %v659 = vadd.f32 0.0, %v658
      %v660 = vpop.f32.mrb[0].mxu0
      %661 = vdwg.mxu0
      %v664 = vunpack.c.l.b16 %v549
      %v665 = vunpack.c.l.b16 %v550
      %v666 = vpack.c.b16 %v665, %v664
      %v668 = vsel %vm574, %v666, 0
      %670 = vmatprep.subr.bf16.mxu0 %v547
      %671 = vmatpush1.bf16.msra.mxu0 %v546
      %672 = vmatprep.subr.bf16.mxu0 0
      %673 = vmatpush1.bf16.msra.mxu0 0
      %674 = vmatprep.subr.bf16.mxu0 0
      %675 = vmatpush1.bf16.msra.mxu0 0
      %676 = vmatprep.subr.bf16.mxu0 0
      %677 = vmatpush1.bf16.msra.mxu0 0
      %678 = vmatprep.subr.bf16.mxu0 0
      %679 = vmatpush1.bf16.msra.mxu0 0
      %680 = vmatprep.subr.bf16.mxu0 0
      %681 = vmatpush1.bf16.msra.mxu0 0
      %682 = vmatprep.subr.bf16.mxu0 0
      %683 = vmatpush1.bf16.msra.mxu0 0
      %684 = vmatprep.subr.bf16.mxu0 0
      %685 = vmatpush1.bf16.msra.mxu0 0
      %686 = vmatprep.subr.bf16.mxu0 0
      %687 = vmatpush1.bf16.msra.mxu0 0
      %688 = vmatprep.subr.bf16.mxu0 0
      %689 = vmatpush1.bf16.msra.mxu0 0
      %690 = vmatprep.subr.bf16.mxu0 0
      %691 = vmatpush1.bf16.msra.mxu0 0
      %692 = vmatprep.subr.bf16.mxu0 0
      %693 = vmatpush1.bf16.msra.mxu0 0
      %694 = vmatprep.subr.bf16.mxu0 0
      %695 = vmatpush1.bf16.msra.mxu0 0
      %696 = vmatprep.subr.bf16.mxu0 0
      %697 = vmatpush1.bf16.msra.mxu0 0
      %698 = vmatprep.subr.bf16.mxu0 0
      %699 = vmatpush1.bf16.msra.mxu0 0
      %700 = vmatprep.subr.bf16.mxu0 0
      %701 = vmatpush1.bf16.msra.mxu0 0
      %702 = vmatprep.mubr.bf16.mxu0 0
      %703 = vmatmul.mubr.bf16.gmra.mrb[0].mxu0 %v668
      %v704 = vpop.f32.mrb[0].mxu0
      %v705 = vadd.f32 %v613, %v704
      %v706 = vpop.f32.mrb[0].mxu0
      %v707 = vadd.f32 %v615, %v706
      %v708 = vpop.f32.mrb[0].mxu0
      %v709 = vadd.f32 %v617, %v708
      %v710 = vpop.f32.mrb[0].mxu0
      %v711 = vadd.f32 %v619, %v710
      %712 = vdwg.mxu0
      %713 = vmatprep.subr.bf16.mxu0 0
      %714 = vmatpush1.bf16.msra.mxu0 %v548
      %715 = vmatprep.subr.bf16.mxu0 0
      %716 = vmatpush1.bf16.msra.mxu0 0
      %717 = vmatprep.subr.bf16.mxu0 0
      %718 = vmatpush1.bf16.msra.mxu0 0
      %719 = vmatprep.subr.bf16.mxu0 0
      %720 = vmatpush1.bf16.msra.mxu0 0
      %721 = vmatprep.subr.bf16.mxu0 0
      %722 = vmatpush1.bf16.msra.mxu0 0
      %723 = vmatprep.subr.bf16.mxu0 0
      %724 = vmatpush1.bf16.msra.mxu0 0
      %725 = vmatprep.subr.bf16.mxu0 0
      %726 = vmatpush1.bf16.msra.mxu0 0
      %727 = vmatprep.subr.bf16.mxu0 0
      %728 = vmatpush1.bf16.msra.mxu0 0
      %729 = vmatprep.subr.bf16.mxu0 0
      %730 = vmatpush1.bf16.msra.mxu0 0
      %731 = vmatprep.subr.bf16.mxu0 0
      %732 = vmatpush1.bf16.msra.mxu0 0
      %733 = vmatprep.subr.bf16.mxu0 0
      %734 = vmatpush1.bf16.msra.mxu0 0
      %735 = vmatprep.subr.bf16.mxu0 0
      %736 = vmatpush1.bf16.msra.mxu0 0
      %737 = vmatprep.subr.bf16.mxu0 0
      %738 = vmatpush1.bf16.msra.mxu0 0
      %739 = vmatprep.subr.bf16.mxu0 0
      %740 = vmatpush1.bf16.msra.mxu0 0
      %741 = vmatprep.subr.bf16.mxu0 0
      %742 = vmatpush1.bf16.msra.mxu0 0
      %743 = vmatprep.subr.bf16.mxu0 0
      %744 = vmatpush1.bf16.msra.mxu0 0
      %745 = vmatprep.mubr.bf16.mxu0 0
      %746 = vmatmul.mubr.bf16.gmra.mrb[0].mxu0 %v668
      %v747 = vpop.f32.mrb[0].mxu0
      %v748 = vadd.f32 %v656, %v747
      %v749 = vpop.f32.mrb[0].mxu0
      %v750 = vpop.f32.mrb[0].mxu0
      %v751 = vadd.f32 %v659, %v750
      %v752 = vpop.f32.mrb[0].mxu0
      %753 = vdwg.mxu0
      %s754 = scalar_lea.vmem %s2, 16
      %v755 = vld [vmem:[%s754] sm:$0xf]
      %v756 = vld [vmem:[%s754 + $0x4] sm:$0xf]
      %v759 = vunpack.c.l.b16 %v755
      %v760 = vunpack.c.l.b16 %v756
      %v761 = vpack.c.b16 %v760, %v759
      %762 = vrot.lane.b32.xlu0 %v546, 126
      %v763 = vpop.permute.xlu0 %762
      %764 = vrot.lane.b32.xlu0 %v547, 126
      %v765 = vpop.permute.xlu0 %764
      %766 = vrot.lane.b32.xlu0 %v548, 126
      %v767 = vpop.permute.xlu0 %766
      %vm768 = vcmask 1031168
      %v769 = vsel %vm768, %v763, %v765
      %v770 = vsel %vm768, %v765, %v767
      %v775 = vsel %vm574, %v761, 0
      %777 = vmatprep.subr.bf16.mxu0 %v770
      %778 = vmatpush1.bf16.msra.mxu0 %v769
      %779 = vmatprep.subr.bf16.mxu0 0
      %780 = vmatpush1.bf16.msra.mxu0 0
      %781 = vmatprep.subr.bf16.mxu0 0
      %782 = vmatpush1.bf16.msra.mxu0 0
      %783 = vmatprep.subr.bf16.mxu0 0
      %784 = vmatpush1.bf16.msra.mxu0 0
      %785 = vmatprep.subr.bf16.mxu0 0
      %786 = vmatpush1.bf16.msra.mxu0 0
      %787 = vmatprep.subr.bf16.mxu0 0
      %788 = vmatpush1.bf16.msra.mxu0 0
      %789 = vmatprep.subr.bf16.mxu0 0
      %790 = vmatpush1.bf16.msra.mxu0 0
      %791 = vmatprep.subr.bf16.mxu0 0
      %792 = vmatpush1.bf16.msra.mxu0 0
      %793 = vmatprep.subr.bf16.mxu0 0
      %794 = vmatpush1.bf16.msra.mxu0 0
      %795 = vmatprep.subr.bf16.mxu0 0
      %796 = vmatpush1.bf16.msra.mxu0 0
      %797 = vmatprep.subr.bf16.mxu0 0
      %798 = vmatpush1.bf16.msra.mxu0 0
      %799 = vmatprep.subr.bf16.mxu0 0
      %800 = vmatpush1.bf16.msra.mxu0 0
      %801 = vmatprep.subr.bf16.mxu0 0
      %802 = vmatpush1.bf16.msra.mxu0 0
      %803 = vmatprep.subr.bf16.mxu0 0
      %804 = vmatpush1.bf16.msra.mxu0 0
      %805 = vmatprep.subr.bf16.mxu0 0
      %806 = vmatpush1.bf16.msra.mxu0 0
      %807 = vmatprep.subr.bf16.mxu0 0
      %808 = vmatpush1.bf16.msra.mxu0 0
      %809 = vmatprep.mubr.bf16.mxu0 0
      %810 = vmatmul.mubr.bf16.gmra.mrb[0].mxu0 %v775
      %v811 = vpop.f32.mrb[0].mxu0
      %v812 = vadd.f32 0.0, %v811
      %v813 = vpop.f32.mrb[0].mxu0
      %v814 = vadd.f32 0.0, %v813
      %v815 = vpop.f32.mrb[0].mxu0
      %v816 = vadd.f32 0.0, %v815
      %v817 = vpop.f32.mrb[0].mxu0
      %v818 = vadd.f32 0.0, %v817
      %819 = vdwg.mxu0
      %820 = vmatprep.subr.bf16.mxu0 0
      %821 = vmatpush1.bf16.msra.mxu0 %v767
      %822 = vmatprep.subr.bf16.mxu0 0
      %823 = vmatpush1.bf16.msra.mxu0 0
      %824 = vmatprep.subr.bf16.mxu0 0
      %825 = vmatpush1.bf16.msra.mxu0 0
      %826 = vmatprep.subr.bf16.mxu0 0
      %827 = vmatpush1.bf16.msra.mxu0 0
      %828 = vmatprep.subr.bf16.mxu0 0
      %829 = vmatpush1.bf16.msra.mxu0 0
      %830 = vmatprep.subr.bf16.mxu0 0
      %831 = vmatpush1.bf16.msra.mxu0 0
      %832 = vmatprep.subr.bf16.mxu0 0
      %833 = vmatpush1.bf16.msra.mxu0 0
      %834 = vmatprep.subr.bf16.mxu0 0
      %835 = vmatpush1.bf16.msra.mxu0 0
      %836 = vmatprep.subr.bf16.mxu0 0
      %837 = vmatpush1.bf16.msra.mxu0 0
      %838 = vmatprep.subr.bf16.mxu0 0
      %839 = vmatpush1.bf16.msra.mxu0 0
      %840 = vmatprep.subr.bf16.mxu0 0
      %841 = vmatpush1.bf16.msra.mxu0 0
      %842 = vmatprep.subr.bf16.mxu0 0
      %843 = vmatpush1.bf16.msra.mxu0 0
      %844 = vmatprep.subr.bf16.mxu0 0
      %845 = vmatpush1.bf16.msra.mxu0 0
      %846 = vmatprep.subr.bf16.mxu0 0
      %847 = vmatpush1.bf16.msra.mxu0 0
      %848 = vmatprep.subr.bf16.mxu0 0
      %849 = vmatpush1.bf16.msra.mxu0 0
      %850 = vmatprep.subr.bf16.mxu0 0
      %851 = vmatpush1.bf16.msra.mxu0 0
      %852 = vmatprep.mubr.bf16.mxu0 0
      %853 = vmatmul.mubr.bf16.gmra.mrb[0].mxu0 %v775
      %v854 = vpop.f32.mrb[0].mxu0
      %v855 = vadd.f32 0.0, %v854
      %v856 = vpop.f32.mrb[0].mxu0
      %v857 = vpop.f32.mrb[0].mxu0
      %v858 = vadd.f32 0.0, %v857
      %v859 = vpop.f32.mrb[0].mxu0
      %860 = vdwg.mxu0
      %v861 = vadd.f32 %v705, %v812
      %v862 = vadd.f32 %v707, %v814
      %v863 = vadd.f32 %v748, %v855
      %v864 = vadd.f32 %v709, %v816
      %v865 = vadd.f32 %v711, %v818
      %v866 = vadd.f32 %v751, %v858
      %s867 = scalar_lea.vmem %s2, 24
      %v868 = vld [vmem:[%s867] sm:$0xf]
      %v869 = vld [vmem:[%s867 + $0x4] sm:$0xf]
      %v872 = vunpack.c.l.b16 %v868
      %v873 = vunpack.c.l.b16 %v869
      %v874 = vpack.c.b16 %v873, %v872
      %875 = vrot.lane.b32.xlu0 %v546, 110
      %v876 = vpop.permute.xlu0 %875
      %877 = vrot.lane.b32.xlu0 %v547, 110
      %v878 = vpop.permute.xlu0 %877
      %879 = vrot.lane.b32.xlu0 %v548, 110
      %v880 = vpop.permute.xlu0 %879
      %vm881 = vcmask 900096
      %v882 = vsel %vm881, %v876, %v878
      %v883 = vsel %vm881, %v878, %v880
      %v888 = vsel %vm574, %v874, 0
      %890 = vmatprep.subr.bf16.mxu0 %v883
      %891 = vmatpush1.bf16.msra.mxu0 %v882
      %892 = vmatprep.subr.bf16.mxu0 0
      %893 = vmatpush1.bf16.msra.mxu0 0
      %894 = vmatprep.subr.bf16.mxu0 0
      %895 = vmatpush1.bf16.msra.mxu0 0
      %896 = vmatprep.subr.bf16.mxu0 0
      %897 = vmatpush1.bf16.msra.mxu0 0
      %898 = vmatprep.subr.bf16.mxu0 0
      %899 = vmatpush1.bf16.msra.mxu0 0
      %900 = vmatprep.subr.bf16.mxu0 0
      %901 = vmatpush1.bf16.msra.mxu0 0
      %902 = vmatprep.subr.bf16.mxu0 0
      %903 = vmatpush1.bf16.msra.mxu0 0
      %904 = vmatprep.subr.bf16.mxu0 0
      %905 = vmatpush1.bf16.msra.mxu0 0
      %906 = vmatprep.subr.bf16.mxu0 0
      %907 = vmatpush1.bf16.msra.mxu0 0
      %908 = vmatprep.subr.bf16.mxu0 0
      %909 = vmatpush1.bf16.msra.mxu0 0
      %910 = vmatprep.subr.bf16.mxu0 0
      %911 = vmatpush1.bf16.msra.mxu0 0
      %912 = vmatprep.subr.bf16.mxu0 0
      %913 = vmatpush1.bf16.msra.mxu0 0
      %914 = vmatprep.subr.bf16.mxu0 0
      %915 = vmatpush1.bf16.msra.mxu0 0
      %916 = vmatprep.subr.bf16.mxu0 0
      %917 = vmatpush1.bf16.msra.mxu0 0
      %918 = vmatprep.subr.bf16.mxu0 0
      %919 = vmatpush1.bf16.msra.mxu0 0
      %920 = vmatprep.subr.bf16.mxu0 0
      %921 = vmatpush1.bf16.msra.mxu0 0
      %922 = vmatprep.mubr.bf16.mxu0 0
      %923 = vmatmul.mubr.bf16.gmra.mrb[0].mxu0 %v888
      %v924 = vpop.f32.mrb[0].mxu0
      %v925 = vadd.f32 0.0, %v924
      %v926 = vpop.f32.mrb[0].mxu0
      %v927 = vadd.f32 0.0, %v926
      %v928 = vpop.f32.mrb[0].mxu0
      %v929 = vadd.f32 0.0, %v928
      %v930 = vpop.f32.mrb[0].mxu0
      %v931 = vadd.f32 0.0, %v930
      %932 = vdwg.mxu0
      %933 = vmatprep.subr.bf16.mxu0 0
      %934 = vmatpush1.bf16.msra.mxu0 %v880
      %935 = vmatprep.subr.bf16.mxu0 0
      %936 = vmatpush1.bf16.msra.mxu0 0
      %937 = vmatprep.subr.bf16.mxu0 0
      %938 = vmatpush1.bf16.msra.mxu0 0
      %939 = vmatprep.subr.bf16.mxu0 0
      %940 = vmatpush1.bf16.msra.mxu0 0
      %941 = vmatprep.subr.bf16.mxu0 0
      %942 = vmatpush1.bf16.msra.mxu0 0
      %943 = vmatprep.subr.bf16.mxu0 0
      %944 = vmatpush1.bf16.msra.mxu0 0
      %945 = vmatprep.subr.bf16.mxu0 0
      %946 = vmatpush1.bf16.msra.mxu0 0
      %947 = vmatprep.subr.bf16.mxu0 0
      %948 = vmatpush1.bf16.msra.mxu0 0
      %949 = vmatprep.subr.bf16.mxu0 0
      %950 = vmatpush1.bf16.msra.mxu0 0
      %951 = vmatprep.subr.bf16.mxu0 0
      %952 = vmatpush1.bf16.msra.mxu0 0
      %953 = vmatprep.subr.bf16.mxu0 0
      %954 = vmatpush1.bf16.msra.mxu0 0
      %955 = vmatprep.subr.bf16.mxu0 0
      %956 = vmatpush1.bf16.msra.mxu0 0
      %957 = vmatprep.subr.bf16.mxu0 0
      %958 = vmatpush1.bf16.msra.mxu0 0
      %959 = vmatprep.subr.bf16.mxu0 0
      %960 = vmatpush1.bf16.msra.mxu0 0
      %961 = vmatprep.subr.bf16.mxu0 0
      %962 = vmatpush1.bf16.msra.mxu0 0
      %963 = vmatprep.subr.bf16.mxu0 0
      %964 = vmatpush1.bf16.msra.mxu0 0
      %965 = vmatprep.mubr.bf16.mxu0 0
      %966 = vmatmul.mubr.bf16.gmra.mrb[0].mxu0 %v888
      %v967 = vpop.f32.mrb[0].mxu0
      %v968 = vadd.f32 0.0, %v967
      %v969 = vpop.f32.mrb[0].mxu0
      %v970 = vpop.f32.mrb[0].mxu0
      %v971 = vadd.f32 0.0, %v970
      %v972 = vpop.f32.mrb[0].mxu0
      %973 = vdwg.mxu0
      %v974 = vadd.f32 %v861, %v925
      %v975 = vadd.f32 %v862, %v927
      %v976 = vadd.f32 %v863, %v968
      %v977 = vadd.f32 %v864, %v929
      %v978 = vadd.f32 %v865, %v931
      %v979 = vadd.f32 %v866, %v971
      %s980 = scalar_lea.vmem %s2, 32
      %v981 = vld [vmem:[%s980] sm:$0xf]
      %v982 = vld [vmem:[%s980 + $0x4] sm:$0xf]
      %v985 = vunpack.c.l.b16 %v981
      %v986 = vunpack.c.l.b16 %v982
      %v987 = vpack.c.b16 %v986, %v985
      %988 = vrot.lane.b32.xlu0 %v546, 109
      %v989 = vpop.permute.xlu0 %988
      %990 = vrot.lane.b32.xlu0 %v547, 109
      %v991 = vpop.permute.xlu0 %990
      %992 = vrot.lane.b32.xlu0 %v548, 109
      %v993 = vpop.permute.xlu0 %992
      %vm994 = vcmask 891904
      %v995 = vsel %vm994, %v989, %v991
      %v996 = vsel %vm994, %v991, %v993
      %v1001 = vsel %vm574, %v987, 0
      %1003 = vmatprep.subr.bf16.mxu0 %v996
      %1004 = vmatpush1.bf16.msra.mxu0 %v995
      %1005 = vmatprep.subr.bf16.mxu0 0
      %1006 = vmatpush1.bf16.msra.mxu0 0
      %1007 = vmatprep.subr.bf16.mxu0 0
      %1008 = vmatpush1.bf16.msra.mxu0 0
      %1009 = vmatprep.subr.bf16.mxu0 0
      %1010 = vmatpush1.bf16.msra.mxu0 0
      %1011 = vmatprep.subr.bf16.mxu0 0
      %1012 = vmatpush1.bf16.msra.mxu0 0
      %1013 = vmatprep.subr.bf16.mxu0 0
      %1014 = vmatpush1.bf16.msra.mxu0 0
      %1015 = vmatprep.subr.bf16.mxu0 0
      %1016 = vmatpush1.bf16.msra.mxu0 0
      %1017 = vmatprep.subr.bf16.mxu0 0
      %1018 = vmatpush1.bf16.msra.mxu0 0
      %1019 = vmatprep.subr.bf16.mxu0 0
      %1020 = vmatpush1.bf16.msra.mxu0 0
      %1021 = vmatprep.subr.bf16.mxu0 0
      %1022 = vmatpush1.bf16.msra.mxu0 0
      %1023 = vmatprep.subr.bf16.mxu0 0
      %1024 = vmatpush1.bf16.msra.mxu0 0
      %1025 = vmatprep.subr.bf16.mxu0 0
      %1026 = vmatpush1.bf16.msra.mxu0 0
      %1027 = vmatprep.subr.bf16.mxu0 0
      %1028 = vmatpush1.bf16.msra.mxu0 0
      %1029 = vmatprep.subr.bf16.mxu0 0
      %1030 = vmatpush1.bf16.msra.mxu0 0
      %1031 = vmatprep.subr.bf16.mxu0 0
      %1032 = vmatpush1.bf16.msra.mxu0 0
      %1033 = vmatprep.subr.bf16.mxu0 0
      %1034 = vmatpush1.bf16.msra.mxu0 0
      %1035 = vmatprep.mubr.bf16.mxu0 0
      %1036 = vmatmul.mubr.bf16.gmra.mrb[0].mxu0 %v1001
      %v1037 = vpop.f32.mrb[0].mxu0
      %v1038 = vadd.f32 0.0, %v1037
      %v1039 = vpop.f32.mrb[0].mxu0
      %v1040 = vadd.f32 0.0, %v1039
      %v1041 = vpop.f32.mrb[0].mxu0
      %v1042 = vadd.f32 0.0, %v1041
      %v1043 = vpop.f32.mrb[0].mxu0
      %v1044 = vadd.f32 0.0, %v1043
      %1045 = vdwg.mxu0
      %1046 = vmatprep.subr.bf16.mxu0 0
      %1047 = vmatpush1.bf16.msra.mxu0 %v993
      %1048 = vmatprep.subr.bf16.mxu0 0
      %1049 = vmatpush1.bf16.msra.mxu0 0
      %1050 = vmatprep.subr.bf16.mxu0 0
      %1051 = vmatpush1.bf16.msra.mxu0 0
      %1052 = vmatprep.subr.bf16.mxu0 0
      %1053 = vmatpush1.bf16.msra.mxu0 0
      %1054 = vmatprep.subr.bf16.mxu0 0
      %1055 = vmatpush1.bf16.msra.mxu0 0
      %1056 = vmatprep.subr.bf16.mxu0 0
      %1057 = vmatpush1.bf16.msra.mxu0 0
      %1058 = vmatprep.subr.bf16.mxu0 0
      %1059 = vmatpush1.bf16.msra.mxu0 0
      %1060 = vmatprep.subr.bf16.mxu0 0
      %1061 = vmatpush1.bf16.msra.mxu0 0
      %1062 = vmatprep.subr.bf16.mxu0 0
      %1063 = vmatpush1.bf16.msra.mxu0 0
      %1064 = vmatprep.subr.bf16.mxu0 0
      %1065 = vmatpush1.bf16.msra.mxu0 0
      %1066 = vmatprep.subr.bf16.mxu0 0
      %1067 = vmatpush1.bf16.msra.mxu0 0
      %1068 = vmatprep.subr.bf16.mxu0 0
      %1069 = vmatpush1.bf16.msra.mxu0 0
      %1070 = vmatprep.subr.bf16.mxu0 0
      %1071 = vmatpush1.bf16.msra.mxu0 0
      %1072 = vmatprep.subr.bf16.mxu0 0
      %1073 = vmatpush1.bf16.msra.mxu0 0
      %1074 = vmatprep.subr.bf16.mxu0 0
      %1075 = vmatpush1.bf16.msra.mxu0 0
      %1076 = vmatprep.subr.bf16.mxu0 0
      %1077 = vmatpush1.bf16.msra.mxu0 0
      %1078 = vmatprep.mubr.bf16.mxu0 0
      %1079 = vmatmul.mubr.bf16.gmra.mrb[0].mxu0 %v1001
      %v1080 = vpop.f32.mrb[0].mxu0
      %v1081 = vadd.f32 0.0, %v1080
      %v1082 = vpop.f32.mrb[0].mxu0
      %v1083 = vpop.f32.mrb[0].mxu0
      %v1084 = vadd.f32 0.0, %v1083
      %v1085 = vpop.f32.mrb[0].mxu0
      %1086 = vdwg.mxu0
      %v1087 = vadd.f32 %v974, %v1038
      %v1088 = vadd.f32 %v975, %v1040
      %v1089 = vadd.f32 %v976, %v1081
      %v1090 = vadd.f32 %v977, %v1042
      %v1091 = vadd.f32 %v978, %v1044
      %v1092 = vadd.f32 %v979, %v1084
      %s1093 = scalar_lea.vmem %s2, 40
      %v1094 = vld [vmem:[%s1093] sm:$0xf]
      %v1095 = vld [vmem:[%s1093 + $0x4] sm:$0xf]
      %v1098 = vunpack.c.l.b16 %v1094
      %v1099 = vunpack.c.l.b16 %v1095
      %v1100 = vpack.c.b16 %v1099, %v1098
      %1101 = vrot.lane.b32.xlu0 %v546, 108
      %v1102 = vpop.permute.xlu0 %1101
      %1103 = vrot.lane.b32.xlu0 %v547, 108
      %v1104 = vpop.permute.xlu0 %1103
      %1105 = vrot.lane.b32.xlu0 %v548, 108
      %v1106 = vpop.permute.xlu0 %1105
      %vm1107 = vcmask 883712
      %v1108 = vsel %vm1107, %v1102, %v1104
      %v1109 = vsel %vm1107, %v1104, %v1106
      %v1114 = vsel %vm574, %v1100, 0
      %1116 = vmatprep.subr.bf16.mxu0 %v1109
      %1117 = vmatpush1.bf16.msra.mxu0 %v1108
      %1118 = vmatprep.subr.bf16.mxu0 0
      %1119 = vmatpush1.bf16.msra.mxu0 0
      %1120 = vmatprep.subr.bf16.mxu0 0
      %1121 = vmatpush1.bf16.msra.mxu0 0
      %1122 = vmatprep.subr.bf16.mxu0 0
      %1123 = vmatpush1.bf16.msra.mxu0 0
      %1124 = vmatprep.subr.bf16.mxu0 0
      %1125 = vmatpush1.bf16.msra.mxu0 0
      %1126 = vmatprep.subr.bf16.mxu0 0
      %1127 = vmatpush1.bf16.msra.mxu0 0
      %1128 = vmatprep.subr.bf16.mxu0 0
      %1129 = vmatpush1.bf16.msra.mxu0 0
      %1130 = vmatprep.subr.bf16.mxu0 0
      %1131 = vmatpush1.bf16.msra.mxu0 0
      %1132 = vmatprep.subr.bf16.mxu0 0
      %1133 = vmatpush1.bf16.msra.mxu0 0
      %1134 = vmatprep.subr.bf16.mxu0 0
      %1135 = vmatpush1.bf16.msra.mxu0 0
      %1136 = vmatprep.subr.bf16.mxu0 0
      %1137 = vmatpush1.bf16.msra.mxu0 0
      %1138 = vmatprep.subr.bf16.mxu0 0
      %1139 = vmatpush1.bf16.msra.mxu0 0
      %1140 = vmatprep.subr.bf16.mxu0 0
      %1141 = vmatpush1.bf16.msra.mxu0 0
      %1142 = vmatprep.subr.bf16.mxu0 0
      %1143 = vmatpush1.bf16.msra.mxu0 0
      %1144 = vmatprep.subr.bf16.mxu0 0
      %1145 = vmatpush1.bf16.msra.mxu0 0
      %1146 = vmatprep.subr.bf16.mxu0 0
      %1147 = vmatpush1.bf16.msra.mxu0 0
      %1148 = vmatprep.mubr.bf16.mxu0 0
      %1149 = vmatmul.mubr.bf16.gmra.mrb[0].mxu0 %v1114
      %v1150 = vpop.f32.mrb[0].mxu0
      %v1151 = vadd.f32 0.0, %v1150
      %v1152 = vpop.f32.mrb[0].mxu0
      %v1153 = vadd.f32 0.0, %v1152
      %v1154 = vpop.f32.mrb[0].mxu0
      %v1155 = vadd.f32 0.0, %v1154
      %v1156 = vpop.f32.mrb[0].mxu0
      %v1157 = vadd.f32 0.0, %v1156
      %1158 = vdwg.mxu0
      %1159 = vmatprep.subr.bf16.mxu0 0
      %1160 = vmatpush1.bf16.msra.mxu0 %v1106
      %1161 = vmatprep.subr.bf16.mxu0 0
      %1162 = vmatpush1.bf16.msra.mxu0 0
      %1163 = vmatprep.subr.bf16.mxu0 0
      %1164 = vmatpush1.bf16.msra.mxu0 0
      %1165 = vmatprep.subr.bf16.mxu0 0
      %1166 = vmatpush1.bf16.msra.mxu0 0
      %1167 = vmatprep.subr.bf16.mxu0 0
      %1168 = vmatpush1.bf16.msra.mxu0 0
      %1169 = vmatprep.subr.bf16.mxu0 0
      %1170 = vmatpush1.bf16.msra.mxu0 0
      %1171 = vmatprep.subr.bf16.mxu0 0
      %1172 = vmatpush1.bf16.msra.mxu0 0
      %1173 = vmatprep.subr.bf16.mxu0 0
      %1174 = vmatpush1.bf16.msra.mxu0 0
      %1175 = vmatprep.subr.bf16.mxu0 0
      %1176 = vmatpush1.bf16.msra.mxu0 0
      %1177 = vmatprep.subr.bf16.mxu0 0
      %1178 = vmatpush1.bf16.msra.mxu0 0
      %1179 = vmatprep.subr.bf16.mxu0 0
      %1180 = vmatpush1.bf16.msra.mxu0 0
      %1181 = vmatprep.subr.bf16.mxu0 0
      %1182 = vmatpush1.bf16.msra.mxu0 0
      %1183 = vmatprep.subr.bf16.mxu0 0
      %1184 = vmatpush1.bf16.msra.mxu0 0
      %1185 = vmatprep.subr.bf16.mxu0 0
      %1186 = vmatpush1.bf16.msra.mxu0 0
      %1187 = vmatprep.subr.bf16.mxu0 0
      %1188 = vmatpush1.bf16.msra.mxu0 0
      %1189 = vmatprep.subr.bf16.mxu0 0
      %1190 = vmatpush1.bf16.msra.mxu0 0
      %1191 = vmatprep.mubr.bf16.mxu0 0
      %1192 = vmatmul.mubr.bf16.gmra.mrb[0].mxu0 %v1114
      %v1193 = vpop.f32.mrb[0].mxu0
      %v1194 = vadd.f32 0.0, %v1193
      %v1195 = vpop.f32.mrb[0].mxu0
      %v1196 = vpop.f32.mrb[0].mxu0
      %v1197 = vadd.f32 0.0, %v1196
      %v1198 = vpop.f32.mrb[0].mxu0
      %1199 = vdwg.mxu0
      %v1200 = vadd.f32 %v1087, %v1151
      %v1201 = vadd.f32 %v1088, %v1153
      %v1202 = vadd.f32 %v1089, %v1194
      %v1203 = vadd.f32 %v1090, %v1155
      %v1204 = vadd.f32 %v1091, %v1157
      %v1205 = vadd.f32 %v1092, %v1197
      %s1206 = scalar_lea.vmem %s2, 48
      %v1207 = vld [vmem:[%s1206] sm:$0xf]
      %v1208 = vld [vmem:[%s1206 + $0x4] sm:$0xf]
      %v1211 = vunpack.c.l.b16 %v1207
      %v1212 = vunpack.c.l.b16 %v1208
      %v1213 = vpack.c.b16 %v1212, %v1211
      %1214 = vrot.lane.b32.xlu0 %v546, 92
      %v1215 = vpop.permute.xlu0 %1214
      %1216 = vrot.lane.b32.xlu0 %v547, 92
      %v1217 = vpop.permute.xlu0 %1216
      %1218 = vrot.lane.b32.xlu0 %v548, 92
      %v1219 = vpop.permute.xlu0 %1218
      %vm1220 = vcmask 752640
      %v1221 = vsel %vm1220, %v1215, %v1217
      %v1222 = vsel %vm1220, %v1217, %v1219
      %v1227 = vsel %vm574, %v1213, 0
      %1229 = vmatprep.subr.bf16.mxu0 %v1222
      %1230 = vmatpush1.bf16.msra.mxu0 %v1221
      %1231 = vmatprep.subr.bf16.mxu0 0
      %1232 = vmatpush1.bf16.msra.mxu0 0
      %1233 = vmatprep.subr.bf16.mxu0 0
      %1234 = vmatpush1.bf16.msra.mxu0 0
      %1235 = vmatprep.subr.bf16.mxu0 0
      %1236 = vmatpush1.bf16.msra.mxu0 0
      %1237 = vmatprep.subr.bf16.mxu0 0
      %1238 = vmatpush1.bf16.msra.mxu0 0
      %1239 = vmatprep.subr.bf16.mxu0 0
      %1240 = vmatpush1.bf16.msra.mxu0 0
      %1241 = vmatprep.subr.bf16.mxu0 0
      %1242 = vmatpush1.bf16.msra.mxu0 0
      %1243 = vmatprep.subr.bf16.mxu0 0
      %1244 = vmatpush1.bf16.msra.mxu0 0
      %1245 = vmatprep.subr.bf16.mxu0 0
      %1246 = vmatpush1.bf16.msra.mxu0 0
      %1247 = vmatprep.subr.bf16.mxu0 0
      %1248 = vmatpush1.bf16.msra.mxu0 0
      %1249 = vmatprep.subr.bf16.mxu0 0
      %1250 = vmatpush1.bf16.msra.mxu0 0
      %1251 = vmatprep.subr.bf16.mxu0 0
      %1252 = vmatpush1.bf16.msra.mxu0 0
      %1253 = vmatprep.subr.bf16.mxu0 0
      %1254 = vmatpush1.bf16.msra.mxu0 0
      %1255 = vmatprep.subr.bf16.mxu0 0
      %1256 = vmatpush1.bf16.msra.mxu0 0
      %1257 = vmatprep.subr.bf16.mxu0 0
      %1258 = vmatpush1.bf16.msra.mxu0 0
      %1259 = vmatprep.subr.bf16.mxu0 0
      %1260 = vmatpush1.bf16.msra.mxu0 0
      %1261 = vmatprep.mubr.bf16.mxu0 0
      %1262 = vmatmul.mubr.bf16.gmra.mrb[0].mxu0 %v1227
      %v1263 = vpop.f32.mrb[0].mxu0
      %v1264 = vadd.f32 0.0, %v1263
      %v1265 = vpop.f32.mrb[0].mxu0
      %v1266 = vadd.f32 0.0, %v1265
      %v1267 = vpop.f32.mrb[0].mxu0
      %v1268 = vadd.f32 0.0, %v1267
      %v1269 = vpop.f32.mrb[0].mxu0
      %v1270 = vadd.f32 0.0, %v1269
      %1271 = vdwg.mxu0
      %1272 = vmatprep.subr.bf16.mxu0 0
      %1273 = vmatpush1.bf16.msra.mxu0 %v1219
      %1274 = vmatprep.subr.bf16.mxu0 0
      %1275 = vmatpush1.bf16.msra.mxu0 0
      %1276 = vmatprep.subr.bf16.mxu0 0
      %1277 = vmatpush1.bf16.msra.mxu0 0
      %1278 = vmatprep.subr.bf16.mxu0 0
      %1279 = vmatpush1.bf16.msra.mxu0 0
      %1280 = vmatprep.subr.bf16.mxu0 0
      %1281 = vmatpush1.bf16.msra.mxu0 0
      %1282 = vmatprep.subr.bf16.mxu0 0
      %1283 = vmatpush1.bf16.msra.mxu0 0
      %1284 = vmatprep.subr.bf16.mxu0 0
      %1285 = vmatpush1.bf16.msra.mxu0 0
      %1286 = vmatprep.subr.bf16.mxu0 0
      %1287 = vmatpush1.bf16.msra.mxu0 0
      %1288 = vmatprep.subr.bf16.mxu0 0
      %1289 = vmatpush1.bf16.msra.mxu0 0
      %1290 = vmatprep.subr.bf16.mxu0 0
      %1291 = vmatpush1.bf16.msra.mxu0 0
      %1292 = vmatprep.subr.bf16.mxu0 0
      %1293 = vmatpush1.bf16.msra.mxu0 0
      %1294 = vmatprep.subr.bf16.mxu0 0
      %1295 = vmatpush1.bf16.msra.mxu0 0
      %1296 = vmatprep.subr.bf16.mxu0 0
      %1297 = vmatpush1.bf16.msra.mxu0 0
      %1298 = vmatprep.subr.bf16.mxu0 0
      %1299 = vmatpush1.bf16.msra.mxu0 0
      %1300 = vmatprep.subr.bf16.mxu0 0
      %1301 = vmatpush1.bf16.msra.mxu0 0
      %1302 = vmatprep.subr.bf16.mxu0 0
      %1303 = vmatpush1.bf16.msra.mxu0 0
      %1304 = vmatprep.mubr.bf16.mxu0 0
      %1305 = vmatmul.mubr.bf16.gmra.mrb[0].mxu0 %v1227
      %v1306 = vpop.f32.mrb[0].mxu0
      %v1307 = vadd.f32 0.0, %v1306
      %v1308 = vpop.f32.mrb[0].mxu0
      %v1309 = vpop.f32.mrb[0].mxu0
      %v1310 = vadd.f32 0.0, %v1309
      %v1311 = vpop.f32.mrb[0].mxu0
      %1312 = vdwg.mxu0
      %v1313 = vadd.f32 %v1200, %v1264
      %v1314 = vadd.f32 %v1201, %v1266
      %v1315 = vadd.f32 %v1202, %v1307
      %v1316 = vadd.f32 %v1203, %v1268
      %v1317 = vadd.f32 %v1204, %v1270
      %v1318 = vadd.f32 %v1205, %v1310
      %s1319 = scalar_lea.vmem %s2, 56
      %v1320 = vld [vmem:[%s1319] sm:$0xf]
      %v1321 = vld [vmem:[%s1319 + $0x4] sm:$0xf]
      %v1324 = vunpack.c.l.b16 %v1320
      %v1325 = vunpack.c.l.b16 %v1321
      %v1326 = vpack.c.b16 %v1325, %v1324
      %1327 = vrot.lane.b32.xlu0 %v546, 91
      %v1328 = vpop.permute.xlu0 %1327
      %1329 = vrot.lane.b32.xlu0 %v547, 91
      %v1330 = vpop.permute.xlu0 %1329
      %1331 = vrot.lane.b32.xlu0 %v548, 91
      %v1332 = vpop.permute.xlu0 %1331
      %vm1333 = vcmask 744448
      %v1334 = vsel %vm1333, %v1328, %v1330
      %v1335 = vsel %vm1333, %v1330, %v1332
      %v1340 = vsel %vm574, %v1326, 0
      %1342 = vmatprep.subr.bf16.mxu0 %v1335
      %1343 = vmatpush1.bf16.msra.mxu0 %v1334
      %1344 = vmatprep.subr.bf16.mxu0 0
      %1345 = vmatpush1.bf16.msra.mxu0 0
      %1346 = vmatprep.subr.bf16.mxu0 0
      %1347 = vmatpush1.bf16.msra.mxu0 0
      %1348 = vmatprep.subr.bf16.mxu0 0
      %1349 = vmatpush1.bf16.msra.mxu0 0
      %1350 = vmatprep.subr.bf16.mxu0 0
      %1351 = vmatpush1.bf16.msra.mxu0 0
      %1352 = vmatprep.subr.bf16.mxu0 0
      %1353 = vmatpush1.bf16.msra.mxu0 0
      %1354 = vmatprep.subr.bf16.mxu0 0
      %1355 = vmatpush1.bf16.msra.mxu0 0
      %1356 = vmatprep.subr.bf16.mxu0 0
      %1357 = vmatpush1.bf16.msra.mxu0 0
      %1358 = vmatprep.subr.bf16.mxu0 0
      %1359 = vmatpush1.bf16.msra.mxu0 0
      %1360 = vmatprep.subr.bf16.mxu0 0
      %1361 = vmatpush1.bf16.msra.mxu0 0
      %1362 = vmatprep.subr.bf16.mxu0 0
      %1363 = vmatpush1.bf16.msra.mxu0 0
      %1364 = vmatprep.subr.bf16.mxu0 0
      %1365 = vmatpush1.bf16.msra.mxu0 0
      %1366 = vmatprep.subr.bf16.mxu0 0
      %1367 = vmatpush1.bf16.msra.mxu0 0
      %1368 = vmatprep.subr.bf16.mxu0 0
      %1369 = vmatpush1.bf16.msra.mxu0 0
      %1370 = vmatprep.subr.bf16.mxu0 0
      %1371 = vmatpush1.bf16.msra.mxu0 0
      %1372 = vmatprep.subr.bf16.mxu0 0
      %1373 = vmatpush1.bf16.msra.mxu0 0
      %1374 = vmatprep.mubr.bf16.mxu0 0
      %1375 = vmatmul.mubr.bf16.gmra.mrb[0].mxu0 %v1340
      %v1376 = vpop.f32.mrb[0].mxu0
      %v1377 = vadd.f32 0.0, %v1376
      %v1378 = vpop.f32.mrb[0].mxu0
      %v1379 = vadd.f32 0.0, %v1378
      %v1380 = vpop.f32.mrb[0].mxu0
      %v1381 = vadd.f32 0.0, %v1380
      %v1382 = vpop.f32.mrb[0].mxu0
      %v1383 = vadd.f32 0.0, %v1382
      %1384 = vdwg.mxu0
      %1385 = vmatprep.subr.bf16.mxu0 0
      %1386 = vmatpush1.bf16.msra.mxu0 %v1332
      %1387 = vmatprep.subr.bf16.mxu0 0
      %1388 = vmatpush1.bf16.msra.mxu0 0
      %1389 = vmatprep.subr.bf16.mxu0 0
      %1390 = vmatpush1.bf16.msra.mxu0 0
      %1391 = vmatprep.subr.bf16.mxu0 0
      %1392 = vmatpush1.bf16.msra.mxu0 0
      %1393 = vmatprep.subr.bf16.mxu0 0
      %1394 = vmatpush1.bf16.msra.mxu0 0
      %1395 = vmatprep.subr.bf16.mxu0 0
      %1396 = vmatpush1.bf16.msra.mxu0 0
      %1397 = vmatprep.subr.bf16.mxu0 0
      %1398 = vmatpush1.bf16.msra.mxu0 0
      %1399 = vmatprep.subr.bf16.mxu0 0
      %1400 = vmatpush1.bf16.msra.mxu0 0
      %1401 = vmatprep.subr.bf16.mxu0 0
      %1402 = vmatpush1.bf16.msra.mxu0 0
      %1403 = vmatprep.subr.bf16.mxu0 0
      %1404 = vmatpush1.bf16.msra.mxu0 0
      %1405 = vmatprep.subr.bf16.mxu0 0
      %1406 = vmatpush1.bf16.msra.mxu0 0
      %1407 = vmatprep.subr.bf16.mxu0 0
      %1408 = vmatpush1.bf16.msra.mxu0 0
      %1409 = vmatprep.subr.bf16.mxu0 0
      %1410 = vmatpush1.bf16.msra.mxu0 0
      %1411 = vmatprep.subr.bf16.mxu0 0
      %1412 = vmatpush1.bf16.msra.mxu0 0
      %1413 = vmatprep.subr.bf16.mxu0 0
      %1414 = vmatpush1.bf16.msra.mxu0 0
      %1415 = vmatprep.subr.bf16.mxu0 0
      %1416 = vmatpush1.bf16.msra.mxu0 0
      %1417 = vmatprep.mubr.bf16.mxu0 0
      %1418 = vmatmul.mubr.bf16.gmra.mrb[0].mxu0 %v1340
      %v1419 = vpop.f32.mrb[0].mxu0
      %v1420 = vadd.f32 0.0, %v1419
      %v1421 = vpop.f32.mrb[0].mxu0
      %v1422 = vpop.f32.mrb[0].mxu0
      %v1423 = vadd.f32 0.0, %v1422
      %v1424 = vpop.f32.mrb[0].mxu0
      %1425 = vdwg.mxu0
      %v1426 = vadd.f32 %v1313, %v1377
      %v1427 = vadd.f32 %v1314, %v1379
      %v1428 = vadd.f32 %v1315, %v1420
      %v1429 = vadd.f32 %v1316, %v1381
      %v1430 = vadd.f32 %v1317, %v1383
      %v1431 = vadd.f32 %v1318, %v1423
      %s1432 = scalar_lea.vmem %s2, 64
      %v1433 = vld [vmem:[%s1432] sm:$0xf]
      %v1434 = vld [vmem:[%s1432 + $0x4] sm:$0xf]
      %v1437 = vunpack.c.l.b16 %v1433
      %v1438 = vunpack.c.l.b16 %v1434
      %v1439 = vpack.c.b16 %v1438, %v1437
      %1440 = vrot.lane.b32.xlu0 %v546, 90
      %v1441 = vpop.permute.xlu0 %1440
      %1442 = vrot.lane.b32.xlu0 %v547, 90
      %v1443 = vpop.permute.xlu0 %1442
      %1444 = vrot.lane.b32.xlu0 %v548, 90
      %v1445 = vpop.permute.xlu0 %1444
      %vm1446 = vcmask 736256
      %v1447 = vsel %vm1446, %v1441, %v1443
      %v1448 = vsel %vm1446, %v1443, %v1445
      %v1453 = vsel %vm574, %v1439, 0
      %1455 = vmatprep.subr.bf16.mxu0 %v1448
      %1456 = vmatpush1.bf16.msra.mxu0 %v1447
      %1457 = vmatprep.subr.bf16.mxu0 0
      %1458 = vmatpush1.bf16.msra.mxu0 0
      %1459 = vmatprep.subr.bf16.mxu0 0
      %1460 = vmatpush1.bf16.msra.mxu0 0
      %1461 = vmatprep.subr.bf16.mxu0 0
      %1462 = vmatpush1.bf16.msra.mxu0 0
      %1463 = vmatprep.subr.bf16.mxu0 0
      %1464 = vmatpush1.bf16.msra.mxu0 0
      %1465 = vmatprep.subr.bf16.mxu0 0
      %1466 = vmatpush1.bf16.msra.mxu0 0
      %1467 = vmatprep.subr.bf16.mxu0 0
      %1468 = vmatpush1.bf16.msra.mxu0 0
      %1469 = vmatprep.subr.bf16.mxu0 0
      %1470 = vmatpush1.bf16.msra.mxu0 0
      %1471 = vmatprep.subr.bf16.mxu0 0
      %1472 = vmatpush1.bf16.msra.mxu0 0
      %1473 = vmatprep.subr.bf16.mxu0 0
      %1474 = vmatpush1.bf16.msra.mxu0 0
      %1475 = vmatprep.subr.bf16.mxu0 0
      %1476 = vmatpush1.bf16.msra.mxu0 0
      %1477 = vmatprep.subr.bf16.mxu0 0
      %1478 = vmatpush1.bf16.msra.mxu0 0
      %1479 = vmatprep.subr.bf16.mxu0 0
      %1480 = vmatpush1.bf16.msra.mxu0 0
      %1481 = vmatprep.subr.bf16.mxu0 0
      %1482 = vmatpush1.bf16.msra.mxu0 0
      %1483 = vmatprep.subr.bf16.mxu0 0
      %1484 = vmatpush1.bf16.msra.mxu0 0
      %1485 = vmatprep.subr.bf16.mxu0 0
      %1486 = vmatpush1.bf16.msra.mxu0 0
      %1487 = vmatprep.mubr.bf16.mxu0 0
      %1488 = vmatmul.mubr.bf16.gmra.mrb[0].mxu0 %v1453
      %v1489 = vpop.f32.mrb[0].mxu0
      %v1490 = vadd.f32 0.0, %v1489
      %v1491 = vpop.f32.mrb[0].mxu0
      %v1492 = vadd.f32 0.0, %v1491
      %v1493 = vpop.f32.mrb[0].mxu0
      %v1494 = vadd.f32 0.0, %v1493
      %v1495 = vpop.f32.mrb[0].mxu0
      %v1496 = vadd.f32 0.0, %v1495
      %1497 = vdwg.mxu0
      %1498 = vmatprep.subr.bf16.mxu0 0
      %1499 = vmatpush1.bf16.msra.mxu0 %v1445
      %1500 = vmatprep.subr.bf16.mxu0 0
      %1501 = vmatpush1.bf16.msra.mxu0 0
      %1502 = vmatprep.subr.bf16.mxu0 0
      %1503 = vmatpush1.bf16.msra.mxu0 0
      %1504 = vmatprep.subr.bf16.mxu0 0
      %1505 = vmatpush1.bf16.msra.mxu0 0
      %1506 = vmatprep.subr.bf16.mxu0 0
      %1507 = vmatpush1.bf16.msra.mxu0 0
      %1508 = vmatprep.subr.bf16.mxu0 0
      %1509 = vmatpush1.bf16.msra.mxu0 0
      %1510 = vmatprep.subr.bf16.mxu0 0
      %1511 = vmatpush1.bf16.msra.mxu0 0
      %1512 = vmatprep.subr.bf16.mxu0 0
      %1513 = vmatpush1.bf16.msra.mxu0 0
      %1514 = vmatprep.subr.bf16.mxu0 0
      %1515 = vmatpush1.bf16.msra.mxu0 0
      %1516 = vmatprep.subr.bf16.mxu0 0
      %1517 = vmatpush1.bf16.msra.mxu0 0
      %1518 = vmatprep.subr.bf16.mxu0 0
      %1519 = vmatpush1.bf16.msra.mxu0 0
      %1520 = vmatprep.subr.bf16.mxu0 0
      %1521 = vmatpush1.bf16.msra.mxu0 0
      %1522 = vmatprep.subr.bf16.mxu0 0
      %1523 = vmatpush1.bf16.msra.mxu0 0
      %1524 = vmatprep.subr.bf16.mxu0 0
      %1525 = vmatpush1.bf16.msra.mxu0 0
      %1526 = vmatprep.subr.bf16.mxu0 0
      %1527 = vmatpush1.bf16.msra.mxu0 0
      %1528 = vmatprep.subr.bf16.mxu0 0
      %1529 = vmatpush1.bf16.msra.mxu0 0
      %1530 = vmatprep.mubr.bf16.mxu0 0
      %1531 = vmatmul.mubr.bf16.gmra.mrb[0].mxu0 %v1453
      %v1532 = vpop.f32.mrb[0].mxu0
      %v1533 = vadd.f32 0.0, %v1532
      %v1534 = vpop.f32.mrb[0].mxu0
      %v1535 = vpop.f32.mrb[0].mxu0
      %v1536 = vadd.f32 0.0, %v1535
      %v1537 = vpop.f32.mrb[0].mxu0
      %1538 = vdwg.mxu0
      %v1539 = vadd.f32 %v1426, %v1490
      %v1540 = vadd.f32 %v1427, %v1492
      %v1541 = vadd.f32 %v1428, %v1533
      %v1542 = vadd.f32 %v1429, %v1494
      %v1543 = vadd.f32 %v1430, %v1496
      %v1544 = vadd.f32 %v1431, %v1536
      %v1545 = vld [vmem:[%s3] sm:$0xff]
      %v1546 = vld [vmem:[%s3 + $0x8] sm:$0xff]
      %1548 = vset.pattern.permute.xlu0 0
      %1549 = vperm.xlu0 %1548, %v1545
      %v1550 = vpop.permute.xlu0 %1549
      %1553 = vset.pattern.permute.xlu0 0
      %1554 = vperm.xlu0 %1553, %v1546
      %v1555 = vpop.permute.xlu0 %1554
      %v1557 = vmul.f32 %v1539, %v1550
      %v1558 = vmul.f32 %v1540, %v1550
      %v1559 = vmul.f32 %v1541, %v1550
      %v1560 = vmul.f32 %v1542, %v1555
      %v1561 = vmul.f32 %v1543, %v1555
      %v1562 = vmul.f32 %v1544, %v1555
      %v1563 = vld [vmem:[%s4] sm:$0xff]
      %v1564 = vld [vmem:[%s4 + $0x8] sm:$0xff]
      %1566 = vset.pattern.permute.xlu0 0
      %1567 = vperm.xlu0 %1566, %v1563
      %v1568 = vpop.permute.xlu0 %1567
      %1571 = vset.pattern.permute.xlu0 0
      %1572 = vperm.xlu0 %1571, %v1564
      %v1573 = vpop.permute.xlu0 %1572
      %v1575 = vadd.f32 %v1557, %v1568
      %v1576 = vadd.f32 %v1558, %v1568
      %v1577 = vadd.f32 %v1559, %v1568
      %v1578 = vadd.f32 %v1560, %v1573
      %v1579 = vadd.f32 %v1561, %v1573
      %v1580 = vadd.f32 %v1562, %v1573
      %v1581 = vmax.f32 %v1575, 0.0
      %v1582 = vmax.f32 %v1576, 0.0
      %v1583 = vmax.f32 %v1577, 0.0
      %v1584 = vmax.f32 %v1578, 0.0
      %v1585 = vmax.f32 %v1579, 0.0
      %v1586 = vmax.f32 %v1580, 0.0
      %v1588 = vlaneseq
      %v1589 = vshrl.u32 %v1588, 7
      %v1590 = vsub.s32 0, %v1589
      %v1591 = vrot.slane %v545, %v1590
      %v1592 = vlaneseq
      %v1593 = vshrl.u32 %v1592, 7
      %v1594 = vsub.s32 1, %v1593
      %v1595 = vrot.slane %v545, %v1594
      %v1596 = vlaneseq
      %v1597 = vshrl.u32 %v1596, 7
      %v1598 = vsub.s32 2, %v1597
      %v1599 = vrot.slane %v545, %v1598
      %v1603 = vmul.f32 %v1581, %v1591
      %v1604 = vmul.f32 %v1582, %v1595
      %v1605 = vmul.f32 %v1583, %v1599
      %v1606 = vmul.f32 %v1584, %v1591
      %v1607 = vmul.f32 %v1585, %v1595
      %v1608 = vmul.f32 %v1586, %v1599
      %v1609 = vpack.c.bf16 %v1606, %v1603
      %v1610 = vpack.c.bf16 %v1607, %v1604
      %v1611 = vpack.c.bf16 %v1608, %v1605
      %1615 = vrot.lane.b32.xlu0 %v1609, 19
      %v1616 = vpop.permute.xlu0 %1615
      %1617 = vrot.lane.b32.xlu0 %v1610, 19
      %v1618 = vpop.permute.xlu0 %1617
      %1619 = vrot.lane.b32.xlu0 %v1611, 19
      %v1620 = vpop.permute.xlu0 %1619
      %vm1621 = vcmask 154624
      %v1622 = vsel %vm1621, %v1616, %v1618
      %v1623 = vsel %vm1621, %v1618, %v1620
      %vm1627 = vcmask 1047704
      %1628 = vst.msk [vmem:[#allocation2] sm:$0xff] %vm1627, %v1616
      %1629 = vst [vmem:[#allocation2 + $0x8] sm:$0xff] %v1622
      %vm1630 = vcmask 400384
      %1631 = vst.msk [vmem:[#allocation2 + $0x10] sm:$0xff] %vm1630, %v1623
      %v1632 = vld [vmem:[#allocation2] sm:$0xff]
      %v1633 = vld [vmem:[#allocation2 + $0x8] sm:$0xff]
      %v1634 = vld [vmem:[#allocation2 + $0x10] sm:$0xff]
      %v1635 = vld [vmem:[%s5] sm:$0xf]
      %v1636 = vld [vmem:[%s5 + $0x4] sm:$0xf]
      %s1637 = scalar_lea.vmem %s5, 8
      %v1638 = vld [vmem:[%s1637] sm:$0xf]
      %v1639 = vld [vmem:[%s1637 + $0x4] sm:$0xf]
      %v1642 = vunpack.c.l.b16 %v1638
      %v1643 = vunpack.c.l.b16 %v1639
      %v1644 = vpack.c.b16 %v1643, %v1642
      %1648 = vrot.lane.b32.xlu0 %v1632, 127
      %v1649 = vpop.permute.xlu0 %1648
      %1650 = vrot.lane.b32.xlu0 %v1633, 127
      %v1651 = vpop.permute.xlu0 %1650
      %1652 = vrot.lane.b32.xlu0 %v1634, 127
      %v1653 = vpop.permute.xlu0 %1652
      %v1654 = vsel %vm568, %v1649, %v1651
      %v1655 = vsel %vm568, %v1651, %v1653
      %v1660 = vsel %vm574, %v1644, 0
      %1662 = vmatprep.subr.bf16.mxu0 %v1655
      %1663 = vmatpush1.bf16.msra.mxu0 %v1654
      %1664 = vmatprep.subr.bf16.mxu0 0
      %1665 = vmatpush1.bf16.msra.mxu0 0
      %1666 = vmatprep.subr.bf16.mxu0 0
      %1667 = vmatpush1.bf16.msra.mxu0 0
      %1668 = vmatprep.subr.bf16.mxu0 0
      %1669 = vmatpush1.bf16.msra.mxu0 0
      %1670 = vmatprep.subr.bf16.mxu0 0
      %1671 = vmatpush1.bf16.msra.mxu0 0
      %1672 = vmatprep.subr.bf16.mxu0 0
      %1673 = vmatpush1.bf16.msra.mxu0 0
      %1674 = vmatprep.subr.bf16.mxu0 0
      %1675 = vmatpush1.bf16.msra.mxu0 0
      %1676 = vmatprep.subr.bf16.mxu0 0
      %1677 = vmatpush1.bf16.msra.mxu0 0
      %1678 = vmatprep.subr.bf16.mxu0 0
      %1679 = vmatpush1.bf16.msra.mxu0 0
      %1680 = vmatprep.subr.bf16.mxu0 0
      %1681 = vmatpush1.bf16.msra.mxu0 0
      %1682 = vmatprep.subr.bf16.mxu0 0
      %1683 = vmatpush1.bf16.msra.mxu0 0
      %1684 = vmatprep.subr.bf16.mxu0 0
      %1685 = vmatpush1.bf16.msra.mxu0 0
      %1686 = vmatprep.subr.bf16.mxu0 0
      %1687 = vmatpush1.bf16.msra.mxu0 0
      %1688 = vmatprep.subr.bf16.mxu0 0
      %1689 = vmatpush1.bf16.msra.mxu0 0
      %1690 = vmatprep.subr.bf16.mxu0 0
      %1691 = vmatpush1.bf16.msra.mxu0 0
      %1692 = vmatprep.subr.bf16.mxu0 0
      %1693 = vmatpush1.bf16.msra.mxu0 0
      %1694 = vmatprep.mubr.bf16.mxu0 0
      %1695 = vmatmul.mubr.bf16.gmra.mrb[0].mxu0 %v1660
      %v1696 = vpop.f32.mrb[0].mxu0
      %v1697 = vadd.f32 0.0, %v1696
      %v1698 = vpop.f32.mrb[0].mxu0
      %v1699 = vadd.f32 0.0, %v1698
      %v1700 = vpop.f32.mrb[0].mxu0
      %v1701 = vadd.f32 0.0, %v1700
      %v1702 = vpop.f32.mrb[0].mxu0
      %v1703 = vadd.f32 0.0, %v1702
      %1704 = vdwg.mxu0
      %1705 = vmatprep.subr.bf16.mxu0 0
      %1706 = vmatpush1.bf16.msra.mxu0 %v1653
      %1707 = vmatprep.subr.bf16.mxu0 0
      %1708 = vmatpush1.bf16.msra.mxu0 0
      %1709 = vmatprep.subr.bf16.mxu0 0
      %1710 = vmatpush1.bf16.msra.mxu0 0
      %1711 = vmatprep.subr.bf16.mxu0 0
      %1712 = vmatpush1.bf16.msra.mxu0 0
      %1713 = vmatprep.subr.bf16.mxu0 0
      %1714 = vmatpush1.bf16.msra.mxu0 0
      %1715 = vmatprep.subr.bf16.mxu0 0
      %1716 = vmatpush1.bf16.msra.mxu0 0
      %1717 = vmatprep.subr.bf16.mxu0 0
      %1718 = vmatpush1.bf16.msra.mxu0 0
      %1719 = vmatprep.subr.bf16.mxu0 0
      %1720 = vmatpush1.bf16.msra.mxu0 0
      %1721 = vmatprep.subr.bf16.mxu0 0
      %1722 = vmatpush1.bf16.msra.mxu0 0
      %1723 = vmatprep.subr.bf16.mxu0 0
      %1724 = vmatpush1.bf16.msra.mxu0 0
      %1725 = vmatprep.subr.bf16.mxu0 0
      %1726 = vmatpush1.bf16.msra.mxu0 0
      %1727 = vmatprep.subr.bf16.mxu0 0
      %1728 = vmatpush1.bf16.msra.mxu0 0
      %1729 = vmatprep.subr.bf16.mxu0 0
      %1730 = vmatpush1.bf16.msra.mxu0 0
      %1731 = vmatprep.subr.bf16.mxu0 0
      %1732 = vmatpush1.bf16.msra.mxu0 0
      %1733 = vmatprep.subr.bf16.mxu0 0
      %1734 = vmatpush1.bf16.msra.mxu0 0
      %1735 = vmatprep.subr.bf16.mxu0 0
      %1736 = vmatpush1.bf16.msra.mxu0 0
      %1737 = vmatprep.mubr.bf16.mxu0 0
      %1738 = vmatmul.mubr.bf16.gmra.mrb[0].mxu0 %v1660
      %v1739 = vpop.f32.mrb[0].mxu0
      %v1740 = vadd.f32 0.0, %v1739
      %v1741 = vpop.f32.mrb[0].mxu0
      %v1742 = vpop.f32.mrb[0].mxu0
      %v1743 = vadd.f32 0.0, %v1742
      %v1744 = vpop.f32.mrb[0].mxu0
      %1745 = vdwg.mxu0
      %v1748 = vunpack.c.l.b16 %v1635
      %v1749 = vunpack.c.l.b16 %v1636
      %v1750 = vpack.c.b16 %v1749, %v1748
      %v1752 = vsel %vm574, %v1750, 0
      %1754 = vmatprep.subr.bf16.mxu0 %v1633
      %1755 = vmatpush1.bf16.msra.mxu0 %v1632
      %1756 = vmatprep.subr.bf16.mxu0 0
      %1757 = vmatpush1.bf16.msra.mxu0 0
      %1758 = vmatprep.subr.bf16.mxu0 0
      %1759 = vmatpush1.bf16.msra.mxu0 0
      %1760 = vmatprep.subr.bf16.mxu0 0
      %1761 = vmatpush1.bf16.msra.mxu0 0
      %1762 = vmatprep.subr.bf16.mxu0 0
      %1763 = vmatpush1.bf16.msra.mxu0 0
      %1764 = vmatprep.subr.bf16.mxu0 0
      %1765 = vmatpush1.bf16.msra.mxu0 0
      %1766 = vmatprep.subr.bf16.mxu0 0
      %1767 = vmatpush1.bf16.msra.mxu0 0
      %1768 = vmatprep.subr.bf16.mxu0 0
      %1769 = vmatpush1.bf16.msra.mxu0 0
      %1770 = vmatprep.subr.bf16.mxu0 0
      %1771 = vmatpush1.bf16.msra.mxu0 0
      %1772 = vmatprep.subr.bf16.mxu0 0
      %1773 = vmatpush1.bf16.msra.mxu0 0
      %1774 = vmatprep.subr.bf16.mxu0 0
      %1775 = vmatpush1.bf16.msra.mxu0 0
      %1776 = vmatprep.subr.bf16.mxu0 0
      %1777 = vmatpush1.bf16.msra.mxu0 0
      %1778 = vmatprep.subr.bf16.mxu0 0
      %1779 = vmatpush1.bf16.msra.mxu0 0
      %1780 = vmatprep.subr.bf16.mxu0 0
      %1781 = vmatpush1.bf16.msra.mxu0 0
      %1782 = vmatprep.subr.bf16.mxu0 0
      %1783 = vmatpush1.bf16.msra.mxu0 0
      %1784 = vmatprep.subr.bf16.mxu0 0
      %1785 = vmatpush1.bf16.msra.mxu0 0
      %1786 = vmatprep.mubr.bf16.mxu0 0
      %1787 = vmatmul.mubr.bf16.gmra.mrb[0].mxu0 %v1752
      %v1788 = vpop.f32.mrb[0].mxu0
      %v1789 = vadd.f32 %v1697, %v1788
      %v1790 = vpop.f32.mrb[0].mxu0
      %v1791 = vadd.f32 %v1699, %v1790
      %v1792 = vpop.f32.mrb[0].mxu0
      %v1793 = vadd.f32 %v1701, %v1792
      %v1794 = vpop.f32.mrb[0].mxu0
      %v1795 = vadd.f32 %v1703, %v1794
      %1796 = vdwg.mxu0
      %1797 = vmatprep.subr.bf16.mxu0 0
      %1798 = vmatpush1.bf16.msra.mxu0 %v1634
      %1799 = vmatprep.subr.bf16.mxu0 0
      %1800 = vmatpush1.bf16.msra.mxu0 0
      %1801 = vmatprep.subr.bf16.mxu0 0
      %1802 = vmatpush1.bf16.msra.mxu0 0
      %1803 = vmatprep.subr.bf16.mxu0 0
      %1804 = vmatpush1.bf16.msra.mxu0 0
      %1805 = vmatprep.subr.bf16.mxu0 0
      %1806 = vmatpush1.bf16.msra.mxu0 0
      %1807 = vmatprep.subr.bf16.mxu0 0
      %1808 = vmatpush1.bf16.msra.mxu0 0
      %1809 = vmatprep.subr.bf16.mxu0 0
      %1810 = vmatpush1.bf16.msra.mxu0 0
      %1811 = vmatprep.subr.bf16.mxu0 0
      %1812 = vmatpush1.bf16.msra.mxu0 0
      %1813 = vmatprep.subr.bf16.mxu0 0
      %1814 = vmatpush1.bf16.msra.mxu0 0
      %1815 = vmatprep.subr.bf16.mxu0 0
      %1816 = vmatpush1.bf16.msra.mxu0 0
      %1817 = vmatprep.subr.bf16.mxu0 0
      %1818 = vmatpush1.bf16.msra.mxu0 0
      %1819 = vmatprep.subr.bf16.mxu0 0
      %1820 = vmatpush1.bf16.msra.mxu0 0
      %1821 = vmatprep.subr.bf16.mxu0 0
      %1822 = vmatpush1.bf16.msra.mxu0 0
      %1823 = vmatprep.subr.bf16.mxu0 0
      %1824 = vmatpush1.bf16.msra.mxu0 0
      %1825 = vmatprep.subr.bf16.mxu0 0
      %1826 = vmatpush1.bf16.msra.mxu0 0
      %1827 = vmatprep.subr.bf16.mxu0 0
      %1828 = vmatpush1.bf16.msra.mxu0 0
      %1829 = vmatprep.mubr.bf16.mxu0 0
      %1830 = vmatmul.mubr.bf16.gmra.mrb[0].mxu0 %v1752
      %v1831 = vpop.f32.mrb[0].mxu0
      %v1832 = vadd.f32 %v1740, %v1831
      %v1833 = vpop.f32.mrb[0].mxu0
      %v1834 = vpop.f32.mrb[0].mxu0
      %v1835 = vadd.f32 %v1743, %v1834
      %v1836 = vpop.f32.mrb[0].mxu0
      %1837 = vdwg.mxu0
      %s1838 = scalar_lea.vmem %s5, 16
      %v1839 = vld [vmem:[%s1838] sm:$0xf]
      %v1840 = vld [vmem:[%s1838 + $0x4] sm:$0xf]
      %v1843 = vunpack.c.l.b16 %v1839
      %v1844 = vunpack.c.l.b16 %v1840
      %v1845 = vpack.c.b16 %v1844, %v1843
      %1846 = vrot.lane.b32.xlu0 %v1632, 126
      %v1847 = vpop.permute.xlu0 %1846
      %1848 = vrot.lane.b32.xlu0 %v1633, 126
      %v1849 = vpop.permute.xlu0 %1848
      %1850 = vrot.lane.b32.xlu0 %v1634, 126
      %v1851 = vpop.permute.xlu0 %1850
      %v1852 = vsel %vm768, %v1847, %v1849
      %v1853 = vsel %vm768, %v1849, %v1851
      %v1858 = vsel %vm574, %v1845, 0
      %1860 = vmatprep.subr.bf16.mxu0 %v1853
      %1861 = vmatpush1.bf16.msra.mxu0 %v1852
      %1862 = vmatprep.subr.bf16.mxu0 0
      %1863 = vmatpush1.bf16.msra.mxu0 0
      %1864 = vmatprep.subr.bf16.mxu0 0
      %1865 = vmatpush1.bf16.msra.mxu0 0
      %1866 = vmatprep.subr.bf16.mxu0 0
      %1867 = vmatpush1.bf16.msra.mxu0 0
      %1868 = vmatprep.subr.bf16.mxu0 0
      %1869 = vmatpush1.bf16.msra.mxu0 0
      %1870 = vmatprep.subr.bf16.mxu0 0
      %1871 = vmatpush1.bf16.msra.mxu0 0
      %1872 = vmatprep.subr.bf16.mxu0 0
      %1873 = vmatpush1.bf16.msra.mxu0 0
      %1874 = vmatprep.subr.bf16.mxu0 0
      %1875 = vmatpush1.bf16.msra.mxu0 0
      %1876 = vmatprep.subr.bf16.mxu0 0
      %1877 = vmatpush1.bf16.msra.mxu0 0
      %1878 = vmatprep.subr.bf16.mxu0 0
      %1879 = vmatpush1.bf16.msra.mxu0 0
      %1880 = vmatprep.subr.bf16.mxu0 0
      %1881 = vmatpush1.bf16.msra.mxu0 0
      %1882 = vmatprep.subr.bf16.mxu0 0
      %1883 = vmatpush1.bf16.msra.mxu0 0
      %1884 = vmatprep.subr.bf16.mxu0 0
      %1885 = vmatpush1.bf16.msra.mxu0 0
      %1886 = vmatprep.subr.bf16.mxu0 0
      %1887 = vmatpush1.bf16.msra.mxu0 0
      %1888 = vmatprep.subr.bf16.mxu0 0
      %1889 = vmatpush1.bf16.msra.mxu0 0
      %1890 = vmatprep.subr.bf16.mxu0 0
      %1891 = vmatpush1.bf16.msra.mxu0 0
      %1892 = vmatprep.mubr.bf16.mxu0 0
      %1893 = vmatmul.mubr.bf16.gmra.mrb[0].mxu0 %v1858
      %v1894 = vpop.f32.mrb[0].mxu0
      %v1895 = vadd.f32 0.0, %v1894
      %v1896 = vpop.f32.mrb[0].mxu0
      %v1897 = vadd.f32 0.0, %v1896
      %v1898 = vpop.f32.mrb[0].mxu0
      %v1899 = vadd.f32 0.0, %v1898
      %v1900 = vpop.f32.mrb[0].mxu0
      %v1901 = vadd.f32 0.0, %v1900
      %1902 = vdwg.mxu0
      %1903 = vmatprep.subr.bf16.mxu0 0
      %1904 = vmatpush1.bf16.msra.mxu0 %v1851
      %1905 = vmatprep.subr.bf16.mxu0 0
      %1906 = vmatpush1.bf16.msra.mxu0 0
      %1907 = vmatprep.subr.bf16.mxu0 0
      %1908 = vmatpush1.bf16.msra.mxu0 0
      %1909 = vmatprep.subr.bf16.mxu0 0
      %1910 = vmatpush1.bf16.msra.mxu0 0
      %1911 = vmatprep.subr.bf16.mxu0 0
      %1912 = vmatpush1.bf16.msra.mxu0 0
      %1913 = vmatprep.subr.bf16.mxu0 0
      %1914 = vmatpush1.bf16.msra.mxu0 0
      %1915 = vmatprep.subr.bf16.mxu0 0
      %1916 = vmatpush1.bf16.msra.mxu0 0
      %1917 = vmatprep.subr.bf16.mxu0 0
      %1918 = vmatpush1.bf16.msra.mxu0 0
      %1919 = vmatprep.subr.bf16.mxu0 0
      %1920 = vmatpush1.bf16.msra.mxu0 0
      %1921 = vmatprep.subr.bf16.mxu0 0
      %1922 = vmatpush1.bf16.msra.mxu0 0
      %1923 = vmatprep.subr.bf16.mxu0 0
      %1924 = vmatpush1.bf16.msra.mxu0 0
      %1925 = vmatprep.subr.bf16.mxu0 0
      %1926 = vmatpush1.bf16.msra.mxu0 0
      %1927 = vmatprep.subr.bf16.mxu0 0
      %1928 = vmatpush1.bf16.msra.mxu0 0
      %1929 = vmatprep.subr.bf16.mxu0 0
      %1930 = vmatpush1.bf16.msra.mxu0 0
      %1931 = vmatprep.subr.bf16.mxu0 0
      %1932 = vmatpush1.bf16.msra.mxu0 0
      %1933 = vmatprep.subr.bf16.mxu0 0
      %1934 = vmatpush1.bf16.msra.mxu0 0
      %1935 = vmatprep.mubr.bf16.mxu0 0
      %1936 = vmatmul.mubr.bf16.gmra.mrb[0].mxu0 %v1858
      %v1937 = vpop.f32.mrb[0].mxu0
      %v1938 = vadd.f32 0.0, %v1937
      %v1939 = vpop.f32.mrb[0].mxu0
      %v1940 = vpop.f32.mrb[0].mxu0
      %v1941 = vadd.f32 0.0, %v1940
      %v1942 = vpop.f32.mrb[0].mxu0
      %1943 = vdwg.mxu0
      %v1944 = vadd.f32 %v1789, %v1895
      %v1945 = vadd.f32 %v1791, %v1897
      %v1946 = vadd.f32 %v1832, %v1938
      %v1947 = vadd.f32 %v1793, %v1899
      %v1948 = vadd.f32 %v1795, %v1901
      %v1949 = vadd.f32 %v1835, %v1941
      %s1950 = scalar_lea.vmem %s5, 24
      %v1951 = vld [vmem:[%s1950] sm:$0xf]
      %v1952 = vld [vmem:[%s1950 + $0x4] sm:$0xf]
      %v1955 = vunpack.c.l.b16 %v1951
      %v1956 = vunpack.c.l.b16 %v1952
      %v1957 = vpack.c.b16 %v1956, %v1955
      %1958 = vrot.lane.b32.xlu0 %v1632, 110
      %v1959 = vpop.permute.xlu0 %1958
      %1960 = vrot.lane.b32.xlu0 %v1633, 110
      %v1961 = vpop.permute.xlu0 %1960
      %1962 = vrot.lane.b32.xlu0 %v1634, 110
      %v1963 = vpop.permute.xlu0 %1962
      %v1964 = vsel %vm881, %v1959, %v1961
      %v1965 = vsel %vm881, %v1961, %v1963
      %v1970 = vsel %vm574, %v1957, 0
      %1972 = vmatprep.subr.bf16.mxu0 %v1965
      %1973 = vmatpush1.bf16.msra.mxu0 %v1964
      %1974 = vmatprep.subr.bf16.mxu0 0
      %1975 = vmatpush1.bf16.msra.mxu0 0
      %1976 = vmatprep.subr.bf16.mxu0 0
      %1977 = vmatpush1.bf16.msra.mxu0 0
      %1978 = vmatprep.subr.bf16.mxu0 0
      %1979 = vmatpush1.bf16.msra.mxu0 0
      %1980 = vmatprep.subr.bf16.mxu0 0
      %1981 = vmatpush1.bf16.msra.mxu0 0
      %1982 = vmatprep.subr.bf16.mxu0 0
      %1983 = vmatpush1.bf16.msra.mxu0 0
      %1984 = vmatprep.subr.bf16.mxu0 0
      %1985 = vmatpush1.bf16.msra.mxu0 0
      %1986 = vmatprep.subr.bf16.mxu0 0
      %1987 = vmatpush1.bf16.msra.mxu0 0
      %1988 = vmatprep.subr.bf16.mxu0 0
      %1989 = vmatpush1.bf16.msra.mxu0 0
      %1990 = vmatprep.subr.bf16.mxu0 0
      %1991 = vmatpush1.bf16.msra.mxu0 0
      %1992 = vmatprep.subr.bf16.mxu0 0
      %1993 = vmatpush1.bf16.msra.mxu0 0
      %1994 = vmatprep.subr.bf16.mxu0 0
      %1995 = vmatpush1.bf16.msra.mxu0 0
      %1996 = vmatprep.subr.bf16.mxu0 0
      %1997 = vmatpush1.bf16.msra.mxu0 0
      %1998 = vmatprep.subr.bf16.mxu0 0
      %1999 = vmatpush1.bf16.msra.mxu0 0
      %2000 = vmatprep.subr.bf16.mxu0 0
      %2001 = vmatpush1.bf16.msra.mxu0 0
      %2002 = vmatprep.subr.bf16.mxu0 0
      %2003 = vmatpush1.bf16.msra.mxu0 0
      %2004 = vmatprep.mubr.bf16.mxu0 0
      %2005 = vmatmul.mubr.bf16.gmra.mrb[0].mxu0 %v1970
      %v2006 = vpop.f32.mrb[0].mxu0
      %v2007 = vadd.f32 0.0, %v2006
      %v2008 = vpop.f32.mrb[0].mxu0
      %v2009 = vadd.f32 0.0, %v2008
      %v2010 = vpop.f32.mrb[0].mxu0
      %v2011 = vadd.f32 0.0, %v2010
      %v2012 = vpop.f32.mrb[0].mxu0
      %v2013 = vadd.f32 0.0, %v2012
      %2014 = vdwg.mxu0
      %2015 = vmatprep.subr.bf16.mxu0 0
      %2016 = vmatpush1.bf16.msra.mxu0 %v1963
      %2017 = vmatprep.subr.bf16.mxu0 0
      %2018 = vmatpush1.bf16.msra.mxu0 0
      %2019 = vmatprep.subr.bf16.mxu0 0
      %2020 = vmatpush1.bf16.msra.mxu0 0
      %2021 = vmatprep.subr.bf16.mxu0 0
      %2022 = vmatpush1.bf16.msra.mxu0 0
      %2023 = vmatprep.subr.bf16.mxu0 0
      %2024 = vmatpush1.bf16.msra.mxu0 0
      %2025 = vmatprep.subr.bf16.mxu0 0
      %2026 = vmatpush1.bf16.msra.mxu0 0
      %2027 = vmatprep.subr.bf16.mxu0 0
      %2028 = vmatpush1.bf16.msra.mxu0 0
      %2029 = vmatprep.subr.bf16.mxu0 0
      %2030 = vmatpush1.bf16.msra.mxu0 0
      %2031 = vmatprep.subr.bf16.mxu0 0
      %2032 = vmatpush1.bf16.msra.mxu0 0
      %2033 = vmatprep.subr.bf16.mxu0 0
      %2034 = vmatpush1.bf16.msra.mxu0 0
      %2035 = vmatprep.subr.bf16.mxu0 0
      %2036 = vmatpush1.bf16.msra.mxu0 0
      %2037 = vmatprep.subr.bf16.mxu0 0
      %2038 = vmatpush1.bf16.msra.mxu0 0
      %2039 = vmatprep.subr.bf16.mxu0 0
      %2040 = vmatpush1.bf16.msra.mxu0 0
      %2041 = vmatprep.subr.bf16.mxu0 0
      %2042 = vmatpush1.bf16.msra.mxu0 0
      %2043 = vmatprep.subr.bf16.mxu0 0
      %2044 = vmatpush1.bf16.msra.mxu0 0
      %2045 = vmatprep.subr.bf16.mxu0 0
      %2046 = vmatpush1.bf16.msra.mxu0 0
      %2047 = vmatprep.mubr.bf16.mxu0 0
      %2048 = vmatmul.mubr.bf16.gmra.mrb[0].mxu0 %v1970
      %v2049 = vpop.f32.mrb[0].mxu0
      %v2050 = vadd.f32 0.0, %v2049
      %v2051 = vpop.f32.mrb[0].mxu0
      %v2052 = vpop.f32.mrb[0].mxu0
      %v2053 = vadd.f32 0.0, %v2052
      %v2054 = vpop.f32.mrb[0].mxu0
      %2055 = vdwg.mxu0
      %v2056 = vadd.f32 %v1944, %v2007
      %v2057 = vadd.f32 %v1945, %v2009
      %v2058 = vadd.f32 %v1946, %v2050
      %v2059 = vadd.f32 %v1947, %v2011
      %v2060 = vadd.f32 %v1948, %v2013
      %v2061 = vadd.f32 %v1949, %v2053
      %s2062 = scalar_lea.vmem %s5, 32
      %v2063 = vld [vmem:[%s2062] sm:$0xf]
      %v2064 = vld [vmem:[%s2062 + $0x4] sm:$0xf]
      %v2067 = vunpack.c.l.b16 %v2063
      %v2068 = vunpack.c.l.b16 %v2064
      %v2069 = vpack.c.b16 %v2068, %v2067
      %2070 = vrot.lane.b32.xlu0 %v1632, 109
      %v2071 = vpop.permute.xlu0 %2070
      %2072 = vrot.lane.b32.xlu0 %v1633, 109
      %v2073 = vpop.permute.xlu0 %2072
      %2074 = vrot.lane.b32.xlu0 %v1634, 109
      %v2075 = vpop.permute.xlu0 %2074
      %v2076 = vsel %vm994, %v2071, %v2073
      %v2077 = vsel %vm994, %v2073, %v2075
      %v2082 = vsel %vm574, %v2069, 0
      %2084 = vmatprep.subr.bf16.mxu0 %v2077
      %2085 = vmatpush1.bf16.msra.mxu0 %v2076
      %2086 = vmatprep.subr.bf16.mxu0 0
      %2087 = vmatpush1.bf16.msra.mxu0 0
      %2088 = vmatprep.subr.bf16.mxu0 0
      %2089 = vmatpush1.bf16.msra.mxu0 0
      %2090 = vmatprep.subr.bf16.mxu0 0
      %2091 = vmatpush1.bf16.msra.mxu0 0
      %2092 = vmatprep.subr.bf16.mxu0 0
      %2093 = vmatpush1.bf16.msra.mxu0 0
      %2094 = vmatprep.subr.bf16.mxu0 0
      %2095 = vmatpush1.bf16.msra.mxu0 0
      %2096 = vmatprep.subr.bf16.mxu0 0
      %2097 = vmatpush1.bf16.msra.mxu0 0
      %2098 = vmatprep.subr.bf16.mxu0 0
      %2099 = vmatpush1.bf16.msra.mxu0 0
      %2100 = vmatprep.subr.bf16.mxu0 0
      %2101 = vmatpush1.bf16.msra.mxu0 0
      %2102 = vmatprep.subr.bf16.mxu0 0
      %2103 = vmatpush1.bf16.msra.mxu0 0
      %2104 = vmatprep.subr.bf16.mxu0 0
      %2105 = vmatpush1.bf16.msra.mxu0 0
      %2106 = vmatprep.subr.bf16.mxu0 0
      %2107 = vmatpush1.bf16.msra.mxu0 0
      %2108 = vmatprep.subr.bf16.mxu0 0
      %2109 = vmatpush1.bf16.msra.mxu0 0
      %2110 = vmatprep.subr.bf16.mxu0 0
      %2111 = vmatpush1.bf16.msra.mxu0 0
      %2112 = vmatprep.subr.bf16.mxu0 0
      %2113 = vmatpush1.bf16.msra.mxu0 0
      %2114 = vmatprep.subr.bf16.mxu0 0
      %2115 = vmatpush1.bf16.msra.mxu0 0
      %2116 = vmatprep.mubr.bf16.mxu0 0
      %2117 = vmatmul.mubr.bf16.gmra.mrb[0].mxu0 %v2082
      %v2118 = vpop.f32.mrb[0].mxu0
      %v2119 = vadd.f32 0.0, %v2118
      %v2120 = vpop.f32.mrb[0].mxu0
      %v2121 = vadd.f32 0.0, %v2120
      %v2122 = vpop.f32.mrb[0].mxu0
      %v2123 = vadd.f32 0.0, %v2122
      %v2124 = vpop.f32.mrb[0].mxu0
      %v2125 = vadd.f32 0.0, %v2124
      %2126 = vdwg.mxu0
      %2127 = vmatprep.subr.bf16.mxu0 0
      %2128 = vmatpush1.bf16.msra.mxu0 %v2075
      %2129 = vmatprep.subr.bf16.mxu0 0
      %2130 = vmatpush1.bf16.msra.mxu0 0
      %2131 = vmatprep.subr.bf16.mxu0 0
      %2132 = vmatpush1.bf16.msra.mxu0 0
      %2133 = vmatprep.subr.bf16.mxu0 0
      %2134 = vmatpush1.bf16.msra.mxu0 0
      %2135 = vmatprep.subr.bf16.mxu0 0
      %2136 = vmatpush1.bf16.msra.mxu0 0
      %2137 = vmatprep.subr.bf16.mxu0 0
      %2138 = vmatpush1.bf16.msra.mxu0 0
      %2139 = vmatprep.subr.bf16.mxu0 0
      %2140 = vmatpush1.bf16.msra.mxu0 0
      %2141 = vmatprep.subr.bf16.mxu0 0
      %2142 = vmatpush1.bf16.msra.mxu0 0
      %2143 = vmatprep.subr.bf16.mxu0 0
      %2144 = vmatpush1.bf16.msra.mxu0 0
      %2145 = vmatprep.subr.bf16.mxu0 0
      %2146 = vmatpush1.bf16.msra.mxu0 0
      %2147 = vmatprep.subr.bf16.mxu0 0
      %2148 = vmatpush1.bf16.msra.mxu0 0
      %2149 = vmatprep.subr.bf16.mxu0 0
      %2150 = vmatpush1.bf16.msra.mxu0 0
      %2151 = vmatprep.subr.bf16.mxu0 0
      %2152 = vmatpush1.bf16.msra.mxu0 0
      %2153 = vmatprep.subr.bf16.mxu0 0
      %2154 = vmatpush1.bf16.msra.mxu0 0
      %2155 = vmatprep.subr.bf16.mxu0 0
      %2156 = vmatpush1.bf16.msra.mxu0 0
      %2157 = vmatprep.subr.bf16.mxu0 0
      %2158 = vmatpush1.bf16.msra.mxu0 0
      %2159 = vmatprep.mubr.bf16.mxu0 0
      %2160 = vmatmul.mubr.bf16.gmra.mrb[0].mxu0 %v2082
      %v2161 = vpop.f32.mrb[0].mxu0
      %v2162 = vadd.f32 0.0, %v2161
      %v2163 = vpop.f32.mrb[0].mxu0
      %v2164 = vpop.f32.mrb[0].mxu0
      %v2165 = vadd.f32 0.0, %v2164
      %v2166 = vpop.f32.mrb[0].mxu0
      %2167 = vdwg.mxu0
      %v2168 = vadd.f32 %v2056, %v2119
      %v2169 = vadd.f32 %v2057, %v2121
      %v2170 = vadd.f32 %v2058, %v2162
      %v2171 = vadd.f32 %v2059, %v2123
      %v2172 = vadd.f32 %v2060, %v2125
      %v2173 = vadd.f32 %v2061, %v2165
      %s2174 = scalar_lea.vmem %s5, 40
      %v2175 = vld [vmem:[%s2174] sm:$0xf]
      %v2176 = vld [vmem:[%s2174 + $0x4] sm:$0xf]
      %v2179 = vunpack.c.l.b16 %v2175
      %v2180 = vunpack.c.l.b16 %v2176
      %v2181 = vpack.c.b16 %v2180, %v2179
      %2182 = vrot.lane.b32.xlu0 %v1632, 108
      %v2183 = vpop.permute.xlu0 %2182
      %2184 = vrot.lane.b32.xlu0 %v1633, 108
      %v2185 = vpop.permute.xlu0 %2184
      %2186 = vrot.lane.b32.xlu0 %v1634, 108
      %v2187 = vpop.permute.xlu0 %2186
      %v2188 = vsel %vm1107, %v2183, %v2185
      %v2189 = vsel %vm1107, %v2185, %v2187
      %v2194 = vsel %vm574, %v2181, 0
      %2196 = vmatprep.subr.bf16.mxu0 %v2189
      %2197 = vmatpush1.bf16.msra.mxu0 %v2188
      %2198 = vmatprep.subr.bf16.mxu0 0
      %2199 = vmatpush1.bf16.msra.mxu0 0
      %2200 = vmatprep.subr.bf16.mxu0 0
      %2201 = vmatpush1.bf16.msra.mxu0 0
      %2202 = vmatprep.subr.bf16.mxu0 0
      %2203 = vmatpush1.bf16.msra.mxu0 0
      %2204 = vmatprep.subr.bf16.mxu0 0
      %2205 = vmatpush1.bf16.msra.mxu0 0
      %2206 = vmatprep.subr.bf16.mxu0 0
      %2207 = vmatpush1.bf16.msra.mxu0 0
      %2208 = vmatprep.subr.bf16.mxu0 0
      %2209 = vmatpush1.bf16.msra.mxu0 0
      %2210 = vmatprep.subr.bf16.mxu0 0
      %2211 = vmatpush1.bf16.msra.mxu0 0
      %2212 = vmatprep.subr.bf16.mxu0 0
      %2213 = vmatpush1.bf16.msra.mxu0 0
      %2214 = vmatprep.subr.bf16.mxu0 0
      %2215 = vmatpush1.bf16.msra.mxu0 0
      %2216 = vmatprep.subr.bf16.mxu0 0
      %2217 = vmatpush1.bf16.msra.mxu0 0
      %2218 = vmatprep.subr.bf16.mxu0 0
      %2219 = vmatpush1.bf16.msra.mxu0 0
      %2220 = vmatprep.subr.bf16.mxu0 0
      %2221 = vmatpush1.bf16.msra.mxu0 0
      %2222 = vmatprep.subr.bf16.mxu0 0
      %2223 = vmatpush1.bf16.msra.mxu0 0
      %2224 = vmatprep.subr.bf16.mxu0 0
      %2225 = vmatpush1.bf16.msra.mxu0 0
      %2226 = vmatprep.subr.bf16.mxu0 0
      %2227 = vmatpush1.bf16.msra.mxu0 0
      %2228 = vmatprep.mubr.bf16.mxu0 0
      %2229 = vmatmul.mubr.bf16.gmra.mrb[0].mxu0 %v2194
      %v2230 = vpop.f32.mrb[0].mxu0
      %v2231 = vadd.f32 0.0, %v2230
      %v2232 = vpop.f32.mrb[0].mxu0
      %v2233 = vadd.f32 0.0, %v2232
      %v2234 = vpop.f32.mrb[0].mxu0
      %v2235 = vadd.f32 0.0, %v2234
      %v2236 = vpop.f32.mrb[0].mxu0
      %v2237 = vadd.f32 0.0, %v2236
      %2238 = vdwg.mxu0
      %2239 = vmatprep.subr.bf16.mxu0 0
      %2240 = vmatpush1.bf16.msra.mxu0 %v2187
      %2241 = vmatprep.subr.bf16.mxu0 0
      %2242 = vmatpush1.bf16.msra.mxu0 0
      %2243 = vmatprep.subr.bf16.mxu0 0
      %2244 = vmatpush1.bf16.msra.mxu0 0
      %2245 = vmatprep.subr.bf16.mxu0 0
      %2246 = vmatpush1.bf16.msra.mxu0 0
      %2247 = vmatprep.subr.bf16.mxu0 0
      %2248 = vmatpush1.bf16.msra.mxu0 0
      %2249 = vmatprep.subr.bf16.mxu0 0
      %2250 = vmatpush1.bf16.msra.mxu0 0
      %2251 = vmatprep.subr.bf16.mxu0 0
      %2252 = vmatpush1.bf16.msra.mxu0 0
      %2253 = vmatprep.subr.bf16.mxu0 0
      %2254 = vmatpush1.bf16.msra.mxu0 0
      %2255 = vmatprep.subr.bf16.mxu0 0
      %2256 = vmatpush1.bf16.msra.mxu0 0
      %2257 = vmatprep.subr.bf16.mxu0 0
      %2258 = vmatpush1.bf16.msra.mxu0 0
      %2259 = vmatprep.subr.bf16.mxu0 0
      %2260 = vmatpush1.bf16.msra.mxu0 0
      %2261 = vmatprep.subr.bf16.mxu0 0
      %2262 = vmatpush1.bf16.msra.mxu0 0
      %2263 = vmatprep.subr.bf16.mxu0 0
      %2264 = vmatpush1.bf16.msra.mxu0 0
      %2265 = vmatprep.subr.bf16.mxu0 0
      %2266 = vmatpush1.bf16.msra.mxu0 0
      %2267 = vmatprep.subr.bf16.mxu0 0
      %2268 = vmatpush1.bf16.msra.mxu0 0
      %2269 = vmatprep.subr.bf16.mxu0 0
      %2270 = vmatpush1.bf16.msra.mxu0 0
      %2271 = vmatprep.mubr.bf16.mxu0 0
      %2272 = vmatmul.mubr.bf16.gmra.mrb[0].mxu0 %v2194
      %v2273 = vpop.f32.mrb[0].mxu0
      %v2274 = vadd.f32 0.0, %v2273
      %v2275 = vpop.f32.mrb[0].mxu0
      %v2276 = vpop.f32.mrb[0].mxu0
      %v2277 = vadd.f32 0.0, %v2276
      %v2278 = vpop.f32.mrb[0].mxu0
      %2279 = vdwg.mxu0
      %v2280 = vadd.f32 %v2168, %v2231
      %v2281 = vadd.f32 %v2169, %v2233
      %v2282 = vadd.f32 %v2170, %v2274
      %v2283 = vadd.f32 %v2171, %v2235
      %v2284 = vadd.f32 %v2172, %v2237
      %v2285 = vadd.f32 %v2173, %v2277
      %s2286 = scalar_lea.vmem %s5, 48
      %v2287 = vld [vmem:[%s2286] sm:$0xf]
      %v2288 = vld [vmem:[%s2286 + $0x4] sm:$0xf]
      %v2291 = vunpack.c.l.b16 %v2287
      %v2292 = vunpack.c.l.b16 %v2288
      %v2293 = vpack.c.b16 %v2292, %v2291
      %2294 = vrot.lane.b32.xlu0 %v1632, 92
      %v2295 = vpop.permute.xlu0 %2294
      %2296 = vrot.lane.b32.xlu0 %v1633, 92
      %v2297 = vpop.permute.xlu0 %2296
      %2298 = vrot.lane.b32.xlu0 %v1634, 92
      %v2299 = vpop.permute.xlu0 %2298
      %v2300 = vsel %vm1220, %v2295, %v2297
      %v2301 = vsel %vm1220, %v2297, %v2299
      %v2306 = vsel %vm574, %v2293, 0
      %2308 = vmatprep.subr.bf16.mxu0 %v2301
      %2309 = vmatpush1.bf16.msra.mxu0 %v2300
      %2310 = vmatprep.subr.bf16.mxu0 0
      %2311 = vmatpush1.bf16.msra.mxu0 0
      %2312 = vmatprep.subr.bf16.mxu0 0
      %2313 = vmatpush1.bf16.msra.mxu0 0
      %2314 = vmatprep.subr.bf16.mxu0 0
      %2315 = vmatpush1.bf16.msra.mxu0 0
      %2316 = vmatprep.subr.bf16.mxu0 0
      %2317 = vmatpush1.bf16.msra.mxu0 0
      %2318 = vmatprep.subr.bf16.mxu0 0
      %2319 = vmatpush1.bf16.msra.mxu0 0
      %2320 = vmatprep.subr.bf16.mxu0 0
      %2321 = vmatpush1.bf16.msra.mxu0 0
      %2322 = vmatprep.subr.bf16.mxu0 0
      %2323 = vmatpush1.bf16.msra.mxu0 0
      %2324 = vmatprep.subr.bf16.mxu0 0
      %2325 = vmatpush1.bf16.msra.mxu0 0
      %2326 = vmatprep.subr.bf16.mxu0 0
      %2327 = vmatpush1.bf16.msra.mxu0 0
      %2328 = vmatprep.subr.bf16.mxu0 0
      %2329 = vmatpush1.bf16.msra.mxu0 0
      %2330 = vmatprep.subr.bf16.mxu0 0
      %2331 = vmatpush1.bf16.msra.mxu0 0
      %2332 = vmatprep.subr.bf16.mxu0 0
      %2333 = vmatpush1.bf16.msra.mxu0 0
      %2334 = vmatprep.subr.bf16.mxu0 0
      %2335 = vmatpush1.bf16.msra.mxu0 0
      %2336 = vmatprep.subr.bf16.mxu0 0
      %2337 = vmatpush1.bf16.msra.mxu0 0
      %2338 = vmatprep.subr.bf16.mxu0 0
      %2339 = vmatpush1.bf16.msra.mxu0 0
      %2340 = vmatprep.mubr.bf16.mxu0 0
      %2341 = vmatmul.mubr.bf16.gmra.mrb[0].mxu0 %v2306
      %v2342 = vpop.f32.mrb[0].mxu0
      %v2343 = vadd.f32 0.0, %v2342
      %v2344 = vpop.f32.mrb[0].mxu0
      %v2345 = vadd.f32 0.0, %v2344
      %v2346 = vpop.f32.mrb[0].mxu0
      %v2347 = vadd.f32 0.0, %v2346
      %v2348 = vpop.f32.mrb[0].mxu0
      %v2349 = vadd.f32 0.0, %v2348
      %2350 = vdwg.mxu0
      %2351 = vmatprep.subr.bf16.mxu0 0
      %2352 = vmatpush1.bf16.msra.mxu0 %v2299
      %2353 = vmatprep.subr.bf16.mxu0 0
      %2354 = vmatpush1.bf16.msra.mxu0 0
      %2355 = vmatprep.subr.bf16.mxu0 0
      %2356 = vmatpush1.bf16.msra.mxu0 0
      %2357 = vmatprep.subr.bf16.mxu0 0
      %2358 = vmatpush1.bf16.msra.mxu0 0
      %2359 = vmatprep.subr.bf16.mxu0 0
      %2360 = vmatpush1.bf16.msra.mxu0 0
      %2361 = vmatprep.subr.bf16.mxu0 0
      %2362 = vmatpush1.bf16.msra.mxu0 0
      %2363 = vmatprep.subr.bf16.mxu0 0
      %2364 = vmatpush1.bf16.msra.mxu0 0
      %2365 = vmatprep.subr.bf16.mxu0 0
      %2366 = vmatpush1.bf16.msra.mxu0 0
      %2367 = vmatprep.subr.bf16.mxu0 0
      %2368 = vmatpush1.bf16.msra.mxu0 0
      %2369 = vmatprep.subr.bf16.mxu0 0
      %2370 = vmatpush1.bf16.msra.mxu0 0
      %2371 = vmatprep.subr.bf16.mxu0 0
      %2372 = vmatpush1.bf16.msra.mxu0 0
      %2373 = vmatprep.subr.bf16.mxu0 0
      %2374 = vmatpush1.bf16.msra.mxu0 0
      %2375 = vmatprep.subr.bf16.mxu0 0
      %2376 = vmatpush1.bf16.msra.mxu0 0
      %2377 = vmatprep.subr.bf16.mxu0 0
      %2378 = vmatpush1.bf16.msra.mxu0 0
      %2379 = vmatprep.subr.bf16.mxu0 0
      %2380 = vmatpush1.bf16.msra.mxu0 0
      %2381 = vmatprep.subr.bf16.mxu0 0
      %2382 = vmatpush1.bf16.msra.mxu0 0
      %2383 = vmatprep.mubr.bf16.mxu0 0
      %2384 = vmatmul.mubr.bf16.gmra.mrb[0].mxu0 %v2306
      %v2385 = vpop.f32.mrb[0].mxu0
      %v2386 = vadd.f32 0.0, %v2385
      %v2387 = vpop.f32.mrb[0].mxu0
      %v2388 = vpop.f32.mrb[0].mxu0
      %v2389 = vadd.f32 0.0, %v2388
      %v2390 = vpop.f32.mrb[0].mxu0
      %2391 = vdwg.mxu0
      %v2392 = vadd.f32 %v2280, %v2343
      %v2393 = vadd.f32 %v2281, %v2345
      %v2394 = vadd.f32 %v2282, %v2386
      %v2395 = vadd.f32 %v2283, %v2347
      %v2396 = vadd.f32 %v2284, %v2349
      %v2397 = vadd.f32 %v2285, %v2389
      %s2398 = scalar_lea.vmem %s5, 56
      %v2399 = vld [vmem:[%s2398] sm:$0xf]
      %v2400 = vld [vmem:[%s2398 + $0x4] sm:$0xf]
      %v2403 = vunpack.c.l.b16 %v2399
      %v2404 = vunpack.c.l.b16 %v2400
      %v2405 = vpack.c.b16 %v2404, %v2403
      %2406 = vrot.lane.b32.xlu0 %v1632, 91
      %v2407 = vpop.permute.xlu0 %2406
      %2408 = vrot.lane.b32.xlu0 %v1633, 91
      %v2409 = vpop.permute.xlu0 %2408
      %2410 = vrot.lane.b32.xlu0 %v1634, 91
      %v2411 = vpop.permute.xlu0 %2410
      %v2412 = vsel %vm1333, %v2407, %v2409
      %v2413 = vsel %vm1333, %v2409, %v2411
      %v2418 = vsel %vm574, %v2405, 0
      %2420 = vmatprep.subr.bf16.mxu0 %v2413
      %2421 = vmatpush1.bf16.msra.mxu0 %v2412
      %2422 = vmatprep.subr.bf16.mxu0 0
      %2423 = vmatpush1.bf16.msra.mxu0 0
      %2424 = vmatprep.subr.bf16.mxu0 0
      %2425 = vmatpush1.bf16.msra.mxu0 0
      %2426 = vmatprep.subr.bf16.mxu0 0
      %2427 = vmatpush1.bf16.msra.mxu0 0
      %2428 = vmatprep.subr.bf16.mxu0 0
      %2429 = vmatpush1.bf16.msra.mxu0 0
      %2430 = vmatprep.subr.bf16.mxu0 0
      %2431 = vmatpush1.bf16.msra.mxu0 0
      %2432 = vmatprep.subr.bf16.mxu0 0
      %2433 = vmatpush1.bf16.msra.mxu0 0
      %2434 = vmatprep.subr.bf16.mxu0 0
      %2435 = vmatpush1.bf16.msra.mxu0 0
      %2436 = vmatprep.subr.bf16.mxu0 0
      %2437 = vmatpush1.bf16.msra.mxu0 0
      %2438 = vmatprep.subr.bf16.mxu0 0
      %2439 = vmatpush1.bf16.msra.mxu0 0
      %2440 = vmatprep.subr.bf16.mxu0 0
      %2441 = vmatpush1.bf16.msra.mxu0 0
      %2442 = vmatprep.subr.bf16.mxu0 0
      %2443 = vmatpush1.bf16.msra.mxu0 0
      %2444 = vmatprep.subr.bf16.mxu0 0
      %2445 = vmatpush1.bf16.msra.mxu0 0
      %2446 = vmatprep.subr.bf16.mxu0 0
      %2447 = vmatpush1.bf16.msra.mxu0 0
      %2448 = vmatprep.subr.bf16.mxu0 0
      %2449 = vmatpush1.bf16.msra.mxu0 0
      %2450 = vmatprep.subr.bf16.mxu0 0
      %2451 = vmatpush1.bf16.msra.mxu0 0
      %2452 = vmatprep.mubr.bf16.mxu0 0
      %2453 = vmatmul.mubr.bf16.gmra.mrb[0].mxu0 %v2418
      %v2454 = vpop.f32.mrb[0].mxu0
      %v2455 = vadd.f32 0.0, %v2454
      %v2456 = vpop.f32.mrb[0].mxu0
      %v2457 = vadd.f32 0.0, %v2456
      %v2458 = vpop.f32.mrb[0].mxu0
      %v2459 = vadd.f32 0.0, %v2458
      %v2460 = vpop.f32.mrb[0].mxu0
      %v2461 = vadd.f32 0.0, %v2460
      %2462 = vdwg.mxu0
      %2463 = vmatprep.subr.bf16.mxu0 0
      %2464 = vmatpush1.bf16.msra.mxu0 %v2411
      %2465 = vmatprep.subr.bf16.mxu0 0
      %2466 = vmatpush1.bf16.msra.mxu0 0
      %2467 = vmatprep.subr.bf16.mxu0 0
      %2468 = vmatpush1.bf16.msra.mxu0 0
      %2469 = vmatprep.subr.bf16.mxu0 0
      %2470 = vmatpush1.bf16.msra.mxu0 0
      %2471 = vmatprep.subr.bf16.mxu0 0
      %2472 = vmatpush1.bf16.msra.mxu0 0
      %2473 = vmatprep.subr.bf16.mxu0 0
      %2474 = vmatpush1.bf16.msra.mxu0 0
      %2475 = vmatprep.subr.bf16.mxu0 0
      %2476 = vmatpush1.bf16.msra.mxu0 0
      %2477 = vmatprep.subr.bf16.mxu0 0
      %2478 = vmatpush1.bf16.msra.mxu0 0
      %2479 = vmatprep.subr.bf16.mxu0 0
      %2480 = vmatpush1.bf16.msra.mxu0 0
      %2481 = vmatprep.subr.bf16.mxu0 0
      %2482 = vmatpush1.bf16.msra.mxu0 0
      %2483 = vmatprep.subr.bf16.mxu0 0
      %2484 = vmatpush1.bf16.msra.mxu0 0
      %2485 = vmatprep.subr.bf16.mxu0 0
      %2486 = vmatpush1.bf16.msra.mxu0 0
      %2487 = vmatprep.subr.bf16.mxu0 0
      %2488 = vmatpush1.bf16.msra.mxu0 0
      %2489 = vmatprep.subr.bf16.mxu0 0
      %2490 = vmatpush1.bf16.msra.mxu0 0
      %2491 = vmatprep.subr.bf16.mxu0 0
      %2492 = vmatpush1.bf16.msra.mxu0 0
      %2493 = vmatprep.subr.bf16.mxu0 0
      %2494 = vmatpush1.bf16.msra.mxu0 0
      %2495 = vmatprep.mubr.bf16.mxu0 0
      %2496 = vmatmul.mubr.bf16.gmra.mrb[0].mxu0 %v2418
      %v2497 = vpop.f32.mrb[0].mxu0
      %v2498 = vadd.f32 0.0, %v2497
      %v2499 = vpop.f32.mrb[0].mxu0
      %v2500 = vpop.f32.mrb[0].mxu0
      %v2501 = vadd.f32 0.0, %v2500
      %v2502 = vpop.f32.mrb[0].mxu0
      %2503 = vdwg.mxu0
      %v2504 = vadd.f32 %v2392, %v2455
      %v2505 = vadd.f32 %v2393, %v2457
      %v2506 = vadd.f32 %v2394, %v2498
      %v2507 = vadd.f32 %v2395, %v2459
      %v2508 = vadd.f32 %v2396, %v2461
      %v2509 = vadd.f32 %v2397, %v2501
      %s2510 = scalar_lea.vmem %s5, 64
      %v2511 = vld [vmem:[%s2510] sm:$0xf]
      %v2512 = vld [vmem:[%s2510 + $0x4] sm:$0xf]
      %v2515 = vunpack.c.l.b16 %v2511
      %v2516 = vunpack.c.l.b16 %v2512
      %v2517 = vpack.c.b16 %v2516, %v2515
      %2518 = vrot.lane.b32.xlu0 %v1632, 90
      %v2519 = vpop.permute.xlu0 %2518
      %2520 = vrot.lane.b32.xlu0 %v1633, 90
      %v2521 = vpop.permute.xlu0 %2520
      %2522 = vrot.lane.b32.xlu0 %v1634, 90
      %v2523 = vpop.permute.xlu0 %2522
      %v2524 = vsel %vm1446, %v2519, %v2521
      %v2525 = vsel %vm1446, %v2521, %v2523
      %v2530 = vsel %vm574, %v2517, 0
      %2532 = vmatprep.subr.bf16.mxu0 %v2525
      %2533 = vmatpush1.bf16.msra.mxu0 %v2524
      %2534 = vmatprep.subr.bf16.mxu0 0
      %2535 = vmatpush1.bf16.msra.mxu0 0
      %2536 = vmatprep.subr.bf16.mxu0 0
      %2537 = vmatpush1.bf16.msra.mxu0 0
      %2538 = vmatprep.subr.bf16.mxu0 0
      %2539 = vmatpush1.bf16.msra.mxu0 0
      %2540 = vmatprep.subr.bf16.mxu0 0
      %2541 = vmatpush1.bf16.msra.mxu0 0
      %2542 = vmatprep.subr.bf16.mxu0 0
      %2543 = vmatpush1.bf16.msra.mxu0 0
      %2544 = vmatprep.subr.bf16.mxu0 0
      %2545 = vmatpush1.bf16.msra.mxu0 0
      %2546 = vmatprep.subr.bf16.mxu0 0
      %2547 = vmatpush1.bf16.msra.mxu0 0
      %2548 = vmatprep.subr.bf16.mxu0 0
      %2549 = vmatpush1.bf16.msra.mxu0 0
      %2550 = vmatprep.subr.bf16.mxu0 0
      %2551 = vmatpush1.bf16.msra.mxu0 0
      %2552 = vmatprep.subr.bf16.mxu0 0
      %2553 = vmatpush1.bf16.msra.mxu0 0
      %2554 = vmatprep.subr.bf16.mxu0 0
      %2555 = vmatpush1.bf16.msra.mxu0 0
      %2556 = vmatprep.subr.bf16.mxu0 0
      %2557 = vmatpush1.bf16.msra.mxu0 0
      %2558 = vmatprep.subr.bf16.mxu0 0
      %2559 = vmatpush1.bf16.msra.mxu0 0
      %2560 = vmatprep.subr.bf16.mxu0 0
      %2561 = vmatpush1.bf16.msra.mxu0 0
      %2562 = vmatprep.subr.bf16.mxu0 0
      %2563 = vmatpush1.bf16.msra.mxu0 0
      %2564 = vmatprep.mubr.bf16.mxu0 0
      %2565 = vmatmul.mubr.bf16.gmra.mrb[0].mxu0 %v2530
      %v2566 = vpop.f32.mrb[0].mxu0
      %v2567 = vadd.f32 0.0, %v2566
      %v2568 = vpop.f32.mrb[0].mxu0
      %v2569 = vadd.f32 0.0, %v2568
      %v2570 = vpop.f32.mrb[0].mxu0
      %v2571 = vadd.f32 0.0, %v2570
      %v2572 = vpop.f32.mrb[0].mxu0
      %v2573 = vadd.f32 0.0, %v2572
      %2574 = vdwg.mxu0
      %2575 = vmatprep.subr.bf16.mxu0 0
      %2576 = vmatpush1.bf16.msra.mxu0 %v2523
      %2577 = vmatprep.subr.bf16.mxu0 0
      %2578 = vmatpush1.bf16.msra.mxu0 0
      %2579 = vmatprep.subr.bf16.mxu0 0
      %2580 = vmatpush1.bf16.msra.mxu0 0
      %2581 = vmatprep.subr.bf16.mxu0 0
      %2582 = vmatpush1.bf16.msra.mxu0 0
      %2583 = vmatprep.subr.bf16.mxu0 0
      %2584 = vmatpush1.bf16.msra.mxu0 0
      %2585 = vmatprep.subr.bf16.mxu0 0
      %2586 = vmatpush1.bf16.msra.mxu0 0
      %2587 = vmatprep.subr.bf16.mxu0 0
      %2588 = vmatpush1.bf16.msra.mxu0 0
      %2589 = vmatprep.subr.bf16.mxu0 0
      %2590 = vmatpush1.bf16.msra.mxu0 0
      %2591 = vmatprep.subr.bf16.mxu0 0
      %2592 = vmatpush1.bf16.msra.mxu0 0
      %2593 = vmatprep.subr.bf16.mxu0 0
      %2594 = vmatpush1.bf16.msra.mxu0 0
      %2595 = vmatprep.subr.bf16.mxu0 0
      %2596 = vmatpush1.bf16.msra.mxu0 0
      %2597 = vmatprep.subr.bf16.mxu0 0
      %2598 = vmatpush1.bf16.msra.mxu0 0
      %2599 = vmatprep.subr.bf16.mxu0 0
      %2600 = vmatpush1.bf16.msra.mxu0 0
      %2601 = vmatprep.subr.bf16.mxu0 0
      %2602 = vmatpush1.bf16.msra.mxu0 0
      %2603 = vmatprep.subr.bf16.mxu0 0
      %2604 = vmatpush1.bf16.msra.mxu0 0
      %2605 = vmatprep.subr.bf16.mxu0 0
      %2606 = vmatpush1.bf16.msra.mxu0 0
      %2607 = vmatprep.mubr.bf16.mxu0 0
      %2608 = vmatmul.mubr.bf16.gmra.mrb[0].mxu0 %v2530
      %v2609 = vpop.f32.mrb[0].mxu0
      %v2610 = vadd.f32 0.0, %v2609
      %v2611 = vpop.f32.mrb[0].mxu0
      %v2612 = vpop.f32.mrb[0].mxu0
      %v2613 = vadd.f32 0.0, %v2612
      %v2614 = vpop.f32.mrb[0].mxu0
      %2615 = vdwg.mxu0
      %v2616 = vadd.f32 %v2504, %v2567
      %v2617 = vadd.f32 %v2505, %v2569
      %v2618 = vadd.f32 %v2506, %v2610
      %v2619 = vadd.f32 %v2507, %v2571
      %v2620 = vadd.f32 %v2508, %v2573
      %v2621 = vadd.f32 %v2509, %v2613
      %v2622 = vld [vmem:[%s6] sm:$0xff]
      %v2623 = vld [vmem:[%s6 + $0x8] sm:$0xff]
      %2625 = vset.pattern.permute.xlu0 0
      %2626 = vperm.xlu0 %2625, %v2622
      %v2627 = vpop.permute.xlu0 %2626
      %2630 = vset.pattern.permute.xlu0 0
      %2631 = vperm.xlu0 %2630, %v2623
      %v2632 = vpop.permute.xlu0 %2631
      %v2634 = vmul.f32 %v2616, %v2627
      %v2635 = vmul.f32 %v2617, %v2627
      %v2636 = vmul.f32 %v2618, %v2627
      %v2637 = vmul.f32 %v2619, %v2632
      %v2638 = vmul.f32 %v2620, %v2632
      %v2639 = vmul.f32 %v2621, %v2632
      %v2640 = vld [vmem:[%s7] sm:$0xff]
      %v2641 = vld [vmem:[%s7 + $0x8] sm:$0xff]
      %2643 = vset.pattern.permute.xlu0 0
      %2644 = vperm.xlu0 %2643, %v2640
      %v2645 = vpop.permute.xlu0 %2644
      %2648 = vset.pattern.permute.xlu0 0
      %2649 = vperm.xlu0 %2648, %v2641
      %v2650 = vpop.permute.xlu0 %2649
      %v2652 = vadd.f32 %v2634, %v2645
      %v2653 = vadd.f32 %v2635, %v2645
      %v2654 = vadd.f32 %v2636, %v2645
      %v2655 = vadd.f32 %v2637, %v2650
      %v2656 = vadd.f32 %v2638, %v2650
      %v2657 = vadd.f32 %v2639, %v2650
      %v2658 = vmax.f32 %v2652, 0.0
      %v2659 = vmax.f32 %v2653, 0.0
      %v2660 = vmax.f32 %v2654, 0.0
      %v2661 = vmax.f32 %v2655, 0.0
      %v2662 = vmax.f32 %v2656, 0.0
      %v2663 = vmax.f32 %v2657, 0.0
      %v2664 = vmul.f32 %v2658, %v1591
      %v2665 = vmul.f32 %v2659, %v1595
      %v2666 = vmul.f32 %v2660, %v1599
      %v2667 = vmul.f32 %v2661, %v1591
      %v2668 = vmul.f32 %v2662, %v1595
      %v2669 = vmul.f32 %v2663, %v1599
      %v2670 = vpack.c.bf16 %v2667, %v2664
      %v2671 = vpack.c.bf16 %v2668, %v2665
      %v2672 = vpack.c.bf16 %v2669, %v2666
      %2676 = vrot.lane.b32.xlu0 %v2670, 19
      %v2677 = vpop.permute.xlu0 %2676
      %2678 = vrot.lane.b32.xlu0 %v2671, 19
      %v2679 = vpop.permute.xlu0 %2678
      %2680 = vrot.lane.b32.xlu0 %v2672, 19
      %v2681 = vpop.permute.xlu0 %2680
      %v2682 = vsel %vm1621, %v2677, %v2679
      %v2683 = vsel %vm1621, %v2679, %v2681
      %2687 = vst.msk [vmem:[#allocation2] sm:$0xff] %vm1627, %v2677
      %2688 = vst [vmem:[#allocation2 + $0x8] sm:$0xff] %v2682
      %2689 = vst.msk [vmem:[#allocation2 + $0x10] sm:$0xff] %vm1630, %v2683
      %v2690 = vld [vmem:[#allocation2] sm:$0xff]
      %v2691 = vld [vmem:[#allocation2 + $0x8] sm:$0xff]
      %v2692 = vld [vmem:[#allocation2 + $0x10] sm:$0xff]
      %v2693 = vld [vmem:[%s8] sm:$0xf]
      %v2694 = vld [vmem:[%s8 + $0x4] sm:$0xf]
      %s2695 = scalar_lea.vmem %s8, 8
      %v2696 = vld [vmem:[%s2695] sm:$0xf]
      %v2697 = vld [vmem:[%s2695 + $0x4] sm:$0xf]
      %v2700 = vunpack.c.l.b16 %v2696
      %v2701 = vunpack.c.l.b16 %v2697
      %v2702 = vpack.c.b16 %v2701, %v2700
      %2706 = vrot.lane.b32.xlu0 %v2690, 127
      %v2707 = vpop.permute.xlu0 %2706
      %2708 = vrot.lane.b32.xlu0 %v2691, 127
      %v2709 = vpop.permute.xlu0 %2708
      %2710 = vrot.lane.b32.xlu0 %v2692, 127
      %v2711 = vpop.permute.xlu0 %2710
      %v2712 = vsel %vm568, %v2707, %v2709
      %v2713 = vsel %vm568, %v2709, %v2711
      %v2718 = vsel %vm574, %v2702, 0
      %2720 = vmatprep.subr.bf16.mxu0 %v2713
      %2721 = vmatpush1.bf16.msra.mxu0 %v2712
      %2722 = vmatprep.subr.bf16.mxu0 0
      %2723 = vmatpush1.bf16.msra.mxu0 0
      %2724 = vmatprep.subr.bf16.mxu0 0
      %2725 = vmatpush1.bf16.msra.mxu0 0
      %2726 = vmatprep.subr.bf16.mxu0 0
      %2727 = vmatpush1.bf16.msra.mxu0 0
      %2728 = vmatprep.subr.bf16.mxu0 0
      %2729 = vmatpush1.bf16.msra.mxu0 0
      %2730 = vmatprep.subr.bf16.mxu0 0
      %2731 = vmatpush1.bf16.msra.mxu0 0
      %2732 = vmatprep.subr.bf16.mxu0 0
      %2733 = vmatpush1.bf16.msra.mxu0 0
      %2734 = vmatprep.subr.bf16.mxu0 0
      %2735 = vmatpush1.bf16.msra.mxu0 0
      %2736 = vmatprep.subr.bf16.mxu0 0
      %2737 = vmatpush1.bf16.msra.mxu0 0
      %2738 = vmatprep.subr.bf16.mxu0 0
      %2739 = vmatpush1.bf16.msra.mxu0 0
      %2740 = vmatprep.subr.bf16.mxu0 0
      %2741 = vmatpush1.bf16.msra.mxu0 0
      %2742 = vmatprep.subr.bf16.mxu0 0
      %2743 = vmatpush1.bf16.msra.mxu0 0
      %2744 = vmatprep.subr.bf16.mxu0 0
      %2745 = vmatpush1.bf16.msra.mxu0 0
      %2746 = vmatprep.subr.bf16.mxu0 0
      %2747 = vmatpush1.bf16.msra.mxu0 0
      %2748 = vmatprep.subr.bf16.mxu0 0
      %2749 = vmatpush1.bf16.msra.mxu0 0
      %2750 = vmatprep.subr.bf16.mxu0 0
      %2751 = vmatpush1.bf16.msra.mxu0 0
      %2752 = vmatprep.mubr.bf16.mxu0 0
      %2753 = vmatmul.mubr.bf16.gmra.mrb[0].mxu0 %v2718
      %v2754 = vpop.f32.mrb[0].mxu0
      %v2755 = vadd.f32 0.0, %v2754
      %v2756 = vpop.f32.mrb[0].mxu0
      %v2757 = vadd.f32 0.0, %v2756
      %v2758 = vpop.f32.mrb[0].mxu0
      %v2759 = vadd.f32 0.0, %v2758
      %v2760 = vpop.f32.mrb[0].mxu0
      %v2761 = vadd.f32 0.0, %v2760
      %2762 = vdwg.mxu0
      %2763 = vmatprep.subr.bf16.mxu0 0
      %2764 = vmatpush1.bf16.msra.mxu0 %v2711
      %2765 = vmatprep.subr.bf16.mxu0 0
      %2766 = vmatpush1.bf16.msra.mxu0 0
      %2767 = vmatprep.subr.bf16.mxu0 0
      %2768 = vmatpush1.bf16.msra.mxu0 0
      %2769 = vmatprep.subr.bf16.mxu0 0
      %2770 = vmatpush1.bf16.msra.mxu0 0
      %2771 = vmatprep.subr.bf16.mxu0 0
      %2772 = vmatpush1.bf16.msra.mxu0 0
      %2773 = vmatprep.subr.bf16.mxu0 0
      %2774 = vmatpush1.bf16.msra.mxu0 0
      %2775 = vmatprep.subr.bf16.mxu0 0
      %2776 = vmatpush1.bf16.msra.mxu0 0
      %2777 = vmatprep.subr.bf16.mxu0 0
      %2778 = vmatpush1.bf16.msra.mxu0 0
      %2779 = vmatprep.subr.bf16.mxu0 0
      %2780 = vmatpush1.bf16.msra.mxu0 0
      %2781 = vmatprep.subr.bf16.mxu0 0
      %2782 = vmatpush1.bf16.msra.mxu0 0
      %2783 = vmatprep.subr.bf16.mxu0 0
      %2784 = vmatpush1.bf16.msra.mxu0 0
      %2785 = vmatprep.subr.bf16.mxu0 0
      %2786 = vmatpush1.bf16.msra.mxu0 0
      %2787 = vmatprep.subr.bf16.mxu0 0
      %2788 = vmatpush1.bf16.msra.mxu0 0
      %2789 = vmatprep.subr.bf16.mxu0 0
      %2790 = vmatpush1.bf16.msra.mxu0 0
      %2791 = vmatprep.subr.bf16.mxu0 0
      %2792 = vmatpush1.bf16.msra.mxu0 0
      %2793 = vmatprep.subr.bf16.mxu0 0
      %2794 = vmatpush1.bf16.msra.mxu0 0
      %2795 = vmatprep.mubr.bf16.mxu0 0
      %2796 = vmatmul.mubr.bf16.gmra.mrb[0].mxu0 %v2718
      %v2797 = vpop.f32.mrb[0].mxu0
      %v2798 = vadd.f32 0.0, %v2797
      %v2799 = vpop.f32.mrb[0].mxu0
      %v2800 = vpop.f32.mrb[0].mxu0
      %v2801 = vadd.f32 0.0, %v2800
      %v2802 = vpop.f32.mrb[0].mxu0
      %2803 = vdwg.mxu0
      %v2806 = vunpack.c.l.b16 %v2693
      %v2807 = vunpack.c.l.b16 %v2694
      %v2808 = vpack.c.b16 %v2807, %v2806
      %v2810 = vsel %vm574, %v2808, 0
      %2812 = vmatprep.subr.bf16.mxu0 %v2691
      %2813 = vmatpush1.bf16.msra.mxu0 %v2690
      %2814 = vmatprep.subr.bf16.mxu0 0
      %2815 = vmatpush1.bf16.msra.mxu0 0
      %2816 = vmatprep.subr.bf16.mxu0 0
      %2817 = vmatpush1.bf16.msra.mxu0 0
      %2818 = vmatprep.subr.bf16.mxu0 0
      %2819 = vmatpush1.bf16.msra.mxu0 0
      %2820 = vmatprep.subr.bf16.mxu0 0
      %2821 = vmatpush1.bf16.msra.mxu0 0
      %2822 = vmatprep.subr.bf16.mxu0 0
      %2823 = vmatpush1.bf16.msra.mxu0 0
      %2824 = vmatprep.subr.bf16.mxu0 0
      %2825 = vmatpush1.bf16.msra.mxu0 0
      %2826 = vmatprep.subr.bf16.mxu0 0
      %2827 = vmatpush1.bf16.msra.mxu0 0
      %2828 = vmatprep.subr.bf16.mxu0 0
      %2829 = vmatpush1.bf16.msra.mxu0 0
      %2830 = vmatprep.subr.bf16.mxu0 0
      %2831 = vmatpush1.bf16.msra.mxu0 0
      %2832 = vmatprep.subr.bf16.mxu0 0
      %2833 = vmatpush1.bf16.msra.mxu0 0
      %2834 = vmatprep.subr.bf16.mxu0 0
      %2835 = vmatpush1.bf16.msra.mxu0 0
      %2836 = vmatprep.subr.bf16.mxu0 0
      %2837 = vmatpush1.bf16.msra.mxu0 0
      %2838 = vmatprep.subr.bf16.mxu0 0
      %2839 = vmatpush1.bf16.msra.mxu0 0
      %2840 = vmatprep.subr.bf16.mxu0 0
      %2841 = vmatpush1.bf16.msra.mxu0 0
      %2842 = vmatprep.subr.bf16.mxu0 0
      %2843 = vmatpush1.bf16.msra.mxu0 0
      %2844 = vmatprep.mubr.bf16.mxu0 0
      %2845 = vmatmul.mubr.bf16.gmra.mrb[0].mxu0 %v2810
      %v2846 = vpop.f32.mrb[0].mxu0
      %v2847 = vadd.f32 %v2755, %v2846
      %v2848 = vpop.f32.mrb[0].mxu0
      %v2849 = vadd.f32 %v2757, %v2848
      %v2850 = vpop.f32.mrb[0].mxu0
      %v2851 = vadd.f32 %v2759, %v2850
      %v2852 = vpop.f32.mrb[0].mxu0
      %v2853 = vadd.f32 %v2761, %v2852
      %2854 = vdwg.mxu0
      %2855 = vmatprep.subr.bf16.mxu0 0
      %2856 = vmatpush1.bf16.msra.mxu0 %v2692
      %2857 = vmatprep.subr.bf16.mxu0 0
      %2858 = vmatpush1.bf16.msra.mxu0 0
      %2859 = vmatprep.subr.bf16.mxu0 0
      %2860 = vmatpush1.bf16.msra.mxu0 0
      %2861 = vmatprep.subr.bf16.mxu0 0
      %2862 = vmatpush1.bf16.msra.mxu0 0
      %2863 = vmatprep.subr.bf16.mxu0 0
      %2864 = vmatpush1.bf16.msra.mxu0 0
      %2865 = vmatprep.subr.bf16.mxu0 0
      %2866 = vmatpush1.bf16.msra.mxu0 0
      %2867 = vmatprep.subr.bf16.mxu0 0
      %2868 = vmatpush1.bf16.msra.mxu0 0
      %2869 = vmatprep.subr.bf16.mxu0 0
      %2870 = vmatpush1.bf16.msra.mxu0 0
      %2871 = vmatprep.subr.bf16.mxu0 0
      %2872 = vmatpush1.bf16.msra.mxu0 0
      %2873 = vmatprep.subr.bf16.mxu0 0
      %2874 = vmatpush1.bf16.msra.mxu0 0
      %2875 = vmatprep.subr.bf16.mxu0 0
      %2876 = vmatpush1.bf16.msra.mxu0 0
      %2877 = vmatprep.subr.bf16.mxu0 0
      %2878 = vmatpush1.bf16.msra.mxu0 0
      %2879 = vmatprep.subr.bf16.mxu0 0
      %2880 = vmatpush1.bf16.msra.mxu0 0
      %2881 = vmatprep.subr.bf16.mxu0 0
      %2882 = vmatpush1.bf16.msra.mxu0 0
      %2883 = vmatprep.subr.bf16.mxu0 0
      %2884 = vmatpush1.bf16.msra.mxu0 0
      %2885 = vmatprep.subr.bf16.mxu0 0
      %2886 = vmatpush1.bf16.msra.mxu0 0
      %2887 = vmatprep.mubr.bf16.mxu0 0
      %2888 = vmatmul.mubr.bf16.gmra.mrb[0].mxu0 %v2810
      %v2889 = vpop.f32.mrb[0].mxu0
      %v2890 = vadd.f32 %v2798, %v2889
      %v2891 = vpop.f32.mrb[0].mxu0
      %v2892 = vpop.f32.mrb[0].mxu0
      %v2893 = vadd.f32 %v2801, %v2892
      %v2894 = vpop.f32.mrb[0].mxu0
      %2895 = vdwg.mxu0
      %s2896 = scalar_lea.vmem %s8, 16
      %v2897 = vld [vmem:[%s2896] sm:$0xf]
      %v2898 = vld [vmem:[%s2896 + $0x4] sm:$0xf]
      %v2901 = vunpack.c.l.b16 %v2897
      %v2902 = vunpack.c.l.b16 %v2898
      %v2903 = vpack.c.b16 %v2902, %v2901
      %2904 = vrot.lane.b32.xlu0 %v2690, 126
      %v2905 = vpop.permute.xlu0 %2904
      %2906 = vrot.lane.b32.xlu0 %v2691, 126
      %v2907 = vpop.permute.xlu0 %2906
      %2908 = vrot.lane.b32.xlu0 %v2692, 126
      %v2909 = vpop.permute.xlu0 %2908
      %v2910 = vsel %vm768, %v2905, %v2907
      %v2911 = vsel %vm768, %v2907, %v2909
      %v2916 = vsel %vm574, %v2903, 0
      %2918 = vmatprep.subr.bf16.mxu0 %v2911
      %2919 = vmatpush1.bf16.msra.mxu0 %v2910
      %2920 = vmatprep.subr.bf16.mxu0 0
      %2921 = vmatpush1.bf16.msra.mxu0 0
      %2922 = vmatprep.subr.bf16.mxu0 0
      %2923 = vmatpush1.bf16.msra.mxu0 0
      %2924 = vmatprep.subr.bf16.mxu0 0
      %2925 = vmatpush1.bf16.msra.mxu0 0
      %2926 = vmatprep.subr.bf16.mxu0 0
      %2927 = vmatpush1.bf16.msra.mxu0 0
      %2928 = vmatprep.subr.bf16.mxu0 0
      %2929 = vmatpush1.bf16.msra.mxu0 0
      %2930 = vmatprep.subr.bf16.mxu0 0
      %2931 = vmatpush1.bf16.msra.mxu0 0
      %2932 = vmatprep.subr.bf16.mxu0 0
      %2933 = vmatpush1.bf16.msra.mxu0 0
      %2934 = vmatprep.subr.bf16.mxu0 0
      %2935 = vmatpush1.bf16.msra.mxu0 0
      %2936 = vmatprep.subr.bf16.mxu0 0
      %2937 = vmatpush1.bf16.msra.mxu0 0
      %2938 = vmatprep.subr.bf16.mxu0 0
      %2939 = vmatpush1.bf16.msra.mxu0 0
      %2940 = vmatprep.subr.bf16.mxu0 0
      %2941 = vmatpush1.bf16.msra.mxu0 0
      %2942 = vmatprep.subr.bf16.mxu0 0
      %2943 = vmatpush1.bf16.msra.mxu0 0
      %2944 = vmatprep.subr.bf16.mxu0 0
      %2945 = vmatpush1.bf16.msra.mxu0 0
      %2946 = vmatprep.subr.bf16.mxu0 0
      %2947 = vmatpush1.bf16.msra.mxu0 0
      %2948 = vmatprep.subr.bf16.mxu0 0
      %2949 = vmatpush1.bf16.msra.mxu0 0
      %2950 = vmatprep.mubr.bf16.mxu0 0
      %2951 = vmatmul.mubr.bf16.gmra.mrb[0].mxu0 %v2916
      %v2952 = vpop.f32.mrb[0].mxu0
      %v2953 = vadd.f32 0.0, %v2952
      %v2954 = vpop.f32.mrb[0].mxu0
      %v2955 = vadd.f32 0.0, %v2954
      %v2956 = vpop.f32.mrb[0].mxu0
      %v2957 = vadd.f32 0.0, %v2956
      %v2958 = vpop.f32.mrb[0].mxu0
      %v2959 = vadd.f32 0.0, %v2958
      %2960 = vdwg.mxu0
      %2961 = vmatprep.subr.bf16.mxu0 0
      %2962 = vmatpush1.bf16.msra.mxu0 %v2909
      %2963 = vmatprep.subr.bf16.mxu0 0
      %2964 = vmatpush1.bf16.msra.mxu0 0
      %2965 = vmatprep.subr.bf16.mxu0 0
      %2966 = vmatpush1.bf16.msra.mxu0 0
      %2967 = vmatprep.subr.bf16.mxu0 0
      %2968 = vmatpush1.bf16.msra.mxu0 0
      %2969 = vmatprep.subr.bf16.mxu0 0
      %2970 = vmatpush1.bf16.msra.mxu0 0
      %2971 = vmatprep.subr.bf16.mxu0 0
      %2972 = vmatpush1.bf16.msra.mxu0 0
      %2973 = vmatprep.subr.bf16.mxu0 0
      %2974 = vmatpush1.bf16.msra.mxu0 0
      %2975 = vmatprep.subr.bf16.mxu0 0
      %2976 = vmatpush1.bf16.msra.mxu0 0
      %2977 = vmatprep.subr.bf16.mxu0 0
      %2978 = vmatpush1.bf16.msra.mxu0 0
      %2979 = vmatprep.subr.bf16.mxu0 0
      %2980 = vmatpush1.bf16.msra.mxu0 0
      %2981 = vmatprep.subr.bf16.mxu0 0
      %2982 = vmatpush1.bf16.msra.mxu0 0
      %2983 = vmatprep.subr.bf16.mxu0 0
      %2984 = vmatpush1.bf16.msra.mxu0 0
      %2985 = vmatprep.subr.bf16.mxu0 0
      %2986 = vmatpush1.bf16.msra.mxu0 0
      %2987 = vmatprep.subr.bf16.mxu0 0
      %2988 = vmatpush1.bf16.msra.mxu0 0
      %2989 = vmatprep.subr.bf16.mxu0 0
      %2990 = vmatpush1.bf16.msra.mxu0 0
      %2991 = vmatprep.subr.bf16.mxu0 0
      %2992 = vmatpush1.bf16.msra.mxu0 0
      %2993 = vmatprep.mubr.bf16.mxu0 0
      %2994 = vmatmul.mubr.bf16.gmra.mrb[0].mxu0 %v2916
      %v2995 = vpop.f32.mrb[0].mxu0
      %v2996 = vadd.f32 0.0, %v2995
      %v2997 = vpop.f32.mrb[0].mxu0
      %v2998 = vpop.f32.mrb[0].mxu0
      %v2999 = vadd.f32 0.0, %v2998
      %v3000 = vpop.f32.mrb[0].mxu0
      %3001 = vdwg.mxu0
      %v3002 = vadd.f32 %v2847, %v2953
      %v3003 = vadd.f32 %v2849, %v2955
      %v3004 = vadd.f32 %v2890, %v2996
      %v3005 = vadd.f32 %v2851, %v2957
      %v3006 = vadd.f32 %v2853, %v2959
      %v3007 = vadd.f32 %v2893, %v2999
      %s3008 = scalar_lea.vmem %s8, 24
      %v3009 = vld [vmem:[%s3008] sm:$0xf]
      %v3010 = vld [vmem:[%s3008 + $0x4] sm:$0xf]
      %v3013 = vunpack.c.l.b16 %v3009
      %v3014 = vunpack.c.l.b16 %v3010
      %v3015 = vpack.c.b16 %v3014, %v3013
      %3016 = vrot.lane.b32.xlu0 %v2690, 110
      %v3017 = vpop.permute.xlu0 %3016
      %3018 = vrot.lane.b32.xlu0 %v2691, 110
      %v3019 = vpop.permute.xlu0 %3018
      %3020 = vrot.lane.b32.xlu0 %v2692, 110
      %v3021 = vpop.permute.xlu0 %3020
      %v3022 = vsel %vm881, %v3017, %v3019
      %v3023 = vsel %vm881, %v3019, %v3021
      %v3028 = vsel %vm574, %v3015, 0
      %3030 = vmatprep.subr.bf16.mxu0 %v3023
      %3031 = vmatpush1.bf16.msra.mxu0 %v3022
      %3032 = vmatprep.subr.bf16.mxu0 0
      %3033 = vmatpush1.bf16.msra.mxu0 0
      %3034 = vmatprep.subr.bf16.mxu0 0
      %3035 = vmatpush1.bf16.msra.mxu0 0
      %3036 = vmatprep.subr.bf16.mxu0 0
      %3037 = vmatpush1.bf16.msra.mxu0 0
      %3038 = vmatprep.subr.bf16.mxu0 0
      %3039 = vmatpush1.bf16.msra.mxu0 0
      %3040 = vmatprep.subr.bf16.mxu0 0
      %3041 = vmatpush1.bf16.msra.mxu0 0
      %3042 = vmatprep.subr.bf16.mxu0 0
      %3043 = vmatpush1.bf16.msra.mxu0 0
      %3044 = vmatprep.subr.bf16.mxu0 0
      %3045 = vmatpush1.bf16.msra.mxu0 0
      %3046 = vmatprep.subr.bf16.mxu0 0
      %3047 = vmatpush1.bf16.msra.mxu0 0
      %3048 = vmatprep.subr.bf16.mxu0 0
      %3049 = vmatpush1.bf16.msra.mxu0 0
      %3050 = vmatprep.subr.bf16.mxu0 0
      %3051 = vmatpush1.bf16.msra.mxu0 0
      %3052 = vmatprep.subr.bf16.mxu0 0
      %3053 = vmatpush1.bf16.msra.mxu0 0
      %3054 = vmatprep.subr.bf16.mxu0 0
      %3055 = vmatpush1.bf16.msra.mxu0 0
      %3056 = vmatprep.subr.bf16.mxu0 0
      %3057 = vmatpush1.bf16.msra.mxu0 0
      %3058 = vmatprep.subr.bf16.mxu0 0
      %3059 = vmatpush1.bf16.msra.mxu0 0
      %3060 = vmatprep.subr.bf16.mxu0 0
      %3061 = vmatpush1.bf16.msra.mxu0 0
      %3062 = vmatprep.mubr.bf16.mxu0 0
      %3063 = vmatmul.mubr.bf16.gmra.mrb[0].mxu0 %v3028
      %v3064 = vpop.f32.mrb[0].mxu0
      %v3065 = vadd.f32 0.0, %v3064
      %v3066 = vpop.f32.mrb[0].mxu0
      %v3067 = vadd.f32 0.0, %v3066
      %v3068 = vpop.f32.mrb[0].mxu0
      %v3069 = vadd.f32 0.0, %v3068
      %v3070 = vpop.f32.mrb[0].mxu0
      %v3071 = vadd.f32 0.0, %v3070
      %3072 = vdwg.mxu0
      %3073 = vmatprep.subr.bf16.mxu0 0
      %3074 = vmatpush1.bf16.msra.mxu0 %v3021
      %3075 = vmatprep.subr.bf16.mxu0 0
      %3076 = vmatpush1.bf16.msra.mxu0 0
      %3077 = vmatprep.subr.bf16.mxu0 0
      %3078 = vmatpush1.bf16.msra.mxu0 0
      %3079 = vmatprep.subr.bf16.mxu0 0
      %3080 = vmatpush1.bf16.msra.mxu0 0
      %3081 = vmatprep.subr.bf16.mxu0 0
      %3082 = vmatpush1.bf16.msra.mxu0 0
      %3083 = vmatprep.subr.bf16.mxu0 0
      %3084 = vmatpush1.bf16.msra.mxu0 0
      %3085 = vmatprep.subr.bf16.mxu0 0
      %3086 = vmatpush1.bf16.msra.mxu0 0
      %3087 = vmatprep.subr.bf16.mxu0 0
      %3088 = vmatpush1.bf16.msra.mxu0 0
      %3089 = vmatprep.subr.bf16.mxu0 0
      %3090 = vmatpush1.bf16.msra.mxu0 0
      %3091 = vmatprep.subr.bf16.mxu0 0
      %3092 = vmatpush1.bf16.msra.mxu0 0
      %3093 = vmatprep.subr.bf16.mxu0 0
      %3094 = vmatpush1.bf16.msra.mxu0 0
      %3095 = vmatprep.subr.bf16.mxu0 0
      %3096 = vmatpush1.bf16.msra.mxu0 0
      %3097 = vmatprep.subr.bf16.mxu0 0
      %3098 = vmatpush1.bf16.msra.mxu0 0
      %3099 = vmatprep.subr.bf16.mxu0 0
      %3100 = vmatpush1.bf16.msra.mxu0 0
      %3101 = vmatprep.subr.bf16.mxu0 0
      %3102 = vmatpush1.bf16.msra.mxu0 0
      %3103 = vmatprep.subr.bf16.mxu0 0
      %3104 = vmatpush1.bf16.msra.mxu0 0
      %3105 = vmatprep.mubr.bf16.mxu0 0
      %3106 = vmatmul.mubr.bf16.gmra.mrb[0].mxu0 %v3028
      %v3107 = vpop.f32.mrb[0].mxu0
      %v3108 = vadd.f32 0.0, %v3107
      %v3109 = vpop.f32.mrb[0].mxu0
      %v3110 = vpop.f32.mrb[0].mxu0
      %v3111 = vadd.f32 0.0, %v3110
      %v3112 = vpop.f32.mrb[0].mxu0
      %3113 = vdwg.mxu0
      %v3114 = vadd.f32 %v3002, %v3065
      %v3115 = vadd.f32 %v3003, %v3067
      %v3116 = vadd.f32 %v3004, %v3108
      %v3117 = vadd.f32 %v3005, %v3069
      %v3118 = vadd.f32 %v3006, %v3071
      %v3119 = vadd.f32 %v3007, %v3111
      %s3120 = scalar_lea.vmem %s8, 32
      %v3121 = vld [vmem:[%s3120] sm:$0xf]
      %v3122 = vld [vmem:[%s3120 + $0x4] sm:$0xf]
      %v3125 = vunpack.c.l.b16 %v3121
      %v3126 = vunpack.c.l.b16 %v3122
      %v3127 = vpack.c.b16 %v3126, %v3125
      %3128 = vrot.lane.b32.xlu0 %v2690, 109
      %v3129 = vpop.permute.xlu0 %3128
      %3130 = vrot.lane.b32.xlu0 %v2691, 109
      %v3131 = vpop.permute.xlu0 %3130
      %3132 = vrot.lane.b32.xlu0 %v2692, 109
      %v3133 = vpop.permute.xlu0 %3132
      %v3134 = vsel %vm994, %v3129, %v3131
      %v3135 = vsel %vm994, %v3131, %v3133
      %v3140 = vsel %vm574, %v3127, 0
      %3142 = vmatprep.subr.bf16.mxu0 %v3135
      %3143 = vmatpush1.bf16.msra.mxu0 %v3134
      %3144 = vmatprep.subr.bf16.mxu0 0
      %3145 = vmatpush1.bf16.msra.mxu0 0
      %3146 = vmatprep.subr.bf16.mxu0 0
      %3147 = vmatpush1.bf16.msra.mxu0 0
      %3148 = vmatprep.subr.bf16.mxu0 0
      %3149 = vmatpush1.bf16.msra.mxu0 0
      %3150 = vmatprep.subr.bf16.mxu0 0
      %3151 = vmatpush1.bf16.msra.mxu0 0
      %3152 = vmatprep.subr.bf16.mxu0 0
      %3153 = vmatpush1.bf16.msra.mxu0 0
      %3154 = vmatprep.subr.bf16.mxu0 0
      %3155 = vmatpush1.bf16.msra.mxu0 0
      %3156 = vmatprep.subr.bf16.mxu0 0
      %3157 = vmatpush1.bf16.msra.mxu0 0
      %3158 = vmatprep.subr.bf16.mxu0 0
      %3159 = vmatpush1.bf16.msra.mxu0 0
      %3160 = vmatprep.subr.bf16.mxu0 0
      %3161 = vmatpush1.bf16.msra.mxu0 0
      %3162 = vmatprep.subr.bf16.mxu0 0
      %3163 = vmatpush1.bf16.msra.mxu0 0
      %3164 = vmatprep.subr.bf16.mxu0 0
      %3165 = vmatpush1.bf16.msra.mxu0 0
      %3166 = vmatprep.subr.bf16.mxu0 0
      %3167 = vmatpush1.bf16.msra.mxu0 0
      %3168 = vmatprep.subr.bf16.mxu0 0
      %3169 = vmatpush1.bf16.msra.mxu0 0
      %3170 = vmatprep.subr.bf16.mxu0 0
      %3171 = vmatpush1.bf16.msra.mxu0 0
      %3172 = vmatprep.subr.bf16.mxu0 0
      %3173 = vmatpush1.bf16.msra.mxu0 0
      %3174 = vmatprep.mubr.bf16.mxu0 0
      %3175 = vmatmul.mubr.bf16.gmra.mrb[0].mxu0 %v3140
      %v3176 = vpop.f32.mrb[0].mxu0
      %v3177 = vadd.f32 0.0, %v3176
      %v3178 = vpop.f32.mrb[0].mxu0
      %v3179 = vadd.f32 0.0, %v3178
      %v3180 = vpop.f32.mrb[0].mxu0
      %v3181 = vadd.f32 0.0, %v3180
      %v3182 = vpop.f32.mrb[0].mxu0
      %v3183 = vadd.f32 0.0, %v3182
      %3184 = vdwg.mxu0
      %3185 = vmatprep.subr.bf16.mxu0 0
      %3186 = vmatpush1.bf16.msra.mxu0 %v3133
      %3187 = vmatprep.subr.bf16.mxu0 0
      %3188 = vmatpush1.bf16.msra.mxu0 0
      %3189 = vmatprep.subr.bf16.mxu0 0
      %3190 = vmatpush1.bf16.msra.mxu0 0
      %3191 = vmatprep.subr.bf16.mxu0 0
      %3192 = vmatpush1.bf16.msra.mxu0 0
      %3193 = vmatprep.subr.bf16.mxu0 0
      %3194 = vmatpush1.bf16.msra.mxu0 0
      %3195 = vmatprep.subr.bf16.mxu0 0
      %3196 = vmatpush1.bf16.msra.mxu0 0
      %3197 = vmatprep.subr.bf16.mxu0 0
      %3198 = vmatpush1.bf16.msra.mxu0 0
      %3199 = vmatprep.subr.bf16.mxu0 0
      %3200 = vmatpush1.bf16.msra.mxu0 0
      %3201 = vmatprep.subr.bf16.mxu0 0
      %3202 = vmatpush1.bf16.msra.mxu0 0
      %3203 = vmatprep.subr.bf16.mxu0 0
      %3204 = vmatpush1.bf16.msra.mxu0 0
      %3205 = vmatprep.subr.bf16.mxu0 0
      %3206 = vmatpush1.bf16.msra.mxu0 0
      %3207 = vmatprep.subr.bf16.mxu0 0
      %3208 = vmatpush1.bf16.msra.mxu0 0
      %3209 = vmatprep.subr.bf16.mxu0 0
      %3210 = vmatpush1.bf16.msra.mxu0 0
      %3211 = vmatprep.subr.bf16.mxu0 0
      %3212 = vmatpush1.bf16.msra.mxu0 0
      %3213 = vmatprep.subr.bf16.mxu0 0
      %3214 = vmatpush1.bf16.msra.mxu0 0
      %3215 = vmatprep.subr.bf16.mxu0 0
      %3216 = vmatpush1.bf16.msra.mxu0 0
      %3217 = vmatprep.mubr.bf16.mxu0 0
      %3218 = vmatmul.mubr.bf16.gmra.mrb[0].mxu0 %v3140
      %v3219 = vpop.f32.mrb[0].mxu0
      %v3220 = vadd.f32 0.0, %v3219
      %v3221 = vpop.f32.mrb[0].mxu0
      %v3222 = vpop.f32.mrb[0].mxu0
      %v3223 = vadd.f32 0.0, %v3222
      %v3224 = vpop.f32.mrb[0].mxu0
      %3225 = vdwg.mxu0
      %v3226 = vadd.f32 %v3114, %v3177
      %v3227 = vadd.f32 %v3115, %v3179
      %v3228 = vadd.f32 %v3116, %v3220
      %v3229 = vadd.f32 %v3117, %v3181
      %v3230 = vadd.f32 %v3118, %v3183
      %v3231 = vadd.f32 %v3119, %v3223
      %s3232 = scalar_lea.vmem %s8, 40
      %v3233 = vld [vmem:[%s3232] sm:$0xf]
      %v3234 = vld [vmem:[%s3232 + $0x4] sm:$0xf]
      %v3237 = vunpack.c.l.b16 %v3233
      %v3238 = vunpack.c.l.b16 %v3234
      %v3239 = vpack.c.b16 %v3238, %v3237
      %3240 = vrot.lane.b32.xlu0 %v2690, 108
      %v3241 = vpop.permute.xlu0 %3240
      %3242 = vrot.lane.b32.xlu0 %v2691, 108
      %v3243 = vpop.permute.xlu0 %3242
      %3244 = vrot.lane.b32.xlu0 %v2692, 108
      %v3245 = vpop.permute.xlu0 %3244
      %v3246 = vsel %vm1107, %v3241, %v3243
      %v3247 = vsel %vm1107, %v3243, %v3245
      %v3252 = vsel %vm574, %v3239, 0
      %3254 = vmatprep.subr.bf16.mxu0 %v3247
      %3255 = vmatpush1.bf16.msra.mxu0 %v3246
      %3256 = vmatprep.subr.bf16.mxu0 0
      %3257 = vmatpush1.bf16.msra.mxu0 0
      %3258 = vmatprep.subr.bf16.mxu0 0
      %3259 = vmatpush1.bf16.msra.mxu0 0
      %3260 = vmatprep.subr.bf16.mxu0 0
      %3261 = vmatpush1.bf16.msra.mxu0 0
      %3262 = vmatprep.subr.bf16.mxu0 0
      %3263 = vmatpush1.bf16.msra.mxu0 0
      %3264 = vmatprep.subr.bf16.mxu0 0
      %3265 = vmatpush1.bf16.msra.mxu0 0
      %3266 = vmatprep.subr.bf16.mxu0 0
      %3267 = vmatpush1.bf16.msra.mxu0 0
      %3268 = vmatprep.subr.bf16.mxu0 0
      %3269 = vmatpush1.bf16.msra.mxu0 0
      %3270 = vmatprep.subr.bf16.mxu0 0
      %3271 = vmatpush1.bf16.msra.mxu0 0
      %3272 = vmatprep.subr.bf16.mxu0 0
      %3273 = vmatpush1.bf16.msra.mxu0 0
      %3274 = vmatprep.subr.bf16.mxu0 0
      %3275 = vmatpush1.bf16.msra.mxu0 0
      %3276 = vmatprep.subr.bf16.mxu0 0
      %3277 = vmatpush1.bf16.msra.mxu0 0
      %3278 = vmatprep.subr.bf16.mxu0 0
      %3279 = vmatpush1.bf16.msra.mxu0 0
      %3280 = vmatprep.subr.bf16.mxu0 0
      %3281 = vmatpush1.bf16.msra.mxu0 0
      %3282 = vmatprep.subr.bf16.mxu0 0
      %3283 = vmatpush1.bf16.msra.mxu0 0
      %3284 = vmatprep.subr.bf16.mxu0 0
      %3285 = vmatpush1.bf16.msra.mxu0 0
      %3286 = vmatprep.mubr.bf16.mxu0 0
      %3287 = vmatmul.mubr.bf16.gmra.mrb[0].mxu0 %v3252
      %v3288 = vpop.f32.mrb[0].mxu0
      %v3289 = vadd.f32 0.0, %v3288
      %v3290 = vpop.f32.mrb[0].mxu0
      %v3291 = vadd.f32 0.0, %v3290
      %v3292 = vpop.f32.mrb[0].mxu0
      %v3293 = vadd.f32 0.0, %v3292
      %v3294 = vpop.f32.mrb[0].mxu0
      %v3295 = vadd.f32 0.0, %v3294
      %3296 = vdwg.mxu0
      %3297 = vmatprep.subr.bf16.mxu0 0
      %3298 = vmatpush1.bf16.msra.mxu0 %v3245
      %3299 = vmatprep.subr.bf16.mxu0 0
      %3300 = vmatpush1.bf16.msra.mxu0 0
      %3301 = vmatprep.subr.bf16.mxu0 0
      %3302 = vmatpush1.bf16.msra.mxu0 0
      %3303 = vmatprep.subr.bf16.mxu0 0
      %3304 = vmatpush1.bf16.msra.mxu0 0
      %3305 = vmatprep.subr.bf16.mxu0 0
      %3306 = vmatpush1.bf16.msra.mxu0 0
      %3307 = vmatprep.subr.bf16.mxu0 0
      %3308 = vmatpush1.bf16.msra.mxu0 0
      %3309 = vmatprep.subr.bf16.mxu0 0
      %3310 = vmatpush1.bf16.msra.mxu0 0
      %3311 = vmatprep.subr.bf16.mxu0 0
      %3312 = vmatpush1.bf16.msra.mxu0 0
      %3313 = vmatprep.subr.bf16.mxu0 0
      %3314 = vmatpush1.bf16.msra.mxu0 0
      %3315 = vmatprep.subr.bf16.mxu0 0
      %3316 = vmatpush1.bf16.msra.mxu0 0
      %3317 = vmatprep.subr.bf16.mxu0 0
      %3318 = vmatpush1.bf16.msra.mxu0 0
      %3319 = vmatprep.subr.bf16.mxu0 0
      %3320 = vmatpush1.bf16.msra.mxu0 0
      %3321 = vmatprep.subr.bf16.mxu0 0
      %3322 = vmatpush1.bf16.msra.mxu0 0
      %3323 = vmatprep.subr.bf16.mxu0 0
      %3324 = vmatpush1.bf16.msra.mxu0 0
      %3325 = vmatprep.subr.bf16.mxu0 0
      %3326 = vmatpush1.bf16.msra.mxu0 0
      %3327 = vmatprep.subr.bf16.mxu0 0
      %3328 = vmatpush1.bf16.msra.mxu0 0
      %3329 = vmatprep.mubr.bf16.mxu0 0
      %3330 = vmatmul.mubr.bf16.gmra.mrb[0].mxu0 %v3252
      %v3331 = vpop.f32.mrb[0].mxu0
      %v3332 = vadd.f32 0.0, %v3331
      %v3333 = vpop.f32.mrb[0].mxu0
      %v3334 = vpop.f32.mrb[0].mxu0
      %v3335 = vadd.f32 0.0, %v3334
      %v3336 = vpop.f32.mrb[0].mxu0
      %3337 = vdwg.mxu0
      %v3338 = vadd.f32 %v3226, %v3289
      %v3339 = vadd.f32 %v3227, %v3291
      %v3340 = vadd.f32 %v3228, %v3332
      %v3341 = vadd.f32 %v3229, %v3293
      %v3342 = vadd.f32 %v3230, %v3295
      %v3343 = vadd.f32 %v3231, %v3335
      %s3344 = scalar_lea.vmem %s8, 48
      %v3345 = vld [vmem:[%s3344] sm:$0xf]
      %v3346 = vld [vmem:[%s3344 + $0x4] sm:$0xf]
      %v3349 = vunpack.c.l.b16 %v3345
      %v3350 = vunpack.c.l.b16 %v3346
      %v3351 = vpack.c.b16 %v3350, %v3349
      %3352 = vrot.lane.b32.xlu0 %v2690, 92
      %v3353 = vpop.permute.xlu0 %3352
      %3354 = vrot.lane.b32.xlu0 %v2691, 92
      %v3355 = vpop.permute.xlu0 %3354
      %3356 = vrot.lane.b32.xlu0 %v2692, 92
      %v3357 = vpop.permute.xlu0 %3356
      %v3358 = vsel %vm1220, %v3353, %v3355
      %v3359 = vsel %vm1220, %v3355, %v3357
      %v3364 = vsel %vm574, %v3351, 0
      %3366 = vmatprep.subr.bf16.mxu0 %v3359
      %3367 = vmatpush1.bf16.msra.mxu0 %v3358
      %3368 = vmatprep.subr.bf16.mxu0 0
      %3369 = vmatpush1.bf16.msra.mxu0 0
      %3370 = vmatprep.subr.bf16.mxu0 0
      %3371 = vmatpush1.bf16.msra.mxu0 0
      %3372 = vmatprep.subr.bf16.mxu0 0
      %3373 = vmatpush1.bf16.msra.mxu0 0
      %3374 = vmatprep.subr.bf16.mxu0 0
      %3375 = vmatpush1.bf16.msra.mxu0 0
      %3376 = vmatprep.subr.bf16.mxu0 0
      %3377 = vmatpush1.bf16.msra.mxu0 0
      %3378 = vmatprep.subr.bf16.mxu0 0
      %3379 = vmatpush1.bf16.msra.mxu0 0
      %3380 = vmatprep.subr.bf16.mxu0 0
      %3381 = vmatpush1.bf16.msra.mxu0 0
      %3382 = vmatprep.subr.bf16.mxu0 0
      %3383 = vmatpush1.bf16.msra.mxu0 0
      %3384 = vmatprep.subr.bf16.mxu0 0
      %3385 = vmatpush1.bf16.msra.mxu0 0
      %3386 = vmatprep.subr.bf16.mxu0 0
      %3387 = vmatpush1.bf16.msra.mxu0 0
      %3388 = vmatprep.subr.bf16.mxu0 0
      %3389 = vmatpush1.bf16.msra.mxu0 0
      %3390 = vmatprep.subr.bf16.mxu0 0
      %3391 = vmatpush1.bf16.msra.mxu0 0
      %3392 = vmatprep.subr.bf16.mxu0 0
      %3393 = vmatpush1.bf16.msra.mxu0 0
      %3394 = vmatprep.subr.bf16.mxu0 0
      %3395 = vmatpush1.bf16.msra.mxu0 0
      %3396 = vmatprep.subr.bf16.mxu0 0
      %3397 = vmatpush1.bf16.msra.mxu0 0
      %3398 = vmatprep.mubr.bf16.mxu0 0
      %3399 = vmatmul.mubr.bf16.gmra.mrb[0].mxu0 %v3364
      %v3400 = vpop.f32.mrb[0].mxu0
      %v3401 = vadd.f32 0.0, %v3400
      %v3402 = vpop.f32.mrb[0].mxu0
      %v3403 = vadd.f32 0.0, %v3402
      %v3404 = vpop.f32.mrb[0].mxu0
      %v3405 = vadd.f32 0.0, %v3404
      %v3406 = vpop.f32.mrb[0].mxu0
      %v3407 = vadd.f32 0.0, %v3406
      %3408 = vdwg.mxu0
      %3409 = vmatprep.subr.bf16.mxu0 0
      %3410 = vmatpush1.bf16.msra.mxu0 %v3357
      %3411 = vmatprep.subr.bf16.mxu0 0
      %3412 = vmatpush1.bf16.msra.mxu0 0
      %3413 = vmatprep.subr.bf16.mxu0 0
      %3414 = vmatpush1.bf16.msra.mxu0 0
      %3415 = vmatprep.subr.bf16.mxu0 0
      %3416 = vmatpush1.bf16.msra.mxu0 0
      %3417 = vmatprep.subr.bf16.mxu0 0
      %3418 = vmatpush1.bf16.msra.mxu0 0
      %3419 = vmatprep.subr.bf16.mxu0 0
      %3420 = vmatpush1.bf16.msra.mxu0 0
      %3421 = vmatprep.subr.bf16.mxu0 0
      %3422 = vmatpush1.bf16.msra.mxu0 0
      %3423 = vmatprep.subr.bf16.mxu0 0
      %3424 = vmatpush1.bf16.msra.mxu0 0
      %3425 = vmatprep.subr.bf16.mxu0 0
      %3426 = vmatpush1.bf16.msra.mxu0 0
      %3427 = vmatprep.subr.bf16.mxu0 0
      %3428 = vmatpush1.bf16.msra.mxu0 0
      %3429 = vmatprep.subr.bf16.mxu0 0
      %3430 = vmatpush1.bf16.msra.mxu0 0
      %3431 = vmatprep.subr.bf16.mxu0 0
      %3432 = vmatpush1.bf16.msra.mxu0 0
      %3433 = vmatprep.subr.bf16.mxu0 0
      %3434 = vmatpush1.bf16.msra.mxu0 0
      %3435 = vmatprep.subr.bf16.mxu0 0
      %3436 = vmatpush1.bf16.msra.mxu0 0
      %3437 = vmatprep.subr.bf16.mxu0 0
      %3438 = vmatpush1.bf16.msra.mxu0 0
      %3439 = vmatprep.subr.bf16.mxu0 0
      %3440 = vmatpush1.bf16.msra.mxu0 0
      %3441 = vmatprep.mubr.bf16.mxu0 0
      %3442 = vmatmul.mubr.bf16.gmra.mrb[0].mxu0 %v3364
      %v3443 = vpop.f32.mrb[0].mxu0
      %v3444 = vadd.f32 0.0, %v3443
      %v3445 = vpop.f32.mrb[0].mxu0
      %v3446 = vpop.f32.mrb[0].mxu0
      %v3447 = vadd.f32 0.0, %v3446
      %v3448 = vpop.f32.mrb[0].mxu0
      %3449 = vdwg.mxu0
      %v3450 = vadd.f32 %v3338, %v3401
      %v3451 = vadd.f32 %v3339, %v3403
      %v3452 = vadd.f32 %v3340, %v3444
      %v3453 = vadd.f32 %v3341, %v3405
      %v3454 = vadd.f32 %v3342, %v3407
      %v3455 = vadd.f32 %v3343, %v3447
      %s3456 = scalar_lea.vmem %s8, 56
      %v3457 = vld [vmem:[%s3456] sm:$0xf]
      %v3458 = vld [vmem:[%s3456 + $0x4] sm:$0xf]
      %v3461 = vunpack.c.l.b16 %v3457
      %v3462 = vunpack.c.l.b16 %v3458
      %v3463 = vpack.c.b16 %v3462, %v3461
      %3464 = vrot.lane.b32.xlu0 %v2690, 91
      %v3465 = vpop.permute.xlu0 %3464
      %3466 = vrot.lane.b32.xlu0 %v2691, 91
      %v3467 = vpop.permute.xlu0 %3466
      %3468 = vrot.lane.b32.xlu0 %v2692, 91
      %v3469 = vpop.permute.xlu0 %3468
      %v3470 = vsel %vm1333, %v3465, %v3467
      %v3471 = vsel %vm1333, %v3467, %v3469
      %v3476 = vsel %vm574, %v3463, 0
      %3478 = vmatprep.subr.bf16.mxu0 %v3471
      %3479 = vmatpush1.bf16.msra.mxu0 %v3470
      %3480 = vmatprep.subr.bf16.mxu0 0
      %3481 = vmatpush1.bf16.msra.mxu0 0
      %3482 = vmatprep.subr.bf16.mxu0 0
      %3483 = vmatpush1.bf16.msra.mxu0 0
      %3484 = vmatprep.subr.bf16.mxu0 0
      %3485 = vmatpush1.bf16.msra.mxu0 0
      %3486 = vmatprep.subr.bf16.mxu0 0
      %3487 = vmatpush1.bf16.msra.mxu0 0
      %3488 = vmatprep.subr.bf16.mxu0 0
      %3489 = vmatpush1.bf16.msra.mxu0 0
      %3490 = vmatprep.subr.bf16.mxu0 0
      %3491 = vmatpush1.bf16.msra.mxu0 0
      %3492 = vmatprep.subr.bf16.mxu0 0
      %3493 = vmatpush1.bf16.msra.mxu0 0
      %3494 = vmatprep.subr.bf16.mxu0 0
      %3495 = vmatpush1.bf16.msra.mxu0 0
      %3496 = vmatprep.subr.bf16.mxu0 0
      %3497 = vmatpush1.bf16.msra.mxu0 0
      %3498 = vmatprep.subr.bf16.mxu0 0
      %3499 = vmatpush1.bf16.msra.mxu0 0
      %3500 = vmatprep.subr.bf16.mxu0 0
      %3501 = vmatpush1.bf16.msra.mxu0 0
      %3502 = vmatprep.subr.bf16.mxu0 0
      %3503 = vmatpush1.bf16.msra.mxu0 0
      %3504 = vmatprep.subr.bf16.mxu0 0
      %3505 = vmatpush1.bf16.msra.mxu0 0
      %3506 = vmatprep.subr.bf16.mxu0 0
      %3507 = vmatpush1.bf16.msra.mxu0 0
      %3508 = vmatprep.subr.bf16.mxu0 0
      %3509 = vmatpush1.bf16.msra.mxu0 0
      %3510 = vmatprep.mubr.bf16.mxu0 0
      %3511 = vmatmul.mubr.bf16.gmra.mrb[0].mxu0 %v3476
      %v3512 = vpop.f32.mrb[0].mxu0
      %v3513 = vadd.f32 0.0, %v3512
      %v3514 = vpop.f32.mrb[0].mxu0
      %v3515 = vadd.f32 0.0, %v3514
      %v3516 = vpop.f32.mrb[0].mxu0
      %v3517 = vadd.f32 0.0, %v3516
      %v3518 = vpop.f32.mrb[0].mxu0
      %v3519 = vadd.f32 0.0, %v3518
      %3520 = vdwg.mxu0
      %3521 = vmatprep.subr.bf16.mxu0 0
      %3522 = vmatpush1.bf16.msra.mxu0 %v3469
      %3523 = vmatprep.subr.bf16.mxu0 0
      %3524 = vmatpush1.bf16.msra.mxu0 0
      %3525 = vmatprep.subr.bf16.mxu0 0
      %3526 = vmatpush1.bf16.msra.mxu0 0
      %3527 = vmatprep.subr.bf16.mxu0 0
      %3528 = vmatpush1.bf16.msra.mxu0 0
      %3529 = vmatprep.subr.bf16.mxu0 0
      %3530 = vmatpush1.bf16.msra.mxu0 0
      %3531 = vmatprep.subr.bf16.mxu0 0
      %3532 = vmatpush1.bf16.msra.mxu0 0
      %3533 = vmatprep.subr.bf16.mxu0 0
      %3534 = vmatpush1.bf16.msra.mxu0 0
      %3535 = vmatprep.subr.bf16.mxu0 0
      %3536 = vmatpush1.bf16.msra.mxu0 0
      %3537 = vmatprep.subr.bf16.mxu0 0
      %3538 = vmatpush1.bf16.msra.mxu0 0
      %3539 = vmatprep.subr.bf16.mxu0 0
      %3540 = vmatpush1.bf16.msra.mxu0 0
      %3541 = vmatprep.subr.bf16.mxu0 0
      %3542 = vmatpush1.bf16.msra.mxu0 0
      %3543 = vmatprep.subr.bf16.mxu0 0
      %3544 = vmatpush1.bf16.msra.mxu0 0
      %3545 = vmatprep.subr.bf16.mxu0 0
      %3546 = vmatpush1.bf16.msra.mxu0 0
      %3547 = vmatprep.subr.bf16.mxu0 0
      %3548 = vmatpush1.bf16.msra.mxu0 0
      %3549 = vmatprep.subr.bf16.mxu0 0
      %3550 = vmatpush1.bf16.msra.mxu0 0
      %3551 = vmatprep.subr.bf16.mxu0 0
      %3552 = vmatpush1.bf16.msra.mxu0 0
      %3553 = vmatprep.mubr.bf16.mxu0 0
      %3554 = vmatmul.mubr.bf16.gmra.mrb[0].mxu0 %v3476
      %v3555 = vpop.f32.mrb[0].mxu0
      %v3556 = vadd.f32 0.0, %v3555
      %v3557 = vpop.f32.mrb[0].mxu0
      %v3558 = vpop.f32.mrb[0].mxu0
      %v3559 = vadd.f32 0.0, %v3558
      %v3560 = vpop.f32.mrb[0].mxu0
      %3561 = vdwg.mxu0
      %v3562 = vadd.f32 %v3450, %v3513
      %v3563 = vadd.f32 %v3451, %v3515
      %v3564 = vadd.f32 %v3452, %v3556
      %v3565 = vadd.f32 %v3453, %v3517
      %v3566 = vadd.f32 %v3454, %v3519
      %v3567 = vadd.f32 %v3455, %v3559
      %s3568 = scalar_lea.vmem %s8, 64
      %v3569 = vld [vmem:[%s3568] sm:$0xf]
      %v3570 = vld [vmem:[%s3568 + $0x4] sm:$0xf]
      %v3573 = vunpack.c.l.b16 %v3569
      %v3574 = vunpack.c.l.b16 %v3570
      %v3575 = vpack.c.b16 %v3574, %v3573
      %3576 = vrot.lane.b32.xlu0 %v2690, 90
      %v3577 = vpop.permute.xlu0 %3576
      %3578 = vrot.lane.b32.xlu0 %v2691, 90
      %v3579 = vpop.permute.xlu0 %3578
      %3580 = vrot.lane.b32.xlu0 %v2692, 90
      %v3581 = vpop.permute.xlu0 %3580
      %v3582 = vsel %vm1446, %v3577, %v3579
      %v3583 = vsel %vm1446, %v3579, %v3581
      %v3588 = vsel %vm574, %v3575, 0
      %3590 = vmatprep.subr.bf16.mxu0 %v3583
      %3591 = vmatpush1.bf16.msra.mxu0 %v3582
      %3592 = vmatprep.subr.bf16.mxu0 0
      %3593 = vmatpush1.bf16.msra.mxu0 0
      %3594 = vmatprep.subr.bf16.mxu0 0
      %3595 = vmatpush1.bf16.msra.mxu0 0
      %3596 = vmatprep.subr.bf16.mxu0 0
      %3597 = vmatpush1.bf16.msra.mxu0 0
      %3598 = vmatprep.subr.bf16.mxu0 0
      %3599 = vmatpush1.bf16.msra.mxu0 0
      %3600 = vmatprep.subr.bf16.mxu0 0
      %3601 = vmatpush1.bf16.msra.mxu0 0
      %3602 = vmatprep.subr.bf16.mxu0 0
      %3603 = vmatpush1.bf16.msra.mxu0 0
      %3604 = vmatprep.subr.bf16.mxu0 0
      %3605 = vmatpush1.bf16.msra.mxu0 0
      %3606 = vmatprep.subr.bf16.mxu0 0
      %3607 = vmatpush1.bf16.msra.mxu0 0
      %3608 = vmatprep.subr.bf16.mxu0 0
      %3609 = vmatpush1.bf16.msra.mxu0 0
      %3610 = vmatprep.subr.bf16.mxu0 0
      %3611 = vmatpush1.bf16.msra.mxu0 0
      %3612 = vmatprep.subr.bf16.mxu0 0
      %3613 = vmatpush1.bf16.msra.mxu0 0
      %3614 = vmatprep.subr.bf16.mxu0 0
      %3615 = vmatpush1.bf16.msra.mxu0 0
      %3616 = vmatprep.subr.bf16.mxu0 0
      %3617 = vmatpush1.bf16.msra.mxu0 0
      %3618 = vmatprep.subr.bf16.mxu0 0
      %3619 = vmatpush1.bf16.msra.mxu0 0
      %3620 = vmatprep.subr.bf16.mxu0 0
      %3621 = vmatpush1.bf16.msra.mxu0 0
      %3622 = vmatprep.mubr.bf16.mxu0 0
      %3623 = vmatmul.mubr.bf16.gmra.mrb[0].mxu0 %v3588
      %v3624 = vpop.f32.mrb[0].mxu0
      %v3625 = vadd.f32 0.0, %v3624
      %v3626 = vpop.f32.mrb[0].mxu0
      %v3627 = vadd.f32 0.0, %v3626
      %v3628 = vpop.f32.mrb[0].mxu0
      %v3629 = vadd.f32 0.0, %v3628
      %v3630 = vpop.f32.mrb[0].mxu0
      %v3631 = vadd.f32 0.0, %v3630
      %3632 = vdwg.mxu0
      %3633 = vmatprep.subr.bf16.mxu0 0
      %3634 = vmatpush1.bf16.msra.mxu0 %v3581
      %3635 = vmatprep.subr.bf16.mxu0 0
      %3636 = vmatpush1.bf16.msra.mxu0 0
      %3637 = vmatprep.subr.bf16.mxu0 0
      %3638 = vmatpush1.bf16.msra.mxu0 0
      %3639 = vmatprep.subr.bf16.mxu0 0
      %3640 = vmatpush1.bf16.msra.mxu0 0
      %3641 = vmatprep.subr.bf16.mxu0 0
      %3642 = vmatpush1.bf16.msra.mxu0 0
      %3643 = vmatprep.subr.bf16.mxu0 0
      %3644 = vmatpush1.bf16.msra.mxu0 0
      %3645 = vmatprep.subr.bf16.mxu0 0
      %3646 = vmatpush1.bf16.msra.mxu0 0
      %3647 = vmatprep.subr.bf16.mxu0 0
      %3648 = vmatpush1.bf16.msra.mxu0 0
      %3649 = vmatprep.subr.bf16.mxu0 0
      %3650 = vmatpush1.bf16.msra.mxu0 0
      %3651 = vmatprep.subr.bf16.mxu0 0
      %3652 = vmatpush1.bf16.msra.mxu0 0
      %3653 = vmatprep.subr.bf16.mxu0 0
      %3654 = vmatpush1.bf16.msra.mxu0 0
      %3655 = vmatprep.subr.bf16.mxu0 0
      %3656 = vmatpush1.bf16.msra.mxu0 0
      %3657 = vmatprep.subr.bf16.mxu0 0
      %3658 = vmatpush1.bf16.msra.mxu0 0
      %3659 = vmatprep.subr.bf16.mxu0 0
      %3660 = vmatpush1.bf16.msra.mxu0 0
      %3661 = vmatprep.subr.bf16.mxu0 0
      %3662 = vmatpush1.bf16.msra.mxu0 0
      %3663 = vmatprep.subr.bf16.mxu0 0
      %3664 = vmatpush1.bf16.msra.mxu0 0
      %3665 = vmatprep.mubr.bf16.mxu0 0
      %3666 = vmatmul.mubr.bf16.gmra.mrb[0].mxu0 %v3588
      %v3667 = vpop.f32.mrb[0].mxu0
      %v3668 = vadd.f32 0.0, %v3667
      %v3669 = vpop.f32.mrb[0].mxu0
      %v3670 = vpop.f32.mrb[0].mxu0
      %v3671 = vadd.f32 0.0, %v3670
      %v3672 = vpop.f32.mrb[0].mxu0
      %3673 = vdwg.mxu0
      %v3674 = vadd.f32 %v3562, %v3625
      %v3675 = vadd.f32 %v3563, %v3627
      %v3676 = vadd.f32 %v3564, %v3668
      %v3677 = vadd.f32 %v3565, %v3629
      %v3678 = vadd.f32 %v3566, %v3631
      %v3679 = vadd.f32 %v3567, %v3671
      %v3680 = vld [vmem:[%s9] sm:$0xff]
      %v3681 = vld [vmem:[%s9 + $0x8] sm:$0xff]
      %3683 = vset.pattern.permute.xlu0 0
      %3684 = vperm.xlu0 %3683, %v3680
      %v3685 = vpop.permute.xlu0 %3684
      %3688 = vset.pattern.permute.xlu0 0
      %3689 = vperm.xlu0 %3688, %v3681
      %v3690 = vpop.permute.xlu0 %3689
      %v3692 = vmul.f32 %v3674, %v3685
      %v3693 = vmul.f32 %v3675, %v3685
      %v3694 = vmul.f32 %v3676, %v3685
      %v3695 = vmul.f32 %v3677, %v3690
      %v3696 = vmul.f32 %v3678, %v3690
      %v3697 = vmul.f32 %v3679, %v3690
      %v3698 = vld [vmem:[%s10] sm:$0xff]
      %v3699 = vld [vmem:[%s10 + $0x8] sm:$0xff]
      %3701 = vset.pattern.permute.xlu0 0
      %3702 = vperm.xlu0 %3701, %v3698
      %v3703 = vpop.permute.xlu0 %3702
      %3706 = vset.pattern.permute.xlu0 0
      %3707 = vperm.xlu0 %3706, %v3699
      %v3708 = vpop.permute.xlu0 %3707
      %v3710 = vadd.f32 %v3692, %v3703
      %v3711 = vadd.f32 %v3693, %v3703
      %v3712 = vadd.f32 %v3694, %v3703
      %v3713 = vadd.f32 %v3695, %v3708
      %v3714 = vadd.f32 %v3696, %v3708
      %v3715 = vadd.f32 %v3697, %v3708
      %v3716 = vmax.f32 %v3710, 0.0
      %v3717 = vmax.f32 %v3711, 0.0
      %v3718 = vmax.f32 %v3712, 0.0
      %v3719 = vmax.f32 %v3713, 0.0
      %v3720 = vmax.f32 %v3714, 0.0
      %v3721 = vmax.f32 %v3715, 0.0
      %v3722 = vmul.f32 %v3716, %v1591
      %v3723 = vmul.f32 %v3717, %v1595
      %v3724 = vmul.f32 %v3718, %v1599
      %v3725 = vmul.f32 %v3719, %v1591
      %v3726 = vmul.f32 %v3720, %v1595
      %v3727 = vmul.f32 %v3721, %v1599
      %v3728 = vpack.c.bf16 %v3725, %v3722
      %v3729 = vpack.c.bf16 %v3726, %v3723
      %v3730 = vpack.c.bf16 %v3727, %v3724
      %3734 = vrot.lane.b32.xlu0 %v3728, 19
      %v3735 = vpop.permute.xlu0 %3734
      %3736 = vrot.lane.b32.xlu0 %v3729, 19
      %v3737 = vpop.permute.xlu0 %3736
      %3738 = vrot.lane.b32.xlu0 %v3730, 19
      %v3739 = vpop.permute.xlu0 %3738
      %v3740 = vsel %vm1621, %v3735, %v3737
      %v3741 = vsel %vm1621, %v3737, %v3739
      %3745 = vst.msk [vmem:[#allocation2] sm:$0xff] %vm1627, %v3735
      %3746 = vst [vmem:[#allocation2 + $0x8] sm:$0xff] %v3740
      %3747 = vst.msk [vmem:[#allocation2 + $0x10] sm:$0xff] %vm1630, %v3741
      %v3748 = vld [vmem:[#allocation2] sm:$0xff]
      %v3749 = vld [vmem:[#allocation2 + $0x8] sm:$0xff]
      %v3750 = vld [vmem:[#allocation2 + $0x10] sm:$0xff]
      %v3751 = vld [vmem:[%s11] sm:$0xf]
      %s3752 = scalar_lea.vmem %s11, 4
      %v3753 = vld [vmem:[%s3752] sm:$0xf]
      %3757 = vrot.lane.b32.xlu0 %v3748, 127
      %v3758 = vpop.permute.xlu0 %3757
      %3759 = vrot.lane.b32.xlu0 %v3749, 127
      %v3760 = vpop.permute.xlu0 %3759
      %3761 = vrot.lane.b32.xlu0 %v3750, 127
      %v3762 = vpop.permute.xlu0 %3761
      %v3763 = vsel %vm568, %v3758, %v3760
      %v3764 = vsel %vm568, %v3760, %v3762
      %v3769 = vsel %vm574, %v3753, 0
      %3771 = vmatprep.subr.bf16.mxu0 %v3764
      %3772 = vmatpush1.bf16.msra.mxu0 %v3763
      %3773 = vmatprep.subr.bf16.mxu0 0
      %3774 = vmatpush1.bf16.msra.mxu0 0
      %3775 = vmatprep.subr.bf16.mxu0 0
      %3776 = vmatpush1.bf16.msra.mxu0 0
      %3777 = vmatprep.subr.bf16.mxu0 0
      %3778 = vmatpush1.bf16.msra.mxu0 0
      %3779 = vmatprep.subr.bf16.mxu0 0
      %3780 = vmatpush1.bf16.msra.mxu0 0
      %3781 = vmatprep.subr.bf16.mxu0 0
      %3782 = vmatpush1.bf16.msra.mxu0 0
      %3783 = vmatprep.subr.bf16.mxu0 0
      %3784 = vmatpush1.bf16.msra.mxu0 0
      %3785 = vmatprep.subr.bf16.mxu0 0
      %3786 = vmatpush1.bf16.msra.mxu0 0
      %3787 = vmatprep.subr.bf16.mxu0 0
      %3788 = vmatpush1.bf16.msra.mxu0 0
      %3789 = vmatprep.subr.bf16.mxu0 0
      %3790 = vmatpush1.bf16.msra.mxu0 0
      %3791 = vmatprep.subr.bf16.mxu0 0
      %3792 = vmatpush1.bf16.msra.mxu0 0
      %3793 = vmatprep.subr.bf16.mxu0 0
      %3794 = vmatpush1.bf16.msra.mxu0 0
      %3795 = vmatprep.subr.bf16.mxu0 0
      %3796 = vmatpush1.bf16.msra.mxu0 0
      %3797 = vmatprep.subr.bf16.mxu0 0
      %3798 = vmatpush1.bf16.msra.mxu0 0
      %3799 = vmatprep.subr.bf16.mxu0 0
      %3800 = vmatpush1.bf16.msra.mxu0 0
      %3801 = vmatprep.subr.bf16.mxu0 0
      %3802 = vmatpush1.bf16.msra.mxu0 0
      %3803 = vmatprep.mubr.bf16.mxu0 0
      %3804 = vmatmul.mubr.bf16.gmra.mrb[0].mxu0 %v3769
      %v3805 = vpop.f32.mrb[0].mxu0
      %v3806 = vadd.f32 0.0, %v3805
      %v3807 = vpop.f32.mrb[0].mxu0
      %v3808 = vadd.f32 0.0, %v3807
      %v3809 = vpop.f32.mrb[0].mxu0
      %v3810 = vpop.f32.mrb[0].mxu0
      %3811 = vdwg.mxu0
      %3812 = vmatprep.subr.bf16.mxu0 0
      %3813 = vmatpush1.bf16.msra.mxu0 %v3762
      %3814 = vmatprep.subr.bf16.mxu0 0
      %3815 = vmatpush1.bf16.msra.mxu0 0
      %3816 = vmatprep.subr.bf16.mxu0 0
      %3817 = vmatpush1.bf16.msra.mxu0 0
      %3818 = vmatprep.subr.bf16.mxu0 0
      %3819 = vmatpush1.bf16.msra.mxu0 0
      %3820 = vmatprep.subr.bf16.mxu0 0
      %3821 = vmatpush1.bf16.msra.mxu0 0
      %3822 = vmatprep.subr.bf16.mxu0 0
      %3823 = vmatpush1.bf16.msra.mxu0 0
      %3824 = vmatprep.subr.bf16.mxu0 0
      %3825 = vmatpush1.bf16.msra.mxu0 0
      %3826 = vmatprep.subr.bf16.mxu0 0
      %3827 = vmatpush1.bf16.msra.mxu0 0
      %3828 = vmatprep.subr.bf16.mxu0 0
      %3829 = vmatpush1.bf16.msra.mxu0 0
      %3830 = vmatprep.subr.bf16.mxu0 0
      %3831 = vmatpush1.bf16.msra.mxu0 0
      %3832 = vmatprep.subr.bf16.mxu0 0
      %3833 = vmatpush1.bf16.msra.mxu0 0
      %3834 = vmatprep.subr.bf16.mxu0 0
      %3835 = vmatpush1.bf16.msra.mxu0 0
      %3836 = vmatprep.subr.bf16.mxu0 0
      %3837 = vmatpush1.bf16.msra.mxu0 0
      %3838 = vmatprep.subr.bf16.mxu0 0
      %3839 = vmatpush1.bf16.msra.mxu0 0
      %3840 = vmatprep.subr.bf16.mxu0 0
      %3841 = vmatpush1.bf16.msra.mxu0 0
      %3842 = vmatprep.subr.bf16.mxu0 0
      %3843 = vmatpush1.bf16.msra.mxu0 0
      %3844 = vmatprep.mubr.bf16.mxu0 0
      %3845 = vmatmul.mubr.bf16.gmra.mrb[0].mxu0 %v3769
      %v3846 = vpop.f32.mrb[0].mxu0
      %v3847 = vadd.f32 0.0, %v3846
      %v3848 = vpop.f32.mrb[0].mxu0
      %v3849 = vpop.f32.mrb[0].mxu0
      %v3850 = vpop.f32.mrb[0].mxu0
      %3851 = vdwg.mxu0
      %v3853 = vsel %vm574, %v3751, 0
      %3855 = vmatprep.subr.bf16.mxu0 %v3749
      %3856 = vmatpush1.bf16.msra.mxu0 %v3748
      %3857 = vmatprep.subr.bf16.mxu0 0
      %3858 = vmatpush1.bf16.msra.mxu0 0
      %3859 = vmatprep.subr.bf16.mxu0 0
      %3860 = vmatpush1.bf16.msra.mxu0 0
      %3861 = vmatprep.subr.bf16.mxu0 0
      %3862 = vmatpush1.bf16.msra.mxu0 0
      %3863 = vmatprep.subr.bf16.mxu0 0
      %3864 = vmatpush1.bf16.msra.mxu0 0
      %3865 = vmatprep.subr.bf16.mxu0 0
      %3866 = vmatpush1.bf16.msra.mxu0 0
      %3867 = vmatprep.subr.bf16.mxu0 0
      %3868 = vmatpush1.bf16.msra.mxu0 0
      %3869 = vmatprep.subr.bf16.mxu0 0
      %3870 = vmatpush1.bf16.msra.mxu0 0
      %3871 = vmatprep.subr.bf16.mxu0 0
      %3872 = vmatpush1.bf16.msra.mxu0 0
      %3873 = vmatprep.subr.bf16.mxu0 0
      %3874 = vmatpush1.bf16.msra.mxu0 0
      %3875 = vmatprep.subr.bf16.mxu0 0
      %3876 = vmatpush1.bf16.msra.mxu0 0
      %3877 = vmatprep.subr.bf16.mxu0 0
      %3878 = vmatpush1.bf16.msra.mxu0 0
      %3879 = vmatprep.subr.bf16.mxu0 0
      %3880 = vmatpush1.bf16.msra.mxu0 0
      %3881 = vmatprep.subr.bf16.mxu0 0
      %3882 = vmatpush1.bf16.msra.mxu0 0
      %3883 = vmatprep.subr.bf16.mxu0 0
      %3884 = vmatpush1.bf16.msra.mxu0 0
      %3885 = vmatprep.subr.bf16.mxu0 0
      %3886 = vmatpush1.bf16.msra.mxu0 0
      %3887 = vmatprep.mubr.bf16.mxu0 0
      %3888 = vmatmul.mubr.bf16.gmra.mrb[0].mxu0 %v3853
      %v3889 = vpop.f32.mrb[0].mxu0
      %v3890 = vadd.f32 %v3806, %v3889
      %v3891 = vpop.f32.mrb[0].mxu0
      %v3892 = vadd.f32 %v3808, %v3891
      %v3893 = vpop.f32.mrb[0].mxu0
      %v3894 = vpop.f32.mrb[0].mxu0
      %3895 = vdwg.mxu0
      %3896 = vmatprep.subr.bf16.mxu0 0
      %3897 = vmatpush1.bf16.msra.mxu0 %v3750
      %3898 = vmatprep.subr.bf16.mxu0 0
      %3899 = vmatpush1.bf16.msra.mxu0 0
      %3900 = vmatprep.subr.bf16.mxu0 0
      %3901 = vmatpush1.bf16.msra.mxu0 0
      %3902 = vmatprep.subr.bf16.mxu0 0
      %3903 = vmatpush1.bf16.msra.mxu0 0
      %3904 = vmatprep.subr.bf16.mxu0 0
      %3905 = vmatpush1.bf16.msra.mxu0 0
      %3906 = vmatprep.subr.bf16.mxu0 0
      %3907 = vmatpush1.bf16.msra.mxu0 0
      %3908 = vmatprep.subr.bf16.mxu0 0
      %3909 = vmatpush1.bf16.msra.mxu0 0
      %3910 = vmatprep.subr.bf16.mxu0 0
      %3911 = vmatpush1.bf16.msra.mxu0 0
      %3912 = vmatprep.subr.bf16.mxu0 0
      %3913 = vmatpush1.bf16.msra.mxu0 0
      %3914 = vmatprep.subr.bf16.mxu0 0
      %3915 = vmatpush1.bf16.msra.mxu0 0
      %3916 = vmatprep.subr.bf16.mxu0 0
      %3917 = vmatpush1.bf16.msra.mxu0 0
      %3918 = vmatprep.subr.bf16.mxu0 0
      %3919 = vmatpush1.bf16.msra.mxu0 0
      %3920 = vmatprep.subr.bf16.mxu0 0
      %3921 = vmatpush1.bf16.msra.mxu0 0
      %3922 = vmatprep.subr.bf16.mxu0 0
      %3923 = vmatpush1.bf16.msra.mxu0 0
      %3924 = vmatprep.subr.bf16.mxu0 0
      %3925 = vmatpush1.bf16.msra.mxu0 0
      %3926 = vmatprep.subr.bf16.mxu0 0
      %3927 = vmatpush1.bf16.msra.mxu0 0
      %3928 = vmatprep.mubr.bf16.mxu0 0
      %3929 = vmatmul.mubr.bf16.gmra.mrb[0].mxu0 %v3853
      %v3930 = vpop.f32.mrb[0].mxu0
      %v3931 = vadd.f32 %v3847, %v3930
      %v3932 = vpop.f32.mrb[0].mxu0
      %v3933 = vpop.f32.mrb[0].mxu0
      %v3934 = vpop.f32.mrb[0].mxu0
      %3935 = vdwg.mxu0
      %s3936 = scalar_lea.vmem %s11, 8
      %v3937 = vld [vmem:[%s3936] sm:$0xf]
      %3938 = vrot.lane.b32.xlu0 %v3748, 126
      %v3939 = vpop.permute.xlu0 %3938
      %3940 = vrot.lane.b32.xlu0 %v3749, 126
      %v3941 = vpop.permute.xlu0 %3940
      %3942 = vrot.lane.b32.xlu0 %v3750, 126
      %v3943 = vpop.permute.xlu0 %3942
      %v3944 = vsel %vm768, %v3939, %v3941
      %v3945 = vsel %vm768, %v3941, %v3943
      %v3950 = vsel %vm574, %v3937, 0
      %3952 = vmatprep.subr.bf16.mxu0 %v3945
      %3953 = vmatpush1.bf16.msra.mxu0 %v3944
      %3954 = vmatprep.subr.bf16.mxu0 0
      %3955 = vmatpush1.bf16.msra.mxu0 0
      %3956 = vmatprep.subr.bf16.mxu0 0
      %3957 = vmatpush1.bf16.msra.mxu0 0
      %3958 = vmatprep.subr.bf16.mxu0 0
      %3959 = vmatpush1.bf16.msra.mxu0 0
      %3960 = vmatprep.subr.bf16.mxu0 0
      %3961 = vmatpush1.bf16.msra.mxu0 0
      %3962 = vmatprep.subr.bf16.mxu0 0
      %3963 = vmatpush1.bf16.msra.mxu0 0
      %3964 = vmatprep.subr.bf16.mxu0 0
      %3965 = vmatpush1.bf16.msra.mxu0 0
      %3966 = vmatprep.subr.bf16.mxu0 0
      %3967 = vmatpush1.bf16.msra.mxu0 0
      %3968 = vmatprep.subr.bf16.mxu0 0
      %3969 = vmatpush1.bf16.msra.mxu0 0
      %3970 = vmatprep.subr.bf16.mxu0 0
      %3971 = vmatpush1.bf16.msra.mxu0 0
      %3972 = vmatprep.subr.bf16.mxu0 0
      %3973 = vmatpush1.bf16.msra.mxu0 0
      %3974 = vmatprep.subr.bf16.mxu0 0
      %3975 = vmatpush1.bf16.msra.mxu0 0
      %3976 = vmatprep.subr.bf16.mxu0 0
      %3977 = vmatpush1.bf16.msra.mxu0 0
      %3978 = vmatprep.subr.bf16.mxu0 0
      %3979 = vmatpush1.bf16.msra.mxu0 0
      %3980 = vmatprep.subr.bf16.mxu0 0
      %3981 = vmatpush1.bf16.msra.mxu0 0
      %3982 = vmatprep.subr.bf16.mxu0 0
      %3983 = vmatpush1.bf16.msra.mxu0 0
      %3984 = vmatprep.mubr.bf16.mxu0 0
      %3985 = vmatmul.mubr.bf16.gmra.mrb[0].mxu0 %v3950
      %v3986 = vpop.f32.mrb[0].mxu0
      %v3987 = vadd.f32 0.0, %v3986
      %v3988 = vpop.f32.mrb[0].mxu0
      %v3989 = vadd.f32 0.0, %v3988
      %v3990 = vpop.f32.mrb[0].mxu0
      %v3991 = vpop.f32.mrb[0].mxu0
      %3992 = vdwg.mxu0
      %3993 = vmatprep.subr.bf16.mxu0 0
      %3994 = vmatpush1.bf16.msra.mxu0 %v3943
      %3995 = vmatprep.subr.bf16.mxu0 0
      %3996 = vmatpush1.bf16.msra.mxu0 0
      %3997 = vmatprep.subr.bf16.mxu0 0
      %3998 = vmatpush1.bf16.msra.mxu0 0
      %3999 = vmatprep.subr.bf16.mxu0 0
      %4000 = vmatpush1.bf16.msra.mxu0 0
      %4001 = vmatprep.subr.bf16.mxu0 0
      %4002 = vmatpush1.bf16.msra.mxu0 0
      %4003 = vmatprep.subr.bf16.mxu0 0
      %4004 = vmatpush1.bf16.msra.mxu0 0
      %4005 = vmatprep.subr.bf16.mxu0 0
      %4006 = vmatpush1.bf16.msra.mxu0 0
      %4007 = vmatprep.subr.bf16.mxu0 0
      %4008 = vmatpush1.bf16.msra.mxu0 0
      %4009 = vmatprep.subr.bf16.mxu0 0
      %4010 = vmatpush1.bf16.msra.mxu0 0
      %4011 = vmatprep.subr.bf16.mxu0 0
      %4012 = vmatpush1.bf16.msra.mxu0 0
      %4013 = vmatprep.subr.bf16.mxu0 0
      %4014 = vmatpush1.bf16.msra.mxu0 0
      %4015 = vmatprep.subr.bf16.mxu0 0
      %4016 = vmatpush1.bf16.msra.mxu0 0
      %4017 = vmatprep.subr.bf16.mxu0 0
      %4018 = vmatpush1.bf16.msra.mxu0 0
      %4019 = vmatprep.subr.bf16.mxu0 0
      %4020 = vmatpush1.bf16.msra.mxu0 0
      %4021 = vmatprep.subr.bf16.mxu0 0
      %4022 = vmatpush1.bf16.msra.mxu0 0
      %4023 = vmatprep.subr.bf16.mxu0 0
      %4024 = vmatpush1.bf16.msra.mxu0 0
      %4025 = vmatprep.mubr.bf16.mxu0 0
      %4026 = vmatmul.mubr.bf16.gmra.mrb[0].mxu0 %v3950
      %v4027 = vpop.f32.mrb[0].mxu0
      %v4028 = vadd.f32 0.0, %v4027
      %v4029 = vpop.f32.mrb[0].mxu0
      %v4030 = vpop.f32.mrb[0].mxu0
      %v4031 = vpop.f32.mrb[0].mxu0
      %4032 = vdwg.mxu0
      %v4033 = vadd.f32 %v3890, %v3987
      %v4034 = vadd.f32 %v3892, %v3989
      %v4035 = vadd.f32 %v3931, %v4028
      %s4036 = scalar_lea.vmem %s11, 12
      %v4037 = vld [vmem:[%s4036] sm:$0xf]
      %4038 = vrot.lane.b32.xlu0 %v3748, 110
      %v4039 = vpop.permute.xlu0 %4038
      %4040 = vrot.lane.b32.xlu0 %v3749, 110
      %v4041 = vpop.permute.xlu0 %4040
      %4042 = vrot.lane.b32.xlu0 %v3750, 110
      %v4043 = vpop.permute.xlu0 %4042
      %v4044 = vsel %vm881, %v4039, %v4041
      %v4045 = vsel %vm881, %v4041, %v4043
      %v4050 = vsel %vm574, %v4037, 0
      %4052 = vmatprep.subr.bf16.mxu0 %v4045
      %4053 = vmatpush1.bf16.msra.mxu0 %v4044
      %4054 = vmatprep.subr.bf16.mxu0 0
      %4055 = vmatpush1.bf16.msra.mxu0 0
      %4056 = vmatprep.subr.bf16.mxu0 0
      %4057 = vmatpush1.bf16.msra.mxu0 0
      %4058 = vmatprep.subr.bf16.mxu0 0
      %4059 = vmatpush1.bf16.msra.mxu0 0
      %4060 = vmatprep.subr.bf16.mxu0 0
      %4061 = vmatpush1.bf16.msra.mxu0 0
      %4062 = vmatprep.subr.bf16.mxu0 0
      %4063 = vmatpush1.bf16.msra.mxu0 0
      %4064 = vmatprep.subr.bf16.mxu0 0
      %4065 = vmatpush1.bf16.msra.mxu0 0
      %4066 = vmatprep.subr.bf16.mxu0 0
      %4067 = vmatpush1.bf16.msra.mxu0 0
      %4068 = vmatprep.subr.bf16.mxu0 0
      %4069 = vmatpush1.bf16.msra.mxu0 0
      %4070 = vmatprep.subr.bf16.mxu0 0
      %4071 = vmatpush1.bf16.msra.mxu0 0
      %4072 = vmatprep.subr.bf16.mxu0 0
      %4073 = vmatpush1.bf16.msra.mxu0 0
      %4074 = vmatprep.subr.bf16.mxu0 0
      %4075 = vmatpush1.bf16.msra.mxu0 0
      %4076 = vmatprep.subr.bf16.mxu0 0
      %4077 = vmatpush1.bf16.msra.mxu0 0
      %4078 = vmatprep.subr.bf16.mxu0 0
      %4079 = vmatpush1.bf16.msra.mxu0 0
      %4080 = vmatprep.subr.bf16.mxu0 0
      %4081 = vmatpush1.bf16.msra.mxu0 0
      %4082 = vmatprep.subr.bf16.mxu0 0
      %4083 = vmatpush1.bf16.msra.mxu0 0
      %4084 = vmatprep.mubr.bf16.mxu0 0
      %4085 = vmatmul.mubr.bf16.gmra.mrb[0].mxu0 %v4050
      %v4086 = vpop.f32.mrb[0].mxu0
      %v4087 = vadd.f32 0.0, %v4086
      %v4088 = vpop.f32.mrb[0].mxu0
      %v4089 = vadd.f32 0.0, %v4088
      %v4090 = vpop.f32.mrb[0].mxu0
      %v4091 = vpop.f32.mrb[0].mxu0
      %4092 = vdwg.mxu0
      %4093 = vmatprep.subr.bf16.mxu0 0
      %4094 = vmatpush1.bf16.msra.mxu0 %v4043
      %4095 = vmatprep.subr.bf16.mxu0 0
      %4096 = vmatpush1.bf16.msra.mxu0 0
      %4097 = vmatprep.subr.bf16.mxu0 0
      %4098 = vmatpush1.bf16.msra.mxu0 0
      %4099 = vmatprep.subr.bf16.mxu0 0
      %4100 = vmatpush1.bf16.msra.mxu0 0
      %4101 = vmatprep.subr.bf16.mxu0 0
      %4102 = vmatpush1.bf16.msra.mxu0 0
      %4103 = vmatprep.subr.bf16.mxu0 0
      %4104 = vmatpush1.bf16.msra.mxu0 0
      %4105 = vmatprep.subr.bf16.mxu0 0
      %4106 = vmatpush1.bf16.msra.mxu0 0
      %4107 = vmatprep.subr.bf16.mxu0 0
      %4108 = vmatpush1.bf16.msra.mxu0 0
      %4109 = vmatprep.subr.bf16.mxu0 0
      %4110 = vmatpush1.bf16.msra.mxu0 0
      %4111 = vmatprep.subr.bf16.mxu0 0
      %4112 = vmatpush1.bf16.msra.mxu0 0
      %4113 = vmatprep.subr.bf16.mxu0 0
      %4114 = vmatpush1.bf16.msra.mxu0 0
      %4115 = vmatprep.subr.bf16.mxu0 0
      %4116 = vmatpush1.bf16.msra.mxu0 0
      %4117 = vmatprep.subr.bf16.mxu0 0
      %4118 = vmatpush1.bf16.msra.mxu0 0
      %4119 = vmatprep.subr.bf16.mxu0 0
      %4120 = vmatpush1.bf16.msra.mxu0 0
      %4121 = vmatprep.subr.bf16.mxu0 0
      %4122 = vmatpush1.bf16.msra.mxu0 0
      %4123 = vmatprep.subr.bf16.mxu0 0
      %4124 = vmatpush1.bf16.msra.mxu0 0
      %4125 = vmatprep.mubr.bf16.mxu0 0
      %4126 = vmatmul.mubr.bf16.gmra.mrb[0].mxu0 %v4050
      %v4127 = vpop.f32.mrb[0].mxu0
      %v4128 = vadd.f32 0.0, %v4127
      %v4129 = vpop.f32.mrb[0].mxu0
      %v4130 = vpop.f32.mrb[0].mxu0
      %v4131 = vpop.f32.mrb[0].mxu0
      %4132 = vdwg.mxu0
      %v4133 = vadd.f32 %v4033, %v4087
      %v4134 = vadd.f32 %v4034, %v4089
      %v4135 = vadd.f32 %v4035, %v4128
      %s4136 = scalar_lea.vmem %s11, 16
      %v4137 = vld [vmem:[%s4136] sm:$0xf]
      %4138 = vrot.lane.b32.xlu0 %v3748, 109
      %v4139 = vpop.permute.xlu0 %4138
      %4140 = vrot.lane.b32.xlu0 %v3749, 109
      %v4141 = vpop.permute.xlu0 %4140
      %4142 = vrot.lane.b32.xlu0 %v3750, 109
      %v4143 = vpop.permute.xlu0 %4142
      %v4144 = vsel %vm994, %v4139, %v4141
      %v4145 = vsel %vm994, %v4141, %v4143
      %v4150 = vsel %vm574, %v4137, 0
      %4152 = vmatprep.subr.bf16.mxu0 %v4145
      %4153 = vmatpush1.bf16.msra.mxu0 %v4144
      %4154 = vmatprep.subr.bf16.mxu0 0
      %4155 = vmatpush1.bf16.msra.mxu0 0
      %4156 = vmatprep.subr.bf16.mxu0 0
      %4157 = vmatpush1.bf16.msra.mxu0 0
      %4158 = vmatprep.subr.bf16.mxu0 0
      %4159 = vmatpush1.bf16.msra.mxu0 0
      %4160 = vmatprep.subr.bf16.mxu0 0
      %4161 = vmatpush1.bf16.msra.mxu0 0
      %4162 = vmatprep.subr.bf16.mxu0 0
      %4163 = vmatpush1.bf16.msra.mxu0 0
      %4164 = vmatprep.subr.bf16.mxu0 0
      %4165 = vmatpush1.bf16.msra.mxu0 0
      %4166 = vmatprep.subr.bf16.mxu0 0
      %4167 = vmatpush1.bf16.msra.mxu0 0
      %4168 = vmatprep.subr.bf16.mxu0 0
      %4169 = vmatpush1.bf16.msra.mxu0 0
      %4170 = vmatprep.subr.bf16.mxu0 0
      %4171 = vmatpush1.bf16.msra.mxu0 0
      %4172 = vmatprep.subr.bf16.mxu0 0
      %4173 = vmatpush1.bf16.msra.mxu0 0
      %4174 = vmatprep.subr.bf16.mxu0 0
      %4175 = vmatpush1.bf16.msra.mxu0 0
      %4176 = vmatprep.subr.bf16.mxu0 0
      %4177 = vmatpush1.bf16.msra.mxu0 0
      %4178 = vmatprep.subr.bf16.mxu0 0
      %4179 = vmatpush1.bf16.msra.mxu0 0
      %4180 = vmatprep.subr.bf16.mxu0 0
      %4181 = vmatpush1.bf16.msra.mxu0 0
      %4182 = vmatprep.subr.bf16.mxu0 0
      %4183 = vmatpush1.bf16.msra.mxu0 0
      %4184 = vmatprep.mubr.bf16.mxu0 0
      %4185 = vmatmul.mubr.bf16.gmra.mrb[0].mxu0 %v4150
      %v4186 = vpop.f32.mrb[0].mxu0
      %v4187 = vadd.f32 0.0, %v4186
      %v4188 = vpop.f32.mrb[0].mxu0
      %v4189 = vadd.f32 0.0, %v4188
      %v4190 = vpop.f32.mrb[0].mxu0
      %v4191 = vpop.f32.mrb[0].mxu0
      %4192 = vdwg.mxu0
      %4193 = vmatprep.subr.bf16.mxu0 0
      %4194 = vmatpush1.bf16.msra.mxu0 %v4143
      %4195 = vmatprep.subr.bf16.mxu0 0
      %4196 = vmatpush1.bf16.msra.mxu0 0
      %4197 = vmatprep.subr.bf16.mxu0 0
      %4198 = vmatpush1.bf16.msra.mxu0 0
      %4199 = vmatprep.subr.bf16.mxu0 0
      %4200 = vmatpush1.bf16.msra.mxu0 0
      %4201 = vmatprep.subr.bf16.mxu0 0
      %4202 = vmatpush1.bf16.msra.mxu0 0
      %4203 = vmatprep.subr.bf16.mxu0 0
      %4204 = vmatpush1.bf16.msra.mxu0 0
      %4205 = vmatprep.subr.bf16.mxu0 0
      %4206 = vmatpush1.bf16.msra.mxu0 0
      %4207 = vmatprep.subr.bf16.mxu0 0
      %4208 = vmatpush1.bf16.msra.mxu0 0
      %4209 = vmatprep.subr.bf16.mxu0 0
      %4210 = vmatpush1.bf16.msra.mxu0 0
      %4211 = vmatprep.subr.bf16.mxu0 0
      %4212 = vmatpush1.bf16.msra.mxu0 0
      %4213 = vmatprep.subr.bf16.mxu0 0
      %4214 = vmatpush1.bf16.msra.mxu0 0
      %4215 = vmatprep.subr.bf16.mxu0 0
      %4216 = vmatpush1.bf16.msra.mxu0 0
      %4217 = vmatprep.subr.bf16.mxu0 0
      %4218 = vmatpush1.bf16.msra.mxu0 0
      %4219 = vmatprep.subr.bf16.mxu0 0
      %4220 = vmatpush1.bf16.msra.mxu0 0
      %4221 = vmatprep.subr.bf16.mxu0 0
      %4222 = vmatpush1.bf16.msra.mxu0 0
      %4223 = vmatprep.subr.bf16.mxu0 0
      %4224 = vmatpush1.bf16.msra.mxu0 0
      %4225 = vmatprep.mubr.bf16.mxu0 0
      %4226 = vmatmul.mubr.bf16.gmra.mrb[0].mxu0 %v4150
      %v4227 = vpop.f32.mrb[0].mxu0
      %v4228 = vadd.f32 0.0, %v4227
      %v4229 = vpop.f32.mrb[0].mxu0
      %v4230 = vpop.f32.mrb[0].mxu0
      %v4231 = vpop.f32.mrb[0].mxu0
      %4232 = vdwg.mxu0
      %v4233 = vadd.f32 %v4133, %v4187
      %v4234 = vadd.f32 %v4134, %v4189
      %v4235 = vadd.f32 %v4135, %v4228
      %s4236 = scalar_lea.vmem %s11, 20
      %v4237 = vld [vmem:[%s4236] sm:$0xf]
      %4238 = vrot.lane.b32.xlu0 %v3748, 108
      %v4239 = vpop.permute.xlu0 %4238
      %4240 = vrot.lane.b32.xlu0 %v3749, 108
      %v4241 = vpop.permute.xlu0 %4240
      %4242 = vrot.lane.b32.xlu0 %v3750, 108
      %v4243 = vpop.permute.xlu0 %4242
      %v4244 = vsel %vm1107, %v4239, %v4241
      %v4245 = vsel %vm1107, %v4241, %v4243
      %v4250 = vsel %vm574, %v4237, 0
      %4252 = vmatprep.subr.bf16.mxu0 %v4245
      %4253 = vmatpush1.bf16.msra.mxu0 %v4244
      %4254 = vmatprep.subr.bf16.mxu0 0
      %4255 = vmatpush1.bf16.msra.mxu0 0
      %4256 = vmatprep.subr.bf16.mxu0 0
      %4257 = vmatpush1.bf16.msra.mxu0 0
      %4258 = vmatprep.subr.bf16.mxu0 0
      %4259 = vmatpush1.bf16.msra.mxu0 0
      %4260 = vmatprep.subr.bf16.mxu0 0
      %4261 = vmatpush1.bf16.msra.mxu0 0
      %4262 = vmatprep.subr.bf16.mxu0 0
      %4263 = vmatpush1.bf16.msra.mxu0 0
      %4264 = vmatprep.subr.bf16.mxu0 0
      %4265 = vmatpush1.bf16.msra.mxu0 0
      %4266 = vmatprep.subr.bf16.mxu0 0
      %4267 = vmatpush1.bf16.msra.mxu0 0
      %4268 = vmatprep.subr.bf16.mxu0 0
      %4269 = vmatpush1.bf16.msra.mxu0 0
      %4270 = vmatprep.subr.bf16.mxu0 0
      %4271 = vmatpush1.bf16.msra.mxu0 0
      %4272 = vmatprep.subr.bf16.mxu0 0
      %4273 = vmatpush1.bf16.msra.mxu0 0
      %4274 = vmatprep.subr.bf16.mxu0 0
      %4275 = vmatpush1.bf16.msra.mxu0 0
      %4276 = vmatprep.subr.bf16.mxu0 0
      %4277 = vmatpush1.bf16.msra.mxu0 0
      %4278 = vmatprep.subr.bf16.mxu0 0
      %4279 = vmatpush1.bf16.msra.mxu0 0
      %4280 = vmatprep.subr.bf16.mxu0 0
      %4281 = vmatpush1.bf16.msra.mxu0 0
      %4282 = vmatprep.subr.bf16.mxu0 0
      %4283 = vmatpush1.bf16.msra.mxu0 0
      %4284 = vmatprep.mubr.bf16.mxu0 0
      %4285 = vmatmul.mubr.bf16.gmra.mrb[0].mxu0 %v4250
      %v4286 = vpop.f32.mrb[0].mxu0
      %v4287 = vadd.f32 0.0, %v4286
      %v4288 = vpop.f32.mrb[0].mxu0
      %v4289 = vadd.f32 0.0, %v4288
      %v4290 = vpop.f32.mrb[0].mxu0
      %v4291 = vpop.f32.mrb[0].mxu0
      %4292 = vdwg.mxu0
      %4293 = vmatprep.subr.bf16.mxu0 0
      %4294 = vmatpush1.bf16.msra.mxu0 %v4243
      %4295 = vmatprep.subr.bf16.mxu0 0
      %4296 = vmatpush1.bf16.msra.mxu0 0
      %4297 = vmatprep.subr.bf16.mxu0 0
      %4298 = vmatpush1.bf16.msra.mxu0 0
      %4299 = vmatprep.subr.bf16.mxu0 0
      %4300 = vmatpush1.bf16.msra.mxu0 0
      %4301 = vmatprep.subr.bf16.mxu0 0
      %4302 = vmatpush1.bf16.msra.mxu0 0
      %4303 = vmatprep.subr.bf16.mxu0 0
      %4304 = vmatpush1.bf16.msra.mxu0 0
      %4305 = vmatprep.subr.bf16.mxu0 0
      %4306 = vmatpush1.bf16.msra.mxu0 0
      %4307 = vmatprep.subr.bf16.mxu0 0
      %4308 = vmatpush1.bf16.msra.mxu0 0
      %4309 = vmatprep.subr.bf16.mxu0 0
      %4310 = vmatpush1.bf16.msra.mxu0 0
      %4311 = vmatprep.subr.bf16.mxu0 0
      %4312 = vmatpush1.bf16.msra.mxu0 0
      %4313 = vmatprep.subr.bf16.mxu0 0
      %4314 = vmatpush1.bf16.msra.mxu0 0
      %4315 = vmatprep.subr.bf16.mxu0 0
      %4316 = vmatpush1.bf16.msra.mxu0 0
      %4317 = vmatprep.subr.bf16.mxu0 0
      %4318 = vmatpush1.bf16.msra.mxu0 0
      %4319 = vmatprep.subr.bf16.mxu0 0
      %4320 = vmatpush1.bf16.msra.mxu0 0
      %4321 = vmatprep.subr.bf16.mxu0 0
      %4322 = vmatpush1.bf16.msra.mxu0 0
      %4323 = vmatprep.subr.bf16.mxu0 0
      %4324 = vmatpush1.bf16.msra.mxu0 0
      %4325 = vmatprep.mubr.bf16.mxu0 0
      %4326 = vmatmul.mubr.bf16.gmra.mrb[0].mxu0 %v4250
      %v4327 = vpop.f32.mrb[0].mxu0
      %v4328 = vadd.f32 0.0, %v4327
      %v4329 = vpop.f32.mrb[0].mxu0
      %v4330 = vpop.f32.mrb[0].mxu0
      %v4331 = vpop.f32.mrb[0].mxu0
      %4332 = vdwg.mxu0
      %v4333 = vadd.f32 %v4233, %v4287
      %v4334 = vadd.f32 %v4234, %v4289
      %v4335 = vadd.f32 %v4235, %v4328
      %s4336 = scalar_lea.vmem %s11, 24
      %v4337 = vld [vmem:[%s4336] sm:$0xf]
      %4338 = vrot.lane.b32.xlu0 %v3748, 92
      %v4339 = vpop.permute.xlu0 %4338
      %4340 = vrot.lane.b32.xlu0 %v3749, 92
      %v4341 = vpop.permute.xlu0 %4340
      %4342 = vrot.lane.b32.xlu0 %v3750, 92
      %v4343 = vpop.permute.xlu0 %4342
      %v4344 = vsel %vm1220, %v4339, %v4341
      %v4345 = vsel %vm1220, %v4341, %v4343
      %v4350 = vsel %vm574, %v4337, 0
      %4352 = vmatprep.subr.bf16.mxu0 %v4345
      %4353 = vmatpush1.bf16.msra.mxu0 %v4344
      %4354 = vmatprep.subr.bf16.mxu0 0
      %4355 = vmatpush1.bf16.msra.mxu0 0
      %4356 = vmatprep.subr.bf16.mxu0 0
      %4357 = vmatpush1.bf16.msra.mxu0 0
      %4358 = vmatprep.subr.bf16.mxu0 0
      %4359 = vmatpush1.bf16.msra.mxu0 0
      %4360 = vmatprep.subr.bf16.mxu0 0
      %4361 = vmatpush1.bf16.msra.mxu0 0
      %4362 = vmatprep.subr.bf16.mxu0 0
      %4363 = vmatpush1.bf16.msra.mxu0 0
      %4364 = vmatprep.subr.bf16.mxu0 0
      %4365 = vmatpush1.bf16.msra.mxu0 0
      %4366 = vmatprep.subr.bf16.mxu0 0
      %4367 = vmatpush1.bf16.msra.mxu0 0
      %4368 = vmatprep.subr.bf16.mxu0 0
      %4369 = vmatpush1.bf16.msra.mxu0 0
      %4370 = vmatprep.subr.bf16.mxu0 0
      %4371 = vmatpush1.bf16.msra.mxu0 0
      %4372 = vmatprep.subr.bf16.mxu0 0
      %4373 = vmatpush1.bf16.msra.mxu0 0
      %4374 = vmatprep.subr.bf16.mxu0 0
      %4375 = vmatpush1.bf16.msra.mxu0 0
      %4376 = vmatprep.subr.bf16.mxu0 0
      %4377 = vmatpush1.bf16.msra.mxu0 0
      %4378 = vmatprep.subr.bf16.mxu0 0
      %4379 = vmatpush1.bf16.msra.mxu0 0
      %4380 = vmatprep.subr.bf16.mxu0 0
      %4381 = vmatpush1.bf16.msra.mxu0 0
      %4382 = vmatprep.subr.bf16.mxu0 0
      %4383 = vmatpush1.bf16.msra.mxu0 0
      %4384 = vmatprep.mubr.bf16.mxu0 0
      %4385 = vmatmul.mubr.bf16.gmra.mrb[0].mxu0 %v4350
      %v4386 = vpop.f32.mrb[0].mxu0
      %v4387 = vadd.f32 0.0, %v4386
      %v4388 = vpop.f32.mrb[0].mxu0
      %v4389 = vadd.f32 0.0, %v4388
      %v4390 = vpop.f32.mrb[0].mxu0
      %v4391 = vpop.f32.mrb[0].mxu0
      %4392 = vdwg.mxu0
      %4393 = vmatprep.subr.bf16.mxu0 0
      %4394 = vmatpush1.bf16.msra.mxu0 %v4343
      %4395 = vmatprep.subr.bf16.mxu0 0
      %4396 = vmatpush1.bf16.msra.mxu0 0
      %4397 = vmatprep.subr.bf16.mxu0 0
      %4398 = vmatpush1.bf16.msra.mxu0 0
      %4399 = vmatprep.subr.bf16.mxu0 0
      %4400 = vmatpush1.bf16.msra.mxu0 0
      %4401 = vmatprep.subr.bf16.mxu0 0
      %4402 = vmatpush1.bf16.msra.mxu0 0
      %4403 = vmatprep.subr.bf16.mxu0 0
      %4404 = vmatpush1.bf16.msra.mxu0 0
      %4405 = vmatprep.subr.bf16.mxu0 0
      %4406 = vmatpush1.bf16.msra.mxu0 0
      %4407 = vmatprep.subr.bf16.mxu0 0
      %4408 = vmatpush1.bf16.msra.mxu0 0
      %4409 = vmatprep.subr.bf16.mxu0 0
      %4410 = vmatpush1.bf16.msra.mxu0 0
      %4411 = vmatprep.subr.bf16.mxu0 0
      %4412 = vmatpush1.bf16.msra.mxu0 0
      %4413 = vmatprep.subr.bf16.mxu0 0
      %4414 = vmatpush1.bf16.msra.mxu0 0
      %4415 = vmatprep.subr.bf16.mxu0 0
      %4416 = vmatpush1.bf16.msra.mxu0 0
      %4417 = vmatprep.subr.bf16.mxu0 0
      %4418 = vmatpush1.bf16.msra.mxu0 0
      %4419 = vmatprep.subr.bf16.mxu0 0
      %4420 = vmatpush1.bf16.msra.mxu0 0
      %4421 = vmatprep.subr.bf16.mxu0 0
      %4422 = vmatpush1.bf16.msra.mxu0 0
      %4423 = vmatprep.subr.bf16.mxu0 0
      %4424 = vmatpush1.bf16.msra.mxu0 0
      %4425 = vmatprep.mubr.bf16.mxu0 0
      %4426 = vmatmul.mubr.bf16.gmra.mrb[0].mxu0 %v4350
      %v4427 = vpop.f32.mrb[0].mxu0
      %v4428 = vadd.f32 0.0, %v4427
      %v4429 = vpop.f32.mrb[0].mxu0
      %v4430 = vpop.f32.mrb[0].mxu0
      %v4431 = vpop.f32.mrb[0].mxu0
      %4432 = vdwg.mxu0
      %v4433 = vadd.f32 %v4333, %v4387
      %v4434 = vadd.f32 %v4334, %v4389
      %v4435 = vadd.f32 %v4335, %v4428
      %s4436 = scalar_lea.vmem %s11, 28
      %v4437 = vld [vmem:[%s4436] sm:$0xf]
      %4438 = vrot.lane.b32.xlu0 %v3748, 91
      %v4439 = vpop.permute.xlu0 %4438
      %4440 = vrot.lane.b32.xlu0 %v3749, 91
      %v4441 = vpop.permute.xlu0 %4440
      %4442 = vrot.lane.b32.xlu0 %v3750, 91
      %v4443 = vpop.permute.xlu0 %4442
      %v4444 = vsel %vm1333, %v4439, %v4441
      %v4445 = vsel %vm1333, %v4441, %v4443
      %v4450 = vsel %vm574, %v4437, 0
      %4452 = vmatprep.subr.bf16.mxu0 %v4445
      %4453 = vmatpush1.bf16.msra.mxu0 %v4444
      %4454 = vmatprep.subr.bf16.mxu0 0
      %4455 = vmatpush1.bf16.msra.mxu0 0
      %4456 = vmatprep.subr.bf16.mxu0 0
      %4457 = vmatpush1.bf16.msra.mxu0 0
      %4458 = vmatprep.subr.bf16.mxu0 0
      %4459 = vmatpush1.bf16.msra.mxu0 0
      %4460 = vmatprep.subr.bf16.mxu0 0
      %4461 = vmatpush1.bf16.msra.mxu0 0
      %4462 = vmatprep.subr.bf16.mxu0 0
      %4463 = vmatpush1.bf16.msra.mxu0 0
      %4464 = vmatprep.subr.bf16.mxu0 0
      %4465 = vmatpush1.bf16.msra.mxu0 0
      %4466 = vmatprep.subr.bf16.mxu0 0
      %4467 = vmatpush1.bf16.msra.mxu0 0
      %4468 = vmatprep.subr.bf16.mxu0 0
      %4469 = vmatpush1.bf16.msra.mxu0 0
      %4470 = vmatprep.subr.bf16.mxu0 0
      %4471 = vmatpush1.bf16.msra.mxu0 0
      %4472 = vmatprep.subr.bf16.mxu0 0
      %4473 = vmatpush1.bf16.msra.mxu0 0
      %4474 = vmatprep.subr.bf16.mxu0 0
      %4475 = vmatpush1.bf16.msra.mxu0 0
      %4476 = vmatprep.subr.bf16.mxu0 0
      %4477 = vmatpush1.bf16.msra.mxu0 0
      %4478 = vmatprep.subr.bf16.mxu0 0
      %4479 = vmatpush1.bf16.msra.mxu0 0
      %4480 = vmatprep.subr.bf16.mxu0 0
      %4481 = vmatpush1.bf16.msra.mxu0 0
      %4482 = vmatprep.subr.bf16.mxu0 0
      %4483 = vmatpush1.bf16.msra.mxu0 0
      %4484 = vmatprep.mubr.bf16.mxu0 0
      %4485 = vmatmul.mubr.bf16.gmra.mrb[0].mxu0 %v4450
      %v4486 = vpop.f32.mrb[0].mxu0
      %v4487 = vadd.f32 0.0, %v4486
      %v4488 = vpop.f32.mrb[0].mxu0
      %v4489 = vadd.f32 0.0, %v4488
      %v4490 = vpop.f32.mrb[0].mxu0
      %v4491 = vpop.f32.mrb[0].mxu0
      %4492 = vdwg.mxu0
      %4493 = vmatprep.subr.bf16.mxu0 0
      %4494 = vmatpush1.bf16.msra.mxu0 %v4443
      %4495 = vmatprep.subr.bf16.mxu0 0
      %4496 = vmatpush1.bf16.msra.mxu0 0
      %4497 = vmatprep.subr.bf16.mxu0 0
      %4498 = vmatpush1.bf16.msra.mxu0 0
      %4499 = vmatprep.subr.bf16.mxu0 0
      %4500 = vmatpush1.bf16.msra.mxu0 0
      %4501 = vmatprep.subr.bf16.mxu0 0
      %4502 = vmatpush1.bf16.msra.mxu0 0
      %4503 = vmatprep.subr.bf16.mxu0 0
      %4504 = vmatpush1.bf16.msra.mxu0 0
      %4505 = vmatprep.subr.bf16.mxu0 0
      %4506 = vmatpush1.bf16.msra.mxu0 0
      %4507 = vmatprep.subr.bf16.mxu0 0
      %4508 = vmatpush1.bf16.msra.mxu0 0
      %4509 = vmatprep.subr.bf16.mxu0 0
      %4510 = vmatpush1.bf16.msra.mxu0 0
      %4511 = vmatprep.subr.bf16.mxu0 0
      %4512 = vmatpush1.bf16.msra.mxu0 0
      %4513 = vmatprep.subr.bf16.mxu0 0
      %4514 = vmatpush1.bf16.msra.mxu0 0
      %4515 = vmatprep.subr.bf16.mxu0 0
      %4516 = vmatpush1.bf16.msra.mxu0 0
      %4517 = vmatprep.subr.bf16.mxu0 0
      %4518 = vmatpush1.bf16.msra.mxu0 0
      %4519 = vmatprep.subr.bf16.mxu0 0
      %4520 = vmatpush1.bf16.msra.mxu0 0
      %4521 = vmatprep.subr.bf16.mxu0 0
      %4522 = vmatpush1.bf16.msra.mxu0 0
      %4523 = vmatprep.subr.bf16.mxu0 0
      %4524 = vmatpush1.bf16.msra.mxu0 0
      %4525 = vmatprep.mubr.bf16.mxu0 0
      %4526 = vmatmul.mubr.bf16.gmra.mrb[0].mxu0 %v4450
      %v4527 = vpop.f32.mrb[0].mxu0
      %v4528 = vadd.f32 0.0, %v4527
      %v4529 = vpop.f32.mrb[0].mxu0
      %v4530 = vpop.f32.mrb[0].mxu0
      %v4531 = vpop.f32.mrb[0].mxu0
      %4532 = vdwg.mxu0
      %v4533 = vadd.f32 %v4433, %v4487
      %v4534 = vadd.f32 %v4434, %v4489
      %v4535 = vadd.f32 %v4435, %v4528
      %s4536 = scalar_lea.vmem %s11, 32
      %v4537 = vld [vmem:[%s4536] sm:$0xf]
      %4538 = vrot.lane.b32.xlu0 %v3748, 90
      %v4539 = vpop.permute.xlu0 %4538
      %4540 = vrot.lane.b32.xlu0 %v3749, 90
      %v4541 = vpop.permute.xlu0 %4540
      %4542 = vrot.lane.b32.xlu0 %v3750, 90
      %v4543 = vpop.permute.xlu0 %4542
      %v4544 = vsel %vm1446, %v4539, %v4541
      %v4545 = vsel %vm1446, %v4541, %v4543
      %v4550 = vsel %vm574, %v4537, 0
      %4552 = vmatprep.subr.bf16.mxu0 %v4545
      %4553 = vmatpush1.bf16.msra.mxu0 %v4544
      %4554 = vmatprep.subr.bf16.mxu0 0
      %4555 = vmatpush1.bf16.msra.mxu0 0
      %4556 = vmatprep.subr.bf16.mxu0 0
      %4557 = vmatpush1.bf16.msra.mxu0 0
      %4558 = vmatprep.subr.bf16.mxu0 0
      %4559 = vmatpush1.bf16.msra.mxu0 0
      %4560 = vmatprep.subr.bf16.mxu0 0
      %4561 = vmatpush1.bf16.msra.mxu0 0
      %4562 = vmatprep.subr.bf16.mxu0 0
      %4563 = vmatpush1.bf16.msra.mxu0 0
      %4564 = vmatprep.subr.bf16.mxu0 0
      %4565 = vmatpush1.bf16.msra.mxu0 0
      %4566 = vmatprep.subr.bf16.mxu0 0
      %4567 = vmatpush1.bf16.msra.mxu0 0
      %4568 = vmatprep.subr.bf16.mxu0 0
      %4569 = vmatpush1.bf16.msra.mxu0 0
      %4570 = vmatprep.subr.bf16.mxu0 0
      %4571 = vmatpush1.bf16.msra.mxu0 0
      %4572 = vmatprep.subr.bf16.mxu0 0
      %4573 = vmatpush1.bf16.msra.mxu0 0
      %4574 = vmatprep.subr.bf16.mxu0 0
      %4575 = vmatpush1.bf16.msra.mxu0 0
      %4576 = vmatprep.subr.bf16.mxu0 0
      %4577 = vmatpush1.bf16.msra.mxu0 0
      %4578 = vmatprep.subr.bf16.mxu0 0
      %4579 = vmatpush1.bf16.msra.mxu0 0
      %4580 = vmatprep.subr.bf16.mxu0 0
      %4581 = vmatpush1.bf16.msra.mxu0 0
      %4582 = vmatprep.subr.bf16.mxu0 0
      %4583 = vmatpush1.bf16.msra.mxu0 0
      %4584 = vmatprep.mubr.bf16.mxu0 0
      %4585 = vmatmul.mubr.bf16.gmra.mrb[0].mxu0 %v4550
      %v4586 = vpop.f32.mrb[0].mxu0
      %v4587 = vadd.f32 0.0, %v4586
      %v4588 = vpop.f32.mrb[0].mxu0
      %v4589 = vadd.f32 0.0, %v4588
      %v4590 = vpop.f32.mrb[0].mxu0
      %v4591 = vpop.f32.mrb[0].mxu0
      %4592 = vdwg.mxu0
      %4593 = vmatprep.subr.bf16.mxu0 0
      %4594 = vmatpush1.bf16.msra.mxu0 %v4543
      %4595 = vmatprep.subr.bf16.mxu0 0
      %4596 = vmatpush1.bf16.msra.mxu0 0
      %4597 = vmatprep.subr.bf16.mxu0 0
      %4598 = vmatpush1.bf16.msra.mxu0 0
      %4599 = vmatprep.subr.bf16.mxu0 0
      %4600 = vmatpush1.bf16.msra.mxu0 0
      %4601 = vmatprep.subr.bf16.mxu0 0
      %4602 = vmatpush1.bf16.msra.mxu0 0
      %4603 = vmatprep.subr.bf16.mxu0 0
      %4604 = vmatpush1.bf16.msra.mxu0 0
      %4605 = vmatprep.subr.bf16.mxu0 0
      %4606 = vmatpush1.bf16.msra.mxu0 0
      %4607 = vmatprep.subr.bf16.mxu0 0
      %4608 = vmatpush1.bf16.msra.mxu0 0
      %4609 = vmatprep.subr.bf16.mxu0 0
      %4610 = vmatpush1.bf16.msra.mxu0 0
      %4611 = vmatprep.subr.bf16.mxu0 0
      %4612 = vmatpush1.bf16.msra.mxu0 0
      %4613 = vmatprep.subr.bf16.mxu0 0
      %4614 = vmatpush1.bf16.msra.mxu0 0
      %4615 = vmatprep.subr.bf16.mxu0 0
      %4616 = vmatpush1.bf16.msra.mxu0 0
      %4617 = vmatprep.subr.bf16.mxu0 0
      %4618 = vmatpush1.bf16.msra.mxu0 0
      %4619 = vmatprep.subr.bf16.mxu0 0
      %4620 = vmatpush1.bf16.msra.mxu0 0
      %4621 = vmatprep.subr.bf16.mxu0 0
      %4622 = vmatpush1.bf16.msra.mxu0 0
      %4623 = vmatprep.subr.bf16.mxu0 0
      %4624 = vmatpush1.bf16.msra.mxu0 0
      %4625 = vmatprep.mubr.bf16.mxu0 0
      %4626 = vmatmul.mubr.bf16.gmra.mrb[0].mxu0 %v4550
      %v4627 = vpop.f32.mrb[0].mxu0
      %v4628 = vadd.f32 0.0, %v4627
      %v4629 = vpop.f32.mrb[0].mxu0
      %v4630 = vpop.f32.mrb[0].mxu0
      %v4631 = vpop.f32.mrb[0].mxu0
      %4632 = vdwg.mxu0
      %v4633 = vadd.f32 %v4533, %v4587
      %v4634 = vadd.f32 %v4534, %v4589
      %v4635 = vadd.f32 %v4535, %v4628
      %v4636 = vld [vmem:[%s12] sm:$0xff]
      %4638 = vset.pattern.permute.xlu0 0
      %4639 = vperm.xlu0 %4638, %v4636
      %v4640 = vpop.permute.xlu0 %4639
      %v4642 = vmul.f32 %v4633, %v4640
      %v4643 = vmul.f32 %v4634, %v4640
      %v4644 = vmul.f32 %v4635, %v4640
      %v4645 = vld [vmem:[%s13] sm:$0xff]
      %4647 = vset.pattern.permute.xlu0 0
      %4648 = vperm.xlu0 %4647, %v4645
      %v4649 = vpop.permute.xlu0 %4648
      %v4651 = vadd.f32 %v4642, %v4649
      %v4652 = vadd.f32 %v4643, %v4649
      %v4653 = vadd.f32 %v4644, %v4649
      %v4654 = vmax.f32 %v4651, 0.0
      %v4655 = vmax.f32 %v4652, 0.0
      %v4656 = vmax.f32 %v4653, 0.0
      %v4657 = vmul.f32 %v4654, %v1591
      %v4658 = vmul.f32 %v4655, %v1595
      %v4659 = vmul.f32 %v4656, %v1599
      %v4660 = vadd.f32 %v4657, %v4658
      %vm4661 = vcmask 244736
      %v4662 = vsel %vm4661, %v4659, 0.0
      %v4663 = vadd.f32 %v4660, %v4662
      %4664 = vadd.xlane.f32.xlu0 %v4663
      %v4665 = vpop.xlane.xlu0 %4664
      %v4666 = vmul.f32 %v4665, 0.00390625
      %v4667 = vld [vmem:[%s14] sm:$0xff]
      %v4668 = vld [vmem:[%s15] sm:$0xff]
      %vm4669 = vcmask 64512
      %v4671 = vsel %vm4669, %v4667, 0
      %4673 = vmatprep.subr.mxu0 0.0
      %4674 = vmatpush1.msra.mxu0 %v4666
      %4675 = vmatprep.subr.mxu0 0.0
      %4676 = vmatpush1.msra.mxu0 0.0
      %4677 = vmatprep.subr.mxu0 0.0
      %4678 = vmatpush1.msra.mxu0 0.0
      %4679 = vmatprep.subr.mxu0 0.0
      %4680 = vmatpush1.msra.mxu0 0.0
      %4681 = vmatprep.subr.mxu0 0.0
      %4682 = vmatpush1.msra.mxu0 0.0
      %4683 = vmatprep.subr.mxu0 0.0
      %4684 = vmatpush1.msra.mxu0 0.0
      %4685 = vmatprep.subr.mxu0 0.0
      %4686 = vmatpush1.msra.mxu0 0.0
      %4687 = vmatprep.subr.mxu0 0.0
      %4688 = vmatpush1.msra.mxu0 0.0
      %4689 = vmatprep.subr.mxu0 0.0
      %4690 = vmatpush1.msra.mxu0 0.0
      %4691 = vmatprep.subr.mxu0 0.0
      %4692 = vmatpush1.msra.mxu0 0.0
      %4693 = vmatprep.subr.mxu0 0.0
      %4694 = vmatpush1.msra.mxu0 0.0
      %4695 = vmatprep.subr.mxu0 0.0
      %4696 = vmatpush1.msra.mxu0 0.0
      %4697 = vmatprep.subr.mxu0 0.0
      %4698 = vmatpush1.msra.mxu0 0.0
      %4699 = vmatprep.subr.mxu0 0.0
      %4700 = vmatpush1.msra.mxu0 0.0
      %4701 = vmatprep.subr.mxu0 0.0
      %4702 = vmatpush1.msra.mxu0 0.0
      %4703 = vmatprep.subr.mxu0 0.0
      %4704 = vmatpush1.msra.mxu0 0.0
      %4705 = vmatprep.subr.mxu0 0.0
      %4706 = vmatpush1.msra.mxu0 0.0
      %4707 = vmatprep.subr.mxu0 0.0
      %4708 = vmatpush1.msra.mxu0 0.0
      %4709 = vmatprep.subr.mxu0 0.0
      %4710 = vmatpush1.msra.mxu0 0.0
      %4711 = vmatprep.subr.mxu0 0.0
      %4712 = vmatpush1.msra.mxu0 0.0
      %4713 = vmatprep.subr.mxu0 0.0
      %4714 = vmatpush1.msra.mxu0 0.0
      %4715 = vmatprep.subr.mxu0 0.0
      %4716 = vmatpush1.msra.mxu0 0.0
      %4717 = vmatprep.subr.mxu0 0.0
      %4718 = vmatpush1.msra.mxu0 0.0
      %4719 = vmatprep.subr.mxu0 0.0
      %4720 = vmatpush1.msra.mxu0 0.0
      %4721 = vmatprep.subr.mxu0 0.0
      %4722 = vmatpush1.msra.mxu0 0.0
      %4723 = vmatprep.subr.mxu0 0.0
      %4724 = vmatpush1.msra.mxu0 0.0
      %4725 = vmatprep.subr.mxu0 0.0
      %4726 = vmatpush1.msra.mxu0 0.0
      %4727 = vmatprep.subr.mxu0 0.0
      %4728 = vmatpush1.msra.mxu0 0.0
      %4729 = vmatprep.subr.mxu0 0.0
      %4730 = vmatpush1.msra.mxu0 0.0
      %4731 = vmatprep.subr.mxu0 0.0
      %4732 = vmatpush1.msra.mxu0 0.0
      %4733 = vmatprep.subr.mxu0 0.0
      %4734 = vmatpush1.msra.mxu0 0.0
      %4735 = vmatprep.subr.mxu0 0.0
      %4736 = vmatpush1.msra.mxu0 0.0
      %4737 = vmatprep.mubr.f32.mxu0 0.0
      %4738 = vmatmul.mubr.f32.gmra.mrb[0].mxu0 %v4671
      %v4739 = vpop.f32.mrb[0].mxu0
      %v4740 = vadd.f32 %v4668, %v4739
      %v4741 = vpop.f32.mrb[0].mxu0
      %4742 = vdwg.mxu0
      %vm4743 = vcmask 7168
      %4744 = vst.msk [vmem:[%s519] sm:$0xff] %vm4743, %v4740
      %p4745 = scmp.lt.s32.totalorder %s27, 1
      %s4746 = scalar_select %p4745, %s27, 1
      %s4747 = smul.addr %s4746, 8
      %s4748 = scalar_lea.vmem %s16, %s4747
      // Predicated region
      $region85: #{decoder_forward.1} parent=83 // pred_check
        %p4749 = pneg %p386
      $region86: #{decoder_forward.1} parent=83 // pred_check_branch
        %4751 = sbr.rel (%p4749) target = $region88
      $region87: #{decoder_forward.1} parent=83 // pred_region
        _
      $region88: #{decoder_forward.1} parent=83 // pred_fallthru
        _
    $region84: #{decoder_forward.1} parent=5 // pred_fallthru
      _
    %p4752 = scmp.le.s32.totalorder 2, %s22
    // Predicated region
    $region89: #{decoder_forward.1} parent=5 // pred_check
      %p4753 = pneg %p4752
    $region90: #{decoder_forward.1} parent=5 // pred_check_branch
      %4755 = sbr.rel (%p4753) target = $region92
    $region91: #{decoder_forward.1} parent=5 // pred_region
      %s4756 = ssub.s32 %s22, 2
      // Predicated region
      $region93: #{decoder_forward.1} parent=91 // pred_check
        %p4757 = pneg %p392
      $region94: #{decoder_forward.1} parent=91 // pred_check_branch
        %4759 = sbr.rel (%p4757) target = $region96
      $region95: #{decoder_forward.1} parent=91 // pred_region
        %p4760 = scmp.lt.s32.totalorder %s28, 1
        %s4761 = scalar_select %p4760, %s28, 1
        %s4762 = smul.addr %s4761, 8
        %s4763 = scalar_lea.vmem %s16, %s4762
      $region96: #{decoder_forward.1} parent=91 // pred_fallthru
        _
    $region92: #{decoder_forward.1} parent=5 // pred_fallthru
      _
  $region6: #{decoder_forward.1} parent=0 // loop_footer
    %s26 = sadd.s32 1, %s22
  $region7: #{decoder_forward.1} parent=0 // loop_footer_branch
    %21 = sbr.rel target = $region3
  $region8: #{decoder_forward.1} parent=0 // loop_exit
    _

</llo_original>
